<compile_context>
chip_gen: v7x
topology: tpu7x:2x2x1
jax: 0.10.0
libtpu: 0.0.40
codegen_flags: <defaults>
</compile_context>

<pallas_src>
import functools
import math

import jax
import jax.numpy as jnp
from jax import lax
from jax.experimental import pallas as pl
from jax.experimental.pallas import tpu as pltpu

# ---- model configuration (small, consistent with the PyTorch module) ----
VOCAB_SIZE = 16          # board-piece vocabulary
SQUARES_SIZE = 64        # board squares -> board-token sequence length
N_EMBD = 32
N_HEAD = 2
N_LAYER = 2
SPECIAL_SIZE = 4
N_MOVES_REEVALUATE = 4
N_POSSIBLE_MOVES = 128
LN_EPS = 1e-5

# dot_general dimension numbers (2-D), so no operand is ever transposed in the wrapper.
_NT = (((1,), (1,)), ((), ()))   # a @ b.T   (PyTorch Linear weight layout [out, in])
_TN = (((0,), (0,)), ((), ()))   # a.T @ b   (one-hot embedding gather)


def _transformer_fwd_kernel(
    # inputs
    board_ref,                     # (B, T) int32, VMEM (whole array)
    special_ref,                   # (B, SPECIAL) f32, SMEM (scalar reads)
    te_ref,                        # (VOCAB, C) f32
    pe_ref,                        # (SQUARES, C) f32
    me_ref,                        # (N_POSSIBLE_MOVES + 1, C) f32
    ln1_w_ref, ln1_b_ref,          # (L, 1, C)
    attn_w_ref, attn_b_ref,        # (L, 3, C, C), (L, 3, 1, C)   [q,k,v]
    proj_w_ref, proj_b_ref,        # (L, C, C), (L, 1, C)
    ln2_w_ref, ln2_b_ref,          # (L, 1, C)
    fc_w_ref, fc_b_ref,            # (L, 4C, C), (L, 1, 4C)
    fcp_w_ref, fcp_b_ref,          # (L, C, 4C), (L, 1, C)
    lnf_w_ref, lnf_b_ref,          # (1, C)
    # outputs
    out_ref,                       # (1, S, C)
    # scratch
    x_scr,                         # (S, C) f32 VMEM
    *, n_head, n_reeval,
):
    f32 = jnp.float32
    b = pl.program_id(0)
    T = board_ref.shape[1]
    vocab = te_ref.shape[0]
    C = te_ref.shape[1]
    S = out_ref.shape[1]
    n_special = special_ref.shape[1]
    n_layer = ln1_w_ref.shape[0]
    hd = C // n_head
    scale = 1.0 / math.sqrt(hd)

    # ---------------- embedding assembly:  [tok+pos | special | move slots] ----------------
    ids_row = board_ref[pl.ds(b, 1), :]                               # (1, T) int32
    viota = lax.broadcasted_iota(jnp.int32, (vocab, T), 0)            # (VOCAB, T)
    onehot_vt = (viota == ids_row).astype(f32)                        # one-hot, [vocab, T]
    tok_emb = lax.dot_general(onehot_vt, te_ref[...], _TN,
                              preferred_element_type=f32)             # (T, C)  MXU gather
    x_scr[0:T, :] = tok_emb + pe_ref[0:T, :]

    # special tokens: scalar value broadcast across the embedding dim (PyTorch expand)
    for i in range(n_special):
        x_scr[pl.ds(T + i, 1), :] = jnp.full((1, C), special_ref[b, i], dtype=f32)

    # move-reevaluation slots: embedding row `n_possible_moves` for every slot
    me_row = me_ref[pl.ds(me_ref.shape[0] - 1, 1), :]                 # (1, C)
    for i in range(n_reeval):
        x_scr[pl.ds(T + n_special + i, 1), :] = me_row

    x = x_scr[...]                                                    # (S, C)

    def layer_norm(h, w, bias):
        mu = jnp.mean(h, axis=-1, keepdims=True)
        hc = h - mu
        var = jnp.mean(hc * hc, axis=-1, keepdims=True)
        return hc * lax.rsqrt(var + LN_EPS) * w + bias

    lane = lax.broadcasted_iota(jnp.int32, (1, C), 1)                 # lane index (reused)

    # ---------------- transformer blocks ----------------
    for l in range(n_layer):
        # -- multi-head self-attention (non-causal, matches F.scaled_dot_product_attention) --
        h = layer_norm(x, ln1_w_ref[l], ln1_b_ref[l])
        q = lax.dot_general(h, attn_w_ref[l, 0], _NT,
                            preferred_element_type=f32) + attn_b_ref[l, 0]
        k = lax.dot_general(h, attn_w_ref[l, 1], _NT,
                            preferred_element_type=f32) + attn_b_ref[l, 1]
        v = lax.dot_general(h, attn_w_ref[l, 2], _NT,
                            preferred_element_type=f32) + attn_b_ref[l, 2]

        y = jnp.zeros((S, C), f32)
        for hi in range(n_head):
            # head split via lane masks (no sub-128 lane slicing); zeros contribute exactly 0.
            head_mask = jnp.logical_and(lane >= hi * hd, lane < (hi + 1) * hd)   # (1, C)
            qh = jnp.where(head_mask, q, 0.0)
            vh = jnp.where(head_mask, v, 0.0)
            s = lax.dot_general(qh, k, _NT, preferred_element_type=f32) * scale  # (S, S)
            s = s - jnp.max(s, axis=-1, keepdims=True)
            p = jnp.exp(s)
            p = p / jnp.sum(p, axis=-1, keepdims=True)
            y = y + jnp.dot(p, vh, preferred_element_type=f32)        # fills head-hi lanes only

        y = lax.dot_general(y, proj_w_ref[l], _NT,
                            preferred_element_type=f32) + proj_b_ref[l]
        x = x + y                        # dropout_1: identity at inference

        # -- MLP --
        h2 = layer_norm(x, ln2_w_ref[l], ln2_b_ref[l])
        a = lax.dot_general(h2, fc_w_ref[l], _NT,
                            preferred_element_type=f32) + fc_b_ref[l]            # (S, 4C)
        # TODO(synk): PyTorch nn.GELU() default is the exact erf form; tanh approximation used
        # here (and in the reference) for portable Mosaic lowering.
        g = jax.nn.gelu(a, approximate=True)
        m = lax.dot_general(g, fcp_w_ref[l], _NT,
                            preferred_element_type=f32) + fcp_b_ref[l]           # (S, C)
        x = x + m                        # dropout_2: identity at inference

    # ---------------- final LayerNorm ----------------
    x = layer_norm(x, lnf_w_ref[...], lnf_b_ref[...])
    out_ref[...] = x.reshape(out_ref.shape)


def transformer_forward(board_state, special_tokens, params, *,
                        n_head=N_HEAD, n_reeval=N_MOVES_REEVALUATE):
    """board_state: [B, T] int ids; special_tokens: [B, special_size] f32.
    Returns [B, T + special_size + n_moves_reevaluate, n_embd] f32."""
    board_state = board_state.astype(jnp.int32)
    special_tokens = special_tokens.astype(jnp.float32)
    B, T = board_state.shape
    C = params["te"].shape[1]
    n_special = special_tokens.shape[1]
    S = T + n_special + n_reeval

    dense_inputs = (
        params["te"], params["pe"], params["me"],
        params["ln1_w"], params["ln1_b"],
        params["attn_w"], params["attn_b"],
        params["proj_w"], params["proj_b"],
        params["ln2_w"], params["ln2_b"],
        params["fc_w"], params["fc_b"],
        params["fcp_w"], params["fcp_b"],
        params["lnf_w"], params["lnf_b"],
    )

    def whole(a):                      # whole-array block, resident across the batch grid
        nd = a.ndim
        return pl.BlockSpec(a.shape, lambda i, _nd=nd: (0,) * _nd)

    in_specs = (
        [whole(board_state),
         pl.BlockSpec(memory_space=pltpu.MemorySpace.SMEM)]   # special tokens -> scalar reads
        + [whole(a) for a in dense_inputs]
    )

    kernel = functools.partial(_transformer_fwd_kernel,
                               n_head=n_head, n_reeval=n_reeval)

    return pl.pallas_call(
        kernel,
        out_shape=jax.ShapeDtypeStruct((B, S, C), jnp.float32),
        grid=(B,),
        in_specs=in_specs,
        out_specs=pl.BlockSpec((1, S, C), lambda i: (i, 0, 0)),
        scratch_shapes=[pltpu.VMEM((S, C), jnp.float32)],
        compiler_params=pltpu.CompilerParams(
            dimension_semantics=("parallel",),   # shards batch across v7x's 2 TCs
        ),
    )(board_state, special_tokens, *dense_inputs)


# ------------------------- pure-JAX reference (same math) -------------------------
def _reference_forward(board_state, special_tokens, params, *,
                       n_head=N_HEAD, n_reeval=N_MOVES_REEVALUATE):
    te, pe, me = params["te"], params["pe"], params["me"]
    B, T = board_state.shape
    C = te.shape[1]
    tok = te[board_state]
    pos = pe[:T]
    sp = jnp.broadcast_to(special_tokens[:, :, None], (B, special_tokens.shape[1], C))
    mv = jnp.broadcast_to(me[-1][None, None, :], (B, n_reeval, C))
    x = jnp.concatenate([tok + pos, sp, mv], axis=1).astype(jnp.float32)

    hd = C // n_head
    scale = 1.0 / math.sqrt(hd)
    hi = lax.Precision.HIGHEST

    def ln(h, w, b):
        mu = jnp.mean(h, axis=-1, keepdims=True)
        hc = h - mu
        var = jnp.mean(hc * hc, axis=-1, keepdims=True)
        return hc * lax.rsqrt(var + LN_EPS) * w + b

    def linear(h, w, b):
        return jnp.einsum("bsc,oc->bso", h, w, precision=hi) + b

    n_layer = params["ln1_w"].shape[0]
    for l in range(n_layer):
        h = ln(x, params["ln1_w"][l, 0], params["ln1_b"][l, 0])
        q = linear(h, params["attn_w"][l, 0], params["attn_b"][l, 0, 0])
        k = linear(h, params["attn_w"][l, 1], params["attn_b"][l, 1, 0])
        v = linear(h, params["attn_w"][l, 2], params["attn_b"][l, 2, 0])
        q = q.reshape(B, -1, n_head, hd).transpose(0, 2, 1, 3)
        k = k.reshape(B, -1, n_head, hd).transpose(0, 2, 1, 3)
        v = v.reshape(B, -1, n_head, hd).transpose(0, 2, 1, 3)
        s = jnp.einsum("bhqd,bhkd->bhqk", q, k, precision=hi) * scale
        s = s - jnp.max(s, axis=-1, keepdims=True)
        p = jnp.exp(s)
        p = p / jnp.sum(p, axis=-1, keepdims=True)
        y = jnp.einsum("bhqk,bhkd->bhqd", p, v, precision=hi)
        y = y.transpose(0, 2, 1, 3).reshape(B, -1, C)
        y = linear(y, params["proj_w"][l], params["proj_b"][l, 0])
        x = x + y
        h2 = ln(x, params["ln2_w"][l, 0], params["ln2_b"][l, 0])
        a = linear(h2, params["fc_w"][l], params["fc_b"][l, 0])
        g = jax.nn.gelu(a, approximate=True)
        m = linear(g, params["fcp_w"][l], params["fcp_b"][l, 0])
        x = x + m
    return ln(x, params["lnf_w"][0], params["lnf_b"][0])


def init_params(key):
    C, L = N_EMBD, N_LAYER
    ks = iter(jax.random.split(key, 32))

    def unif(k, shape, fan_in):
        b = 1.0 / math.sqrt(fan_in)
        return jax.random.uniform(k, shape, jnp.float32, -b, b)

    return dict(
        te=0.1 * jax.random.normal(next(ks), (VOCAB_SIZE, C), jnp.float32),
        pe=0.1 * jax.random.normal(next(ks), (SQUARES_SIZE, C), jnp.float32),
        me=0.1 * jax.random.normal(next(ks), (N_POSSIBLE_MOVES + 1, C), jnp.float32),
        ln1_w=1.0 + 0.1 * jax.random.normal(next(ks), (L, 1, C), jnp.float32),
        ln1_b=0.1 * jax.random.normal(next(ks), (L, 1, C), jnp.float32),
        attn_w=unif(next(ks), (L, 3, C, C), C),          # c_attn weight, split [q,k,v]
        attn_b=unif(next(ks), (L, 3, 1, C), C),
        proj_w=unif(next(ks), (L, C, C), C),
        proj_b=unif(next(ks), (L, 1, C), C),
        ln2_w=1.0 + 0.1 * jax.random.normal(next(ks), (L, 1, C), jnp.float32),
        ln2_b=0.1 * jax.random.normal(next(ks), (L, 1, C), jnp.float32),
        fc_w=unif(next(ks), (L, 4 * C, C), C),
        fc_b=unif(next(ks), (L, 1, 4 * C), C),
        fcp_w=unif(next(ks), (L, C, 4 * C), 4 * C),
        fcp_b=unif(next(ks), (L, 1, C), 4 * C),
        lnf_w=1.0 + 0.1 * jax.random.normal(next(ks), (1, C), jnp.float32),
        lnf_b=0.1 * jax.random.normal(next(ks), (1, C), jnp.float32),
    )


if __name__ == "__main__":
    B, T = 2, SQUARES_SIZE
    key = jax.random.PRNGKey(0)
    kp, kb, ks = jax.random.split(key, 3)
    params = init_params(kp)
    board_state = jax.random.randint(kb, (B, T), 0, VOCAB_SIZE, dtype=jnp.int32)
    special_tokens = jax.random.normal(ks, (B, SPECIAL_SIZE), jnp.float32)
    # NOTE: reevaluation_moves_tensor / mre / se are unused by this forward pass (as in PyTorch).

    fwd = jax.jit(functools.partial(transformer_forward,
                                    n_head=N_HEAD, n_reeval=N_MOVES_REEVALUATE))
    out = fwd(board_state, special_tokens, params)
    out = jax.block_until_ready(out)

    S = T + SPECIAL_SIZE + N_MOVES_REEVALUATE
    assert out.shape == (B, S, N_EMBD) and out.dtype == jnp.float32
    assert bool(jnp.all(jnp.isfinite(out)))

    ref = jax.block_until_ready(_reference_forward(board_state, special_tokens, params))
    assert jnp.allclose(out, ref, atol=1e-3, rtol=1e-3), float(jnp.max(jnp.abs(out - ref)))

    print("KERNEL_OK")
</pallas_src>

<mosaic_0001>
module attributes {stable_mosaic.version = 11 : i64} {
  func.func @_transformer_fwd_kernel(%arg0: i32, %arg1: memref<2x64xi32, #tpu.memory_space<vmem>>, %arg2: memref<2x4xf32, #tpu.memory_space<smem>>, %arg3: memref<16x32xf32, #tpu.memory_space<vmem>>, %arg4: memref<64x32xf32, #tpu.memory_space<vmem>>, %arg5: memref<129x32xf32, #tpu.memory_space<vmem>>, %arg6: memref<2x1x32xf32, #tpu.memory_space<vmem>>, %arg7: memref<2x1x32xf32, #tpu.memory_space<vmem>>, %arg8: memref<2x3x32x32xf32, #tpu.memory_space<vmem>>, %arg9: memref<2x3x1x32xf32, #tpu.memory_space<vmem>>, %arg10: memref<2x32x32xf32, #tpu.memory_space<vmem>>, %arg11: memref<2x1x32xf32, #tpu.memory_space<vmem>>, %arg12: memref<2x1x32xf32, #tpu.memory_space<vmem>>, %arg13: memref<2x1x32xf32, #tpu.memory_space<vmem>>, %arg14: memref<2x128x32xf32, #tpu.memory_space<vmem>>, %arg15: memref<2x1x128xf32, #tpu.memory_space<vmem>>, %arg16: memref<2x32x128xf32, #tpu.memory_space<vmem>>, %arg17: memref<2x1x32xf32, #tpu.memory_space<vmem>>, %arg18: memref<1x32xf32, #tpu.memory_space<vmem>>, %arg19: memref<1x32xf32, #tpu.memory_space<vmem>>, %arg20: memref<1x72x32xf32, #tpu.memory_space<vmem>>, %arg21: memref<72x32xf32, #tpu.memory_space<vmem>>) attributes {dimension_semantics = [#tpu.dimension_semantics<parallel>], iteration_bounds = array<i64: 2>, scalar_prefetch = 0 : i64, scratch_operands = 1 : i64, tpu.core_type = #tpu.core_type<tc>, window_params = [{pipeline_mode = #tpu.pipeline_mode<synchronous>, transform_indices = @transform_0, window_bounds = array<i64: 2, 64>}, {transform_indices = @transform_1, window_bounds = array<i64: 2, 4>}, {pipeline_mode = #tpu.pipeline_mode<synchronous>, transform_indices = @transform_2, window_bounds = array<i64: 16, 32>}, {pipeline_mode = #tpu.pipeline_mode<synchronous>, transform_indices = @transform_3, window_bounds = array<i64: 64, 32>}, {pipeline_mode = #tpu.pipeline_mode<synchronous>, transform_indices = @transform_4, window_bounds = array<i64: 129, 32>}, {pipeline_mode = #tpu.pipeline_mode<synchronous>, transform_indices = @transform_5, window_bounds = array<i64: 2, 1, 32>}, {pipeline_mode = #tpu.pipeline_mode<synchronous>, transform_indices = @transform_6, window_bounds = array<i64: 2, 1, 32>}, {pipeline_mode = #tpu.pipeline_mode<synchronous>, transform_indices = @transform_7, window_bounds = array<i64: 2, 3, 32, 32>}, {pipeline_mode = #tpu.pipeline_mode<synchronous>, transform_indices = @transform_8, window_bounds = array<i64: 2, 3, 1, 32>}, {pipeline_mode = #tpu.pipeline_mode<synchronous>, transform_indices = @transform_9, window_bounds = array<i64: 2, 32, 32>}, {pipeline_mode = #tpu.pipeline_mode<synchronous>, transform_indices = @transform_10, window_bounds = array<i64: 2, 1, 32>}, {pipeline_mode = #tpu.pipeline_mode<synchronous>, transform_indices = @transform_11, window_bounds = array<i64: 2, 1, 32>}, {pipeline_mode = #tpu.pipeline_mode<synchronous>, transform_indices = @transform_12, window_bounds = array<i64: 2, 1, 32>}, {pipeline_mode = #tpu.pipeline_mode<synchronous>, transform_indices = @transform_13, window_bounds = array<i64: 2, 128, 32>}, {pipeline_mode = #tpu.pipeline_mode<synchronous>, transform_indices = @transform_14, window_bounds = array<i64: 2, 1, 128>}, {pipeline_mode = #tpu.pipeline_mode<synchronous>, transform_indices = @transform_15, window_bounds = array<i64: 2, 32, 128>}, {pipeline_mode = #tpu.pipeline_mode<synchronous>, transform_indices = @transform_16, window_bounds = array<i64: 2, 1, 32>}, {pipeline_mode = #tpu.pipeline_mode<synchronous>, transform_indices = @transform_17, window_bounds = array<i64: 1, 32>}, {pipeline_mode = #tpu.pipeline_mode<synchronous>, transform_indices = @transform_18, window_bounds = array<i64: 1, 32>}, {transform_indices = @transform_19, window_bounds = array<i64: 1, 72, 32>}]} {
    %0 = arith.index_cast %arg0 : i32 to index
    %c0 = arith.constant 0 : index
    %1 = vector.load %arg1[%0, %c0] : memref<2x64xi32, #tpu.memory_space<vmem>>, vector<1x64xi32>
    %2 = tpu.iota {dimensions = array<i32: 0>} : vector<16x64xi32>
    %3 = vector.broadcast %1 : vector<1x64xi32> to vector<16x64xi32>
    %4 = arith.cmpi eq, %2, %3 : vector<16x64xi32>
    %5 = arith.extui %4 : vector<16x64xi1> to vector<16x64xi32>
    %6 = arith.sitofp %5 : vector<16x64xi32> to vector<16x64xf32>
    %c0_0 = arith.constant 0 : index
    %c0_1 = arith.constant 0 : index
    %7 = vector.load %arg3[%c0_0, %c0_1] : memref<16x32xf32, #tpu.memory_space<vmem>>, vector<16x32xf32>
    %cst = arith.constant dense<0.000000e+00> : vector<64x32xf32>
    %8 = tpu.matmul %6, %7, %cst {dimension_numbers = #tpu.dot_dimension_numbers<[0], [0], [1], [1], [0, 1, 1, 1], [], []>} : vector<16x64xf32>, vector<16x32xf32>, vector<64x32xf32> -> vector<64x32xf32>
    %c0_2 = arith.constant 0 : index
    %c0_3 = arith.constant 0 : index
    %9 = vector.load %arg4[%c0_2, %c0_3] : memref<64x32xf32, #tpu.memory_space<vmem>>, vector<64x32xf32>
    %10 = arith.addf %8, %9 : vector<64x32xf32>
    %c0_4 = arith.constant 0 : index
    %c0_5 = arith.constant 0 : index
    %11 = vector.load %arg21[%c0_4, %c0_5] : memref<72x32xf32, #tpu.memory_space<vmem>>, vector<64x32xf32>
    tpu.vector_store %arg21[%c0_4, %c0_5], %10 {strides = array<i32>} : memref<72x32xf32, #tpu.memory_space<vmem>>, vector<64x32xf32>,
    %12 = arith.index_cast %arg0 : i32 to index
    %c0_6 = arith.constant 0 : index
    %13 = memref.load %arg2[%12, %c0_6] : memref<2x4xf32, #tpu.memory_space<smem>>
    %14 = vector.broadcast %13 : f32 to vector<1x32xf32>
    %c64 = arith.constant 64 : index
    %c0_7 = arith.constant 0 : index
    %15 = vector.load %arg21[%c64, %c0_7] : memref<72x32xf32, #tpu.memory_space<vmem>>, vector<1x32xf32>
    tpu.vector_store %arg21[%c64, %c0_7], %14 {strides = array<i32>} : memref<72x32xf32, #tpu.memory_space<vmem>>, vector<1x32xf32>,
    %16 = arith.index_cast %arg0 : i32 to index
    %c1 = arith.constant 1 : index
    %17 = memref.load %arg2[%16, %c1] : memref<2x4xf32, #tpu.memory_space<smem>>
    %18 = vector.broadcast %17 : f32 to vector<1x32xf32>
    %c65 = arith.constant 65 : index
    %c0_8 = arith.constant 0 : index
    %19 = vector.load %arg21[%c65, %c0_8] : memref<72x32xf32, #tpu.memory_space<vmem>>, vector<1x32xf32>
    tpu.vector_store %arg21[%c65, %c0_8], %18 {strides = array<i32>} : memref<72x32xf32, #tpu.memory_space<vmem>>, vector<1x32xf32>,
    %20 = arith.index_cast %arg0 : i32 to index
    %c2 = arith.constant 2 : index
    %21 = memref.load %arg2[%20, %c2] : memref<2x4xf32, #tpu.memory_space<smem>>
    %22 = vector.broadcast %21 : f32 to vector<1x32xf32>
    %c66 = arith.constant 66 : index
    %c0_9 = arith.constant 0 : index
    %23 = vector.load %arg21[%c66, %c0_9] : memref<72x32xf32, #tpu.memory_space<vmem>>, vector<1x32xf32>
    tpu.vector_store %arg21[%c66, %c0_9], %22 {strides = array<i32>} : memref<72x32xf32, #tpu.memory_space<vmem>>, vector<1x32xf32>,
    %24 = arith.index_cast %arg0 : i32 to index
    %c3 = arith.constant 3 : index
    %25 = memref.load %arg2[%24, %c3] : memref<2x4xf32, #tpu.memory_space<smem>>
    %26 = vector.broadcast %25 : f32 to vector<1x32xf32>
    %c67 = arith.constant 67 : index
    %c0_10 = arith.constant 0 : index
    %27 = vector.load %arg21[%c67, %c0_10] : memref<72x32xf32, #tpu.memory_space<vmem>>, vector<1x32xf32>
    tpu.vector_store %arg21[%c67, %c0_10], %26 {strides = array<i32>} : memref<72x32xf32, #tpu.memory_space<vmem>>, vector<1x32xf32>,
    %c128 = arith.constant 128 : index
    %c0_11 = arith.constant 0 : index
    %28 = vector.load %arg5[%c128, %c0_11] : memref<129x32xf32, #tpu.memory_space<vmem>>, vector<1x32xf32>
    %c68 = arith.constant 68 : index
    %c0_12 = arith.constant 0 : index
    %29 = vector.load %arg21[%c68, %c0_12] : memref<72x32xf32, #tpu.memory_space<vmem>>, vector<1x32xf32>
    tpu.vector_store %arg21[%c68, %c0_12], %28 {strides = array<i32>} : memref<72x32xf32, #tpu.memory_space<vmem>>, vector<1x32xf32>,
    %c69 = arith.constant 69 : index
    %c0_13 = arith.constant 0 : index
    %30 = vector.load %arg21[%c69, %c0_13] : memref<72x32xf32, #tpu.memory_space<vmem>>, vector<1x32xf32>
    tpu.vector_store %arg21[%c69, %c0_13], %28 {strides = array<i32>} : memref<72x32xf32, #tpu.memory_space<vmem>>, vector<1x32xf32>,
    %c70 = arith.constant 70 : index
    %c0_14 = arith.constant 0 : index
    %31 = vector.load %arg21[%c70, %c0_14] : memref<72x32xf32, #tpu.memory_space<vmem>>, vector<1x32xf32>
    tpu.vector_store %arg21[%c70, %c0_14], %28 {strides = array<i32>} : memref<72x32xf32, #tpu.memory_space<vmem>>, vector<1x32xf32>,
    %c71 = arith.constant 71 : index
    %c0_15 = arith.constant 0 : index
    %32 = vector.load %arg21[%c71, %c0_15] : memref<72x32xf32, #tpu.memory_space<vmem>>, vector<1x32xf32>
    tpu.vector_store %arg21[%c71, %c0_15], %28 {strides = array<i32>} : memref<72x32xf32, #tpu.memory_space<vmem>>, vector<1x32xf32>,
    %c0_16 = arith.constant 0 : index
    %c0_17 = arith.constant 0 : index
    %33 = vector.load %arg21[%c0_16, %c0_17] : memref<72x32xf32, #tpu.memory_space<vmem>>, vector<72x32xf32>
    %34 = tpu.iota {dimensions = array<i32: 1>} : vector<1x32xi32>
    %c0_18 = arith.constant 0 : index
    %c0_19 = arith.constant 0 : index
    %c0_20 = arith.constant 0 : index
    %35 = vector.load %arg6[%c0_18, %c0_19, %c0_20] : memref<2x1x32xf32, #tpu.memory_space<vmem>>, vector<1x1x32xf32>
    %36 = vector.shape_cast %35 : vector<1x1x32xf32> to vector<1x32xf32>
    %c0_21 = arith.constant 0 : index
    %c0_22 = arith.constant 0 : index
    %c0_23 = arith.constant 0 : index
    %37 = vector.load %arg7[%c0_21, %c0_22, %c0_23] : memref<2x1x32xf32, #tpu.memory_space<vmem>>, vector<1x1x32xf32>
    %38 = vector.shape_cast %37 : vector<1x1x32xf32> to vector<1x32xf32>
    %cst_24 = arith.constant dense<0.000000e+00> : vector<72xf32>
    %39 = vector.multi_reduction <add>, %33, %cst_24 [1] : vector<72x32xf32> to vector<72xf32>
    %40 = vector.shape_cast %39 : vector<72xf32> to vector<72x1xf32>
    %cst_25 = arith.constant 3.200000e+01 : f32
    %41 = vector.broadcast %cst_25 : f32 to vector<72x1xf32>
    %42 = arith.divf %40, %41 : vector<72x1xf32>
    %43 = vector.broadcast %42 : vector<72x1xf32> to vector<72x32xf32>
    %44 = arith.subf %33, %43 : vector<72x32xf32>
    %45 = arith.mulf %44, %44 : vector<72x32xf32>
    %cst_26 = arith.constant dense<0.000000e+00> : vector<72xf32>
    %46 = vector.multi_reduction <add>, %45, %cst_26 [1] : vector<72x32xf32> to vector<72xf32>
    %47 = vector.shape_cast %46 : vector<72xf32> to vector<72x1xf32>
    %cst_27 = arith.constant 3.200000e+01 : f32
    %48 = vector.broadcast %cst_27 : f32 to vector<72x1xf32>
    %49 = arith.divf %47, %48 : vector<72x1xf32>
    %cst_28 = arith.constant 9.99999974E-6 : f32
    %50 = vector.broadcast %cst_28 : f32 to vector<72x1xf32>
    %51 = arith.addf %49, %50 : vector<72x1xf32>
    %52 = math.rsqrt %51 : vector<72x1xf32>
    %53 = vector.broadcast %52 : vector<72x1xf32> to vector<72x32xf32>
    %54 = arith.mulf %44, %53 : vector<72x32xf32>
    %55 = vector.broadcast %36 : vector<1x32xf32> to vector<72x32xf32>
    %56 = arith.mulf %54, %55 : vector<72x32xf32>
    %57 = vector.broadcast %38 : vector<1x32xf32> to vector<72x32xf32>
    %58 = arith.addf %56, %57 : vector<72x32xf32>
    %c0_29 = arith.constant 0 : index
    %c0_30 = arith.constant 0 : index
    %c0_31 = arith.constant 0 : index
    %c0_32 = arith.constant 0 : index
    %59 = vector.load %arg8[%c0_29, %c0_30, %c0_31, %c0_32] : memref<2x3x32x32xf32, #tpu.memory_space<vmem>>, vector<1x1x32x32xf32>
    %60 = vector.shape_cast %59 : vector<1x1x32x32xf32> to vector<32x32xf32>
    %cst_33 = arith.constant dense<0.000000e+00> : vector<72x32xf32>
    %61 = tpu.matmul %58, %60, %cst_33 {dimension_numbers = #tpu.dot_dimension_numbers<[1], [1], [0], [0], [0, 0, 1, 0], [], []>} : vector<72x32xf32>, vector<32x32xf32>, vector<72x32xf32> -> vector<72x32xf32>
    %c0_34 = arith.constant 0 : index
    %c0_35 = arith.constant 0 : index
    %c0_36 = arith.constant 0 : index
    %c0_37 = arith.constant 0 : index
    %62 = vector.load %arg9[%c0_34, %c0_35, %c0_36, %c0_37] : memref<2x3x1x32xf32, #tpu.memory_space<vmem>>, vector<1x1x1x32xf32>
    %63 = vector.shape_cast %62 : vector<1x1x1x32xf32> to vector<1x32xf32>
    %64 = vector.broadcast %63 : vector<1x32xf32> to vector<72x32xf32>
    %65 = arith.addf %61, %64 : vector<72x32xf32>
    %c0_38 = arith.constant 0 : index
    %c1_39 = arith.constant 1 : index
    %c0_40 = arith.constant 0 : index
    %c0_41 = arith.constant 0 : index
    %66 = vector.load %arg8[%c0_38, %c1_39, %c0_40, %c0_41] : memref<2x3x32x32xf32, #tpu.memory_space<vmem>>, vector<1x1x32x32xf32>
    %67 = vector.shape_cast %66 : vector<1x1x32x32xf32> to vector<32x32xf32>
    %cst_42 = arith.constant dense<0.000000e+00> : vector<72x32xf32>
    %68 = tpu.matmul %58, %67, %cst_42 {dimension_numbers = #tpu.dot_dimension_numbers<[1], [1], [0], [0], [0, 0, 1, 0], [], []>} : vector<72x32xf32>, vector<32x32xf32>, vector<72x32xf32> -> vector<72x32xf32>
    %c0_43 = arith.constant 0 : index
    %c1_44 = arith.constant 1 : index
    %c0_45 = arith.constant 0 : index
    %c0_46 = arith.constant 0 : index
    %69 = vector.load %arg9[%c0_43, %c1_44, %c0_45, %c0_46] : memref<2x3x1x32xf32, #tpu.memory_space<vmem>>, vector<1x1x1x32xf32>
    %70 = vector.shape_cast %69 : vector<1x1x1x32xf32> to vector<1x32xf32>
    %71 = vector.broadcast %70 : vector<1x32xf32> to vector<72x32xf32>
    %72 = arith.addf %68, %71 : vector<72x32xf32>
    %c0_47 = arith.constant 0 : index
    %c2_48 = arith.constant 2 : index
    %c0_49 = arith.constant 0 : index
    %c0_50 = arith.constant 0 : index
    %73 = vector.load %arg8[%c0_47, %c2_48, %c0_49, %c0_50] : memref<2x3x32x32xf32, #tpu.memory_space<vmem>>, vector<1x1x32x32xf32>
    %74 = vector.shape_cast %73 : vector<1x1x32x32xf32> to vector<32x32xf32>
    %cst_51 = arith.constant dense<0.000000e+00> : vector<72x32xf32>
    %75 = tpu.matmul %58, %74, %cst_51 {dimension_numbers = #tpu.dot_dimension_numbers<[1], [1], [0], [0], [0, 0, 1, 0], [], []>} : vector<72x32xf32>, vector<32x32xf32>, vector<72x32xf32> -> vector<72x32xf32>
    %c0_52 = arith.constant 0 : index
    %c2_53 = arith.constant 2 : index
    %c0_54 = arith.constant 0 : index
    %c0_55 = arith.constant 0 : index
    %76 = vector.load %arg9[%c0_52, %c2_53, %c0_54, %c0_55] : memref<2x3x1x32xf32, #tpu.memory_space<vmem>>, vector<1x1x1x32xf32>
    %77 = vector.shape_cast %76 : vector<1x1x1x32xf32> to vector<1x32xf32>
    %78 = vector.broadcast %77 : vector<1x32xf32> to vector<72x32xf32>
    %79 = arith.addf %75, %78 : vector<72x32xf32>
    %cst_56 = arith.constant 0.000000e+00 : f32
    %80 = vector.broadcast %cst_56 : f32 to vector<72x32xf32>
    %c0_i32 = arith.constant 0 : i32
    %81 = vector.broadcast %c0_i32 : i32 to vector<1x32xi32>
    %82 = arith.cmpi sge, %34, %81 : vector<1x32xi32>
    %c16_i32 = arith.constant 16 : i32
    %83 = vector.broadcast %c16_i32 : i32 to vector<1x32xi32>
    %84 = arith.cmpi slt, %34, %83 : vector<1x32xi32>
    %85 = arith.andi %82, %84 : vector<1x32xi1>
    %cst_57 = arith.constant 0.000000e+00 : f32
    %86 = vector.shape_cast %85 : vector<1x32xi1> to vector<1x32xi1>
    %87 = vector.broadcast %86 : vector<1x32xi1> to vector<72x32xi1>
    %88 = vector.broadcast %cst_57 : f32 to vector<72x32xf32>
    %89 = arith.select %87, %65, %88 : vector<72x32xi1>, vector<72x32xf32>
    %cst_58 = arith.constant 0.000000e+00 : f32
    %90 = vector.shape_cast %85 : vector<1x32xi1> to vector<1x32xi1>
    %91 = vector.broadcast %90 : vector<1x32xi1> to vector<72x32xi1>
    %92 = vector.broadcast %cst_58 : f32 to vector<72x32xf32>
    %93 = arith.select %91, %79, %92 : vector<72x32xi1>, vector<72x32xf32>
    %cst_59 = arith.constant dense<0.000000e+00> : vector<72x72xf32>
    %94 = tpu.matmul %89, %72, %cst_59 {dimension_numbers = #tpu.dot_dimension_numbers<[1], [1], [0], [0], [0, 0, 1, 0], [], []>} : vector<72x32xf32>, vector<72x32xf32>, vector<72x72xf32> -> vector<72x72xf32>
    %cst_60 = arith.constant 2.500000e-01 : f32
    %95 = vector.broadcast %cst_60 : f32 to vector<72x72xf32>
    %96 = arith.mulf %94, %95 : vector<72x72xf32>
    %cst_61 = arith.constant dense<0xFF800000> : vector<72xf32>
    %97 = vector.multi_reduction <maximumf>, %96, %cst_61 [1] : vector<72x72xf32> to vector<72xf32>
    %98 = vector.shape_cast %97 : vector<72xf32> to vector<72x1xf32>
    %99 = vector.broadcast %98 : vector<72x1xf32> to vector<72x72xf32>
    %100 = arith.subf %96, %99 : vector<72x72xf32>
    %101 = math.exp %100 : vector<72x72xf32>
    %cst_62 = arith.constant dense<0.000000e+00> : vector<72xf32>
    %102 = vector.multi_reduction <add>, %101, %cst_62 [1] : vector<72x72xf32> to vector<72xf32>
    %103 = vector.shape_cast %102 : vector<72xf32> to vector<72x1xf32>
    %104 = vector.broadcast %103 : vector<72x1xf32> to vector<72x72xf32>
    %105 = arith.divf %101, %104 : vector<72x72xf32>
    %cst_63 = arith.constant dense<0.000000e+00> : vector<72x32xf32>
    %106 = tpu.matmul %105, %93, %cst_63 {dimension_numbers = #tpu.dot_dimension_numbers<[1], [0], [0], [1], [0, 0, 1, 1], [], []>} : vector<72x72xf32>, vector<72x32xf32>, vector<72x32xf32> -> vector<72x32xf32>
    %107 = arith.addf %80, %106 : vector<72x32xf32>
    %c16_i32_64 = arith.constant 16 : i32
    %108 = vector.broadcast %c16_i32_64 : i32 to vector<1x32xi32>
    %109 = arith.cmpi sge, %34, %108 : vector<1x32xi32>
    %c32_i32 = arith.constant 32 : i32
    %110 = vector.broadcast %c32_i32 : i32 to vector<1x32xi32>
    %111 = arith.cmpi slt, %34, %110 : vector<1x32xi32>
    %112 = arith.andi %109, %111 : vector<1x32xi1>
    %cst_65 = arith.constant 0.000000e+00 : f32
    %113 = vector.shape_cast %112 : vector<1x32xi1> to vector<1x32xi1>
    %114 = vector.broadcast %113 : vector<1x32xi1> to vector<72x32xi1>
    %115 = vector.broadcast %cst_65 : f32 to vector<72x32xf32>
    %116 = arith.select %114, %65, %115 : vector<72x32xi1>, vector<72x32xf32>
    %cst_66 = arith.constant 0.000000e+00 : f32
    %117 = vector.shape_cast %112 : vector<1x32xi1> to vector<1x32xi1>
    %118 = vector.broadcast %117 : vector<1x32xi1> to vector<72x32xi1>
    %119 = vector.broadcast %cst_66 : f32 to vector<72x32xf32>
    %120 = arith.select %118, %79, %119 : vector<72x32xi1>, vector<72x32xf32>
    %cst_67 = arith.constant dense<0.000000e+00> : vector<72x72xf32>
    %121 = tpu.matmul %116, %72, %cst_67 {dimension_numbers = #tpu.dot_dimension_numbers<[1], [1], [0], [0], [0, 0, 1, 0], [], []>} : vector<72x32xf32>, vector<72x32xf32>, vector<72x72xf32> -> vector<72x72xf32>
    %cst_68 = arith.constant 2.500000e-01 : f32
    %122 = vector.broadcast %cst_68 : f32 to vector<72x72xf32>
    %123 = arith.mulf %121, %122 : vector<72x72xf32>
    %cst_69 = arith.constant dense<0xFF800000> : vector<72xf32>
    %124 = vector.multi_reduction <maximumf>, %123, %cst_69 [1] : vector<72x72xf32> to vector<72xf32>
    %125 = vector.shape_cast %124 : vector<72xf32> to vector<72x1xf32>
    %126 = vector.broadcast %125 : vector<72x1xf32> to vector<72x72xf32>
    %127 = arith.subf %123, %126 : vector<72x72xf32>
    %128 = math.exp %127 : vector<72x72xf32>
    %cst_70 = arith.constant dense<0.000000e+00> : vector<72xf32>
    %129 = vector.multi_reduction <add>, %128, %cst_70 [1] : vector<72x72xf32> to vector<72xf32>
    %130 = vector.shape_cast %129 : vector<72xf32> to vector<72x1xf32>
    %131 = vector.broadcast %130 : vector<72x1xf32> to vector<72x72xf32>
    %132 = arith.divf %128, %131 : vector<72x72xf32>
    %cst_71 = arith.constant dense<0.000000e+00> : vector<72x32xf32>
    %133 = tpu.matmul %132, %120, %cst_71 {dimension_numbers = #tpu.dot_dimension_numbers<[1], [0], [0], [1], [0, 0, 1, 1], [], []>} : vector<72x72xf32>, vector<72x32xf32>, vector<72x32xf32> -> vector<72x32xf32>
    %134 = arith.addf %107, %133 : vector<72x32xf32>
    %c0_72 = arith.constant 0 : index
    %c0_73 = arith.constant 0 : index
    %c0_74 = arith.constant 0 : index
    %135 = vector.load %arg10[%c0_72, %c0_73, %c0_74] : memref<2x32x32xf32, #tpu.memory_space<vmem>>, vector<1x32x32xf32>
    %136 = vector.shape_cast %135 : vector<1x32x32xf32> to vector<32x32xf32>
    %cst_75 = arith.constant dense<0.000000e+00> : vector<72x32xf32>
    %137 = tpu.matmul %134, %136, %cst_75 {dimension_numbers = #tpu.dot_dimension_numbers<[1], [1], [0], [0], [0, 0, 1, 0], [], []>} : vector<72x32xf32>, vector<32x32xf32>, vector<72x32xf32> -> vector<72x32xf32>
    %c0_76 = arith.constant 0 : index
    %c0_77 = arith.constant 0 : index
    %c0_78 = arith.constant 0 : index
    %138 = vector.load %arg11[%c0_76, %c0_77, %c0_78] : memref<2x1x32xf32, #tpu.memory_space<vmem>>, vector<1x1x32xf32>
    %139 = vector.shape_cast %138 : vector<1x1x32xf32> to vector<1x32xf32>
    %140 = vector.broadcast %139 : vector<1x32xf32> to vector<72x32xf32>
    %141 = arith.addf %137, %140 : vector<72x32xf32>
    %142 = arith.addf %33, %141 : vector<72x32xf32>
    %c0_79 = arith.constant 0 : index
    %c0_80 = arith.constant 0 : index
    %c0_81 = arith.constant 0 : index
    %143 = vector.load %arg12[%c0_79, %c0_80, %c0_81] : memref<2x1x32xf32, #tpu.memory_space<vmem>>, vector<1x1x32xf32>
    %144 = vector.shape_cast %143 : vector<1x1x32xf32> to vector<1x32xf32>
    %c0_82 = arith.constant 0 : index
    %c0_83 = arith.constant 0 : index
    %c0_84 = arith.constant 0 : index
    %145 = vector.load %arg13[%c0_82, %c0_83, %c0_84] : memref<2x1x32xf32, #tpu.memory_space<vmem>>, vector<1x1x32xf32>
    %146 = vector.shape_cast %145 : vector<1x1x32xf32> to vector<1x32xf32>
    %cst_85 = arith.constant dense<0.000000e+00> : vector<72xf32>
    %147 = vector.multi_reduction <add>, %142, %cst_85 [1] : vector<72x32xf32> to vector<72xf32>
    %148 = vector.shape_cast %147 : vector<72xf32> to vector<72x1xf32>
    %cst_86 = arith.constant 3.200000e+01 : f32
    %149 = vector.broadcast %cst_86 : f32 to vector<72x1xf32>
    %150 = arith.divf %148, %149 : vector<72x1xf32>
    %151 = vector.broadcast %150 : vector<72x1xf32> to vector<72x32xf32>
    %152 = arith.subf %142, %151 : vector<72x32xf32>
    %153 = arith.mulf %152, %152 : vector<72x32xf32>
    %cst_87 = arith.constant dense<0.000000e+00> : vector<72xf32>
    %154 = vector.multi_reduction <add>, %153, %cst_87 [1] : vector<72x32xf32> to vector<72xf32>
    %155 = vector.shape_cast %154 : vector<72xf32> to vector<72x1xf32>
    %cst_88 = arith.constant 3.200000e+01 : f32
    %156 = vector.broadcast %cst_88 : f32 to vector<72x1xf32>
    %157 = arith.divf %155, %156 : vector<72x1xf32>
    %cst_89 = arith.constant 9.99999974E-6 : f32
    %158 = vector.broadcast %cst_89 : f32 to vector<72x1xf32>
    %159 = arith.addf %157, %158 : vector<72x1xf32>
    %160 = math.rsqrt %159 : vector<72x1xf32>
    %161 = vector.broadcast %160 : vector<72x1xf32> to vector<72x32xf32>
    %162 = arith.mulf %152, %161 : vector<72x32xf32>
    %163 = vector.broadcast %144 : vector<1x32xf32> to vector<72x32xf32>
    %164 = arith.mulf %162, %163 : vector<72x32xf32>
    %165 = vector.broadcast %146 : vector<1x32xf32> to vector<72x32xf32>
    %166 = arith.addf %164, %165 : vector<72x32xf32>
    %c0_90 = arith.constant 0 : index
    %c0_91 = arith.constant 0 : index
    %c0_92 = arith.constant 0 : index
    %167 = vector.load %arg14[%c0_90, %c0_91, %c0_92] : memref<2x128x32xf32, #tpu.memory_space<vmem>>, vector<1x128x32xf32>
    %168 = vector.shape_cast %167 : vector<1x128x32xf32> to vector<128x32xf32>
    %cst_93 = arith.constant dense<0.000000e+00> : vector<72x128xf32>
    %169 = tpu.matmul %166, %168, %cst_93 {dimension_numbers = #tpu.dot_dimension_numbers<[1], [1], [0], [0], [0, 0, 1, 0], [], []>} : vector<72x32xf32>, vector<128x32xf32>, vector<72x128xf32> -> vector<72x128xf32>
    %c0_94 = arith.constant 0 : index
    %c0_95 = arith.constant 0 : index
    %c0_96 = arith.constant 0 : index
    %170 = vector.load %arg15[%c0_94, %c0_95, %c0_96] : memref<2x1x128xf32, #tpu.memory_space<vmem>>, vector<1x1x128xf32>
    %171 = vector.shape_cast %170 : vector<1x1x128xf32> to vector<1x128xf32>
    %172 = vector.broadcast %171 : vector<1x128xf32> to vector<72x128xf32>
    %173 = arith.addf %169, %172 : vector<72x128xf32>
    %174 = arith.mulf %173, %173 : vector<72x128xf32>
    %175 = arith.mulf %173, %174 : vector<72x128xf32>
    %cst_97 = arith.constant 4.471500e-02 : f32
    %176 = vector.broadcast %cst_97 : f32 to vector<72x128xf32>
    %177 = arith.mulf %176, %175 : vector<72x128xf32>
    %178 = arith.addf %173, %177 : vector<72x128xf32>
    %cst_98 = arith.constant 0.797884583 : f32
    %179 = vector.broadcast %cst_98 : f32 to vector<72x128xf32>
    %180 = arith.mulf %179, %178 : vector<72x128xf32>
    %181 = math.tanh %180 : vector<72x128xf32>
    %cst_99 = arith.constant 1.000000e+00 : f32
    %182 = vector.broadcast %cst_99 : f32 to vector<72x128xf32>
    %183 = arith.addf %182, %181 : vector<72x128xf32>
    %cst_100 = arith.constant 5.000000e-01 : f32
    %184 = vector.broadcast %cst_100 : f32 to vector<72x128xf32>
    %185 = arith.mulf %184, %183 : vector<72x128xf32>
    %186 = arith.mulf %173, %185 : vector<72x128xf32>
    %c0_101 = arith.constant 0 : index
    %c0_102 = arith.constant 0 : index
    %c0_103 = arith.constant 0 : index
    %187 = vector.load %arg16[%c0_101, %c0_102, %c0_103] : memref<2x32x128xf32, #tpu.memory_space<vmem>>, vector<1x32x128xf32>
    %188 = vector.shape_cast %187 : vector<1x32x128xf32> to vector<32x128xf32>
    %cst_104 = arith.constant dense<0.000000e+00> : vector<72x32xf32>
    %189 = tpu.matmul %186, %188, %cst_104 {dimension_numbers = #tpu.dot_dimension_numbers<[1], [1], [0], [0], [0, 0, 1, 0], [], []>} : vector<72x128xf32>, vector<32x128xf32>, vector<72x32xf32> -> vector<72x32xf32>
    %c0_105 = arith.constant 0 : index
    %c0_106 = arith.constant 0 : index
    %c0_107 = arith.constant 0 : index
    %190 = vector.load %arg17[%c0_105, %c0_106, %c0_107] : memref<2x1x32xf32, #tpu.memory_space<vmem>>, vector<1x1x32xf32>
    %191 = vector.shape_cast %190 : vector<1x1x32xf32> to vector<1x32xf32>
    %192 = vector.broadcast %191 : vector<1x32xf32> to vector<72x32xf32>
    %193 = arith.addf %189, %192 : vector<72x32xf32>
    %194 = arith.addf %142, %193 : vector<72x32xf32>
    %c1_108 = arith.constant 1 : index
    %c0_109 = arith.constant 0 : index
    %c0_110 = arith.constant 0 : index
    %195 = vector.load %arg6[%c1_108, %c0_109, %c0_110] : memref<2x1x32xf32, #tpu.memory_space<vmem>>, vector<1x1x32xf32>
    %196 = vector.shape_cast %195 : vector<1x1x32xf32> to vector<1x32xf32>
    %c1_111 = arith.constant 1 : index
    %c0_112 = arith.constant 0 : index
    %c0_113 = arith.constant 0 : index
    %197 = vector.load %arg7[%c1_111, %c0_112, %c0_113] : memref<2x1x32xf32, #tpu.memory_space<vmem>>, vector<1x1x32xf32>
    %198 = vector.shape_cast %197 : vector<1x1x32xf32> to vector<1x32xf32>
    %cst_114 = arith.constant dense<0.000000e+00> : vector<72xf32>
    %199 = vector.multi_reduction <add>, %194, %cst_114 [1] : vector<72x32xf32> to vector<72xf32>
    %200 = vector.shape_cast %199 : vector<72xf32> to vector<72x1xf32>
    %cst_115 = arith.constant 3.200000e+01 : f32
    %201 = vector.broadcast %cst_115 : f32 to vector<72x1xf32>
    %202 = arith.divf %200, %201 : vector<72x1xf32>
    %203 = vector.broadcast %202 : vector<72x1xf32> to vector<72x32xf32>
    %204 = arith.subf %194, %203 : vector<72x32xf32>
    %205 = arith.mulf %204, %204 : vector<72x32xf32>
    %cst_116 = arith.constant dense<0.000000e+00> : vector<72xf32>
    %206 = vector.multi_reduction <add>, %205, %cst_116 [1] : vector<72x32xf32> to vector<72xf32>
    %207 = vector.shape_cast %206 : vector<72xf32> to vector<72x1xf32>
    %cst_117 = arith.constant 3.200000e+01 : f32
    %208 = vector.broadcast %cst_117 : f32 to vector<72x1xf32>
    %209 = arith.divf %207, %208 : vector<72x1xf32>
    %cst_118 = arith.constant 9.99999974E-6 : f32
    %210 = vector.broadcast %cst_118 : f32 to vector<72x1xf32>
    %211 = arith.addf %209, %210 : vector<72x1xf32>
    %212 = math.rsqrt %211 : vector<72x1xf32>
    %213 = vector.broadcast %212 : vector<72x1xf32> to vector<72x32xf32>
    %214 = arith.mulf %204, %213 : vector<72x32xf32>
    %215 = vector.broadcast %196 : vector<1x32xf32> to vector<72x32xf32>
    %216 = arith.mulf %214, %215 : vector<72x32xf32>
    %217 = vector.broadcast %198 : vector<1x32xf32> to vector<72x32xf32>
    %218 = arith.addf %216, %217 : vector<72x32xf32>
    %c1_119 = arith.constant 1 : index
    %c0_120 = arith.constant 0 : index
    %c0_121 = arith.constant 0 : index
    %c0_122 = arith.constant 0 : index
    %219 = vector.load %arg8[%c1_119, %c0_120, %c0_121, %c0_122] : memref<2x3x32x32xf32, #tpu.memory_space<vmem>>, vector<1x1x32x32xf32>
    %220 = vector.shape_cast %219 : vector<1x1x32x32xf32> to vector<32x32xf32>
    %cst_123 = arith.constant dense<0.000000e+00> : vector<72x32xf32>
    %221 = tpu.matmul %218, %220, %cst_123 {dimension_numbers = #tpu.dot_dimension_numbers<[1], [1], [0], [0], [0, 0, 1, 0], [], []>} : vector<72x32xf32>, vector<32x32xf32>, vector<72x32xf32> -> vector<72x32xf32>
    %c1_124 = arith.constant 1 : index
    %c0_125 = arith.constant 0 : index
    %c0_126 = arith.constant 0 : index
    %c0_127 = arith.constant 0 : index
    %222 = vector.load %arg9[%c1_124, %c0_125, %c0_126, %c0_127] : memref<2x3x1x32xf32, #tpu.memory_space<vmem>>, vector<1x1x1x32xf32>
    %223 = vector.shape_cast %222 : vector<1x1x1x32xf32> to vector<1x32xf32>
    %224 = vector.broadcast %223 : vector<1x32xf32> to vector<72x32xf32>
    %225 = arith.addf %221, %224 : vector<72x32xf32>
    %c1_128 = arith.constant 1 : index
    %c1_129 = arith.constant 1 : index
    %c0_130 = arith.constant 0 : index
    %c0_131 = arith.constant 0 : index
    %226 = vector.load %arg8[%c1_128, %c1_129, %c0_130, %c0_131] : memref<2x3x32x32xf32, #tpu.memory_space<vmem>>, vector<1x1x32x32xf32>
    %227 = vector.shape_cast %226 : vector<1x1x32x32xf32> to vector<32x32xf32>
    %cst_132 = arith.constant dense<0.000000e+00> : vector<72x32xf32>
    %228 = tpu.matmul %218, %227, %cst_132 {dimension_numbers = #tpu.dot_dimension_numbers<[1], [1], [0], [0], [0, 0, 1, 0], [], []>} : vector<72x32xf32>, vector<32x32xf32>, vector<72x32xf32> -> vector<72x32xf32>
    %c1_133 = arith.constant 1 : index
    %c1_134 = arith.constant 1 : index
    %c0_135 = arith.constant 0 : index
    %c0_136 = arith.constant 0 : index
    %229 = vector.load %arg9[%c1_133, %c1_134, %c0_135, %c0_136] : memref<2x3x1x32xf32, #tpu.memory_space<vmem>>, vector<1x1x1x32xf32>
    %230 = vector.shape_cast %229 : vector<1x1x1x32xf32> to vector<1x32xf32>
    %231 = vector.broadcast %230 : vector<1x32xf32> to vector<72x32xf32>
    %232 = arith.addf %228, %231 : vector<72x32xf32>
    %c1_137 = arith.constant 1 : index
    %c2_138 = arith.constant 2 : index
    %c0_139 = arith.constant 0 : index
    %c0_140 = arith.constant 0 : index
    %233 = vector.load %arg8[%c1_137, %c2_138, %c0_139, %c0_140] : memref<2x3x32x32xf32, #tpu.memory_space<vmem>>, vector<1x1x32x32xf32>
    %234 = vector.shape_cast %233 : vector<1x1x32x32xf32> to vector<32x32xf32>
    %cst_141 = arith.constant dense<0.000000e+00> : vector<72x32xf32>
    %235 = tpu.matmul %218, %234, %cst_141 {dimension_numbers = #tpu.dot_dimension_numbers<[1], [1], [0], [0], [0, 0, 1, 0], [], []>} : vector<72x32xf32>, vector<32x32xf32>, vector<72x32xf32> -> vector<72x32xf32>
    %c1_142 = arith.constant 1 : index
    %c2_143 = arith.constant 2 : index
    %c0_144 = arith.constant 0 : index
    %c0_145 = arith.constant 0 : index
    %236 = vector.load %arg9[%c1_142, %c2_143, %c0_144, %c0_145] : memref<2x3x1x32xf32, #tpu.memory_space<vmem>>, vector<1x1x1x32xf32>
    %237 = vector.shape_cast %236 : vector<1x1x1x32xf32> to vector<1x32xf32>
    %238 = vector.broadcast %237 : vector<1x32xf32> to vector<72x32xf32>
    %239 = arith.addf %235, %238 : vector<72x32xf32>
    %cst_146 = arith.constant 0.000000e+00 : f32
    %240 = vector.broadcast %cst_146 : f32 to vector<72x32xf32>
    %c0_i32_147 = arith.constant 0 : i32
    %241 = vector.broadcast %c0_i32_147 : i32 to vector<1x32xi32>
    %242 = arith.cmpi sge, %34, %241 : vector<1x32xi32>
    %c16_i32_148 = arith.constant 16 : i32
    %243 = vector.broadcast %c16_i32_148 : i32 to vector<1x32xi32>
    %244 = arith.cmpi slt, %34, %243 : vector<1x32xi32>
    %245 = arith.andi %242, %244 : vector<1x32xi1>
    %cst_149 = arith.constant 0.000000e+00 : f32
    %246 = vector.shape_cast %245 : vector<1x32xi1> to vector<1x32xi1>
    %247 = vector.broadcast %246 : vector<1x32xi1> to vector<72x32xi1>
    %248 = vector.broadcast %cst_149 : f32 to vector<72x32xf32>
    %249 = arith.select %247, %225, %248 : vector<72x32xi1>, vector<72x32xf32>
    %cst_150 = arith.constant 0.000000e+00 : f32
    %250 = vector.shape_cast %245 : vector<1x32xi1> to vector<1x32xi1>
    %251 = vector.broadcast %250 : vector<1x32xi1> to vector<72x32xi1>
    %252 = vector.broadcast %cst_150 : f32 to vector<72x32xf32>
    %253 = arith.select %251, %239, %252 : vector<72x32xi1>, vector<72x32xf32>
    %cst_151 = arith.constant dense<0.000000e+00> : vector<72x72xf32>
    %254 = tpu.matmul %249, %232, %cst_151 {dimension_numbers = #tpu.dot_dimension_numbers<[1], [1], [0], [0], [0, 0, 1, 0], [], []>} : vector<72x32xf32>, vector<72x32xf32>, vector<72x72xf32> -> vector<72x72xf32>
    %cst_152 = arith.constant 2.500000e-01 : f32
    %255 = vector.broadcast %cst_152 : f32 to vector<72x72xf32>
    %256 = arith.mulf %254, %255 : vector<72x72xf32>
    %cst_153 = arith.constant dense<0xFF800000> : vector<72xf32>
    %257 = vector.multi_reduction <maximumf>, %256, %cst_153 [1] : vector<72x72xf32> to vector<72xf32>
    %258 = vector.shape_cast %257 : vector<72xf32> to vector<72x1xf32>
    %259 = vector.broadcast %258 : vector<72x1xf32> to vector<72x72xf32>
    %260 = arith.subf %256, %259 : vector<72x72xf32>
    %261 = math.exp %260 : vector<72x72xf32>
    %cst_154 = arith.constant dense<0.000000e+00> : vector<72xf32>
    %262 = vector.multi_reduction <add>, %261, %cst_154 [1] : vector<72x72xf32> to vector<72xf32>
    %263 = vector.shape_cast %262 : vector<72xf32> to vector<72x1xf32>
    %264 = vector.broadcast %263 : vector<72x1xf32> to vector<72x72xf32>
    %265 = arith.divf %261, %264 : vector<72x72xf32>
    %cst_155 = arith.constant dense<0.000000e+00> : vector<72x32xf32>
    %266 = tpu.matmul %265, %253, %cst_155 {dimension_numbers = #tpu.dot_dimension_numbers<[1], [0], [0], [1], [0, 0, 1, 1], [], []>} : vector<72x72xf32>, vector<72x32xf32>, vector<72x32xf32> -> vector<72x32xf32>
    %267 = arith.addf %240, %266 : vector<72x32xf32>
    %c16_i32_156 = arith.constant 16 : i32
    %268 = vector.broadcast %c16_i32_156 : i32 to vector<1x32xi32>
    %269 = arith.cmpi sge, %34, %268 : vector<1x32xi32>
    %c32_i32_157 = arith.constant 32 : i32
    %270 = vector.broadcast %c32_i32_157 : i32 to vector<1x32xi32>
    %271 = arith.cmpi slt, %34, %270 : vector<1x32xi32>
    %272 = arith.andi %269, %271 : vector<1x32xi1>
    %cst_158 = arith.constant 0.000000e+00 : f32
    %273 = vector.shape_cast %272 : vector<1x32xi1> to vector<1x32xi1>
    %274 = vector.broadcast %273 : vector<1x32xi1> to vector<72x32xi1>
    %275 = vector.broadcast %cst_158 : f32 to vector<72x32xf32>
    %276 = arith.select %274, %225, %275 : vector<72x32xi1>, vector<72x32xf32>
    %cst_159 = arith.constant 0.000000e+00 : f32
    %277 = vector.shape_cast %272 : vector<1x32xi1> to vector<1x32xi1>
    %278 = vector.broadcast %277 : vector<1x32xi1> to vector<72x32xi1>
    %279 = vector.broadcast %cst_159 : f32 to vector<72x32xf32>
    %280 = arith.select %278, %239, %279 : vector<72x32xi1>, vector<72x32xf32>
    %cst_160 = arith.constant dense<0.000000e+00> : vector<72x72xf32>
    %281 = tpu.matmul %276, %232, %cst_160 {dimension_numbers = #tpu.dot_dimension_numbers<[1], [1], [0], [0], [0, 0, 1, 0], [], []>} : vector<72x32xf32>, vector<72x32xf32>, vector<72x72xf32> -> vector<72x72xf32>
    %cst_161 = arith.constant 2.500000e-01 : f32
    %282 = vector.broadcast %cst_161 : f32 to vector<72x72xf32>
    %283 = arith.mulf %281, %282 : vector<72x72xf32>
    %cst_162 = arith.constant dense<0xFF800000> : vector<72xf32>
    %284 = vector.multi_reduction <maximumf>, %283, %cst_162 [1] : vector<72x72xf32> to vector<72xf32>
    %285 = vector.shape_cast %284 : vector<72xf32> to vector<72x1xf32>
    %286 = vector.broadcast %285 : vector<72x1xf32> to vector<72x72xf32>
    %287 = arith.subf %283, %286 : vector<72x72xf32>
    %288 = math.exp %287 : vector<72x72xf32>
    %cst_163 = arith.constant dense<0.000000e+00> : vector<72xf32>
    %289 = vector.multi_reduction <add>, %288, %cst_163 [1] : vector<72x72xf32> to vector<72xf32>
    %290 = vector.shape_cast %289 : vector<72xf32> to vector<72x1xf32>
    %291 = vector.broadcast %290 : vector<72x1xf32> to vector<72x72xf32>
    %292 = arith.divf %288, %291 : vector<72x72xf32>
    %cst_164 = arith.constant dense<0.000000e+00> : vector<72x32xf32>
    %293 = tpu.matmul %292, %280, %cst_164 {dimension_numbers = #tpu.dot_dimension_numbers<[1], [0], [0], [1], [0, 0, 1, 1], [], []>} : vector<72x72xf32>, vector<72x32xf32>, vector<72x32xf32> -> vector<72x32xf32>
    %294 = arith.addf %267, %293 : vector<72x32xf32>
    %c1_165 = arith.constant 1 : index
    %c0_166 = arith.constant 0 : index
    %c0_167 = arith.constant 0 : index
    %295 = vector.load %arg10[%c1_165, %c0_166, %c0_167] : memref<2x32x32xf32, #tpu.memory_space<vmem>>, vector<1x32x32xf32>
    %296 = vector.shape_cast %295 : vector<1x32x32xf32> to vector<32x32xf32>
    %cst_168 = arith.constant dense<0.000000e+00> : vector<72x32xf32>
    %297 = tpu.matmul %294, %296, %cst_168 {dimension_numbers = #tpu.dot_dimension_numbers<[1], [1], [0], [0], [0, 0, 1, 0], [], []>} : vector<72x32xf32>, vector<32x32xf32>, vector<72x32xf32> -> vector<72x32xf32>
    %c1_169 = arith.constant 1 : index
    %c0_170 = arith.constant 0 : index
    %c0_171 = arith.constant 0 : index
    %298 = vector.load %arg11[%c1_169, %c0_170, %c0_171] : memref<2x1x32xf32, #tpu.memory_space<vmem>>, vector<1x1x32xf32>
    %299 = vector.shape_cast %298 : vector<1x1x32xf32> to vector<1x32xf32>
    %300 = vector.broadcast %299 : vector<1x32xf32> to vector<72x32xf32>
    %301 = arith.addf %297, %300 : vector<72x32xf32>
    %302 = arith.addf %194, %301 : vector<72x32xf32>
    %c1_172 = arith.constant 1 : index
    %c0_173 = arith.constant 0 : index
    %c0_174 = arith.constant 0 : index
    %303 = vector.load %arg12[%c1_172, %c0_173, %c0_174] : memref<2x1x32xf32, #tpu.memory_space<vmem>>, vector<1x1x32xf32>
    %304 = vector.shape_cast %303 : vector<1x1x32xf32> to vector<1x32xf32>
    %c1_175 = arith.constant 1 : index
    %c0_176 = arith.constant 0 : index
    %c0_177 = arith.constant 0 : index
    %305 = vector.load %arg13[%c1_175, %c0_176, %c0_177] : memref<2x1x32xf32, #tpu.memory_space<vmem>>, vector<1x1x32xf32>
    %306 = vector.shape_cast %305 : vector<1x1x32xf32> to vector<1x32xf32>
    %cst_178 = arith.constant dense<0.000000e+00> : vector<72xf32>
    %307 = vector.multi_reduction <add>, %302, %cst_178 [1] : vector<72x32xf32> to vector<72xf32>
    %308 = vector.shape_cast %307 : vector<72xf32> to vector<72x1xf32>
    %cst_179 = arith.constant 3.200000e+01 : f32
    %309 = vector.broadcast %cst_179 : f32 to vector<72x1xf32>
    %310 = arith.divf %308, %309 : vector<72x1xf32>
    %311 = vector.broadcast %310 : vector<72x1xf32> to vector<72x32xf32>
    %312 = arith.subf %302, %311 : vector<72x32xf32>
    %313 = arith.mulf %312, %312 : vector<72x32xf32>
    %cst_180 = arith.constant dense<0.000000e+00> : vector<72xf32>
    %314 = vector.multi_reduction <add>, %313, %cst_180 [1] : vector<72x32xf32> to vector<72xf32>
    %315 = vector.shape_cast %314 : vector<72xf32> to vector<72x1xf32>
    %cst_181 = arith.constant 3.200000e+01 : f32
    %316 = vector.broadcast %cst_181 : f32 to vector<72x1xf32>
    %317 = arith.divf %315, %316 : vector<72x1xf32>
    %cst_182 = arith.constant 9.99999974E-6 : f32
    %318 = vector.broadcast %cst_182 : f32 to vector<72x1xf32>
    %319 = arith.addf %317, %318 : vector<72x1xf32>
    %320 = math.rsqrt %319 : vector<72x1xf32>
    %321 = vector.broadcast %320 : vector<72x1xf32> to vector<72x32xf32>
    %322 = arith.mulf %312, %321 : vector<72x32xf32>
    %323 = vector.broadcast %304 : vector<1x32xf32> to vector<72x32xf32>
    %324 = arith.mulf %322, %323 : vector<72x32xf32>
    %325 = vector.broadcast %306 : vector<1x32xf32> to vector<72x32xf32>
    %326 = arith.addf %324, %325 : vector<72x32xf32>
    %c1_183 = arith.constant 1 : index
    %c0_184 = arith.constant 0 : index
    %c0_185 = arith.constant 0 : index
    %327 = vector.load %arg14[%c1_183, %c0_184, %c0_185] : memref<2x128x32xf32, #tpu.memory_space<vmem>>, vector<1x128x32xf32>
    %328 = vector.shape_cast %327 : vector<1x128x32xf32> to vector<128x32xf32>
    %cst_186 = arith.constant dense<0.000000e+00> : vector<72x128xf32>
    %329 = tpu.matmul %326, %328, %cst_186 {dimension_numbers = #tpu.dot_dimension_numbers<[1], [1], [0], [0], [0, 0, 1, 0], [], []>} : vector<72x32xf32>, vector<128x32xf32>, vector<72x128xf32> -> vector<72x128xf32>
    %c1_187 = arith.constant 1 : index
    %c0_188 = arith.constant 0 : index
    %c0_189 = arith.constant 0 : index
    %330 = vector.load %arg15[%c1_187, %c0_188, %c0_189] : memref<2x1x128xf32, #tpu.memory_space<vmem>>, vector<1x1x128xf32>
    %331 = vector.shape_cast %330 : vector<1x1x128xf32> to vector<1x128xf32>
    %332 = vector.broadcast %331 : vector<1x128xf32> to vector<72x128xf32>
    %333 = arith.addf %329, %332 : vector<72x128xf32>
    %334 = arith.mulf %333, %333 : vector<72x128xf32>
    %335 = arith.mulf %333, %334 : vector<72x128xf32>
    %cst_190 = arith.constant 4.471500e-02 : f32
    %336 = vector.broadcast %cst_190 : f32 to vector<72x128xf32>
    %337 = arith.mulf %336, %335 : vector<72x128xf32>
    %338 = arith.addf %333, %337 : vector<72x128xf32>
    %cst_191 = arith.constant 0.797884583 : f32
    %339 = vector.broadcast %cst_191 : f32 to vector<72x128xf32>
    %340 = arith.mulf %339, %338 : vector<72x128xf32>
    %341 = math.tanh %340 : vector<72x128xf32>
    %cst_192 = arith.constant 1.000000e+00 : f32
    %342 = vector.broadcast %cst_192 : f32 to vector<72x128xf32>
    %343 = arith.addf %342, %341 : vector<72x128xf32>
    %cst_193 = arith.constant 5.000000e-01 : f32
    %344 = vector.broadcast %cst_193 : f32 to vector<72x128xf32>
    %345 = arith.mulf %344, %343 : vector<72x128xf32>
    %346 = arith.mulf %333, %345 : vector<72x128xf32>
    %c1_194 = arith.constant 1 : index
    %c0_195 = arith.constant 0 : index
    %c0_196 = arith.constant 0 : index
    %347 = vector.load %arg16[%c1_194, %c0_195, %c0_196] : memref<2x32x128xf32, #tpu.memory_space<vmem>>, vector<1x32x128xf32>
    %348 = vector.shape_cast %347 : vector<1x32x128xf32> to vector<32x128xf32>
    %cst_197 = arith.constant dense<0.000000e+00> : vector<72x32xf32>
    %349 = tpu.matmul %346, %348, %cst_197 {dimension_numbers = #tpu.dot_dimension_numbers<[1], [1], [0], [0], [0, 0, 1, 0], [], []>} : vector<72x128xf32>, vector<32x128xf32>, vector<72x32xf32> -> vector<72x32xf32>
    %c1_198 = arith.constant 1 : index
    %c0_199 = arith.constant 0 : index
    %c0_200 = arith.constant 0 : index
    %350 = vector.load %arg17[%c1_198, %c0_199, %c0_200] : memref<2x1x32xf32, #tpu.memory_space<vmem>>, vector<1x1x32xf32>
    %351 = vector.shape_cast %350 : vector<1x1x32xf32> to vector<1x32xf32>
    %352 = vector.broadcast %351 : vector<1x32xf32> to vector<72x32xf32>
    %353 = arith.addf %349, %352 : vector<72x32xf32>
    %354 = arith.addf %302, %353 : vector<72x32xf32>
    %c0_201 = arith.constant 0 : index
    %c0_202 = arith.constant 0 : index
    %355 = vector.load %arg18[%c0_201, %c0_202] : memref<1x32xf32, #tpu.memory_space<vmem>>, vector<1x32xf32>
    %c0_203 = arith.constant 0 : index
    %c0_204 = arith.constant 0 : index
    %356 = vector.load %arg19[%c0_203, %c0_204] : memref<1x32xf32, #tpu.memory_space<vmem>>, vector<1x32xf32>
    %cst_205 = arith.constant dense<0.000000e+00> : vector<72xf32>
    %357 = vector.multi_reduction <add>, %354, %cst_205 [1] : vector<72x32xf32> to vector<72xf32>
    %358 = vector.shape_cast %357 : vector<72xf32> to vector<72x1xf32>
    %cst_206 = arith.constant 3.200000e+01 : f32
    %359 = vector.broadcast %cst_206 : f32 to vector<72x1xf32>
    %360 = arith.divf %358, %359 : vector<72x1xf32>
    %361 = vector.broadcast %360 : vector<72x1xf32> to vector<72x32xf32>
    %362 = arith.subf %354, %361 : vector<72x32xf32>
    %363 = arith.mulf %362, %362 : vector<72x32xf32>
    %cst_207 = arith.constant dense<0.000000e+00> : vector<72xf32>
    %364 = vector.multi_reduction <add>, %363, %cst_207 [1] : vector<72x32xf32> to vector<72xf32>
    %365 = vector.shape_cast %364 : vector<72xf32> to vector<72x1xf32>
    %cst_208 = arith.constant 3.200000e+01 : f32
    %366 = vector.broadcast %cst_208 : f32 to vector<72x1xf32>
    %367 = arith.divf %365, %366 : vector<72x1xf32>
    %cst_209 = arith.constant 9.99999974E-6 : f32
    %368 = vector.broadcast %cst_209 : f32 to vector<72x1xf32>
    %369 = arith.addf %367, %368 : vector<72x1xf32>
    %370 = math.rsqrt %369 : vector<72x1xf32>
    %371 = vector.broadcast %370 : vector<72x1xf32> to vector<72x32xf32>
    %372 = arith.mulf %362, %371 : vector<72x32xf32>
    %373 = vector.broadcast %355 : vector<1x32xf32> to vector<72x32xf32>
    %374 = arith.mulf %372, %373 : vector<72x32xf32>
    %375 = vector.broadcast %356 : vector<1x32xf32> to vector<72x32xf32>
    %376 = arith.addf %374, %375 : vector<72x32xf32>
    %377 = vector.shape_cast %376 : vector<72x32xf32> to vector<1x72x32xf32>
    %c0_210 = arith.constant 0 : index
    %c0_211 = arith.constant 0 : index
    %c0_212 = arith.constant 0 : index
    %378 = vector.load %arg20[%c0_210, %c0_211, %c0_212] : memref<1x72x32xf32, #tpu.memory_space<vmem>>, vector<1x72x32xf32>
    tpu.vector_store %arg20[%c0_210, %c0_211, %c0_212], %377 {strides = array<i32>} : memref<1x72x32xf32, #tpu.memory_space<vmem>>, vector<1x72x32xf32>,
    return
  }
  func.func @transform_0(%arg0: i32) -> (i32, i32) {
    %c0_i32 = arith.constant 0 : i32
    %c0_i32_0 = arith.constant 0 : i32
    %c0_i32_1 = arith.constant 0 : i32
    return %c0_i32, %c0_i32_0 : i32, i32
  }
  func.func @transform_1(%arg0: i32) -> (i32, i32) {
    %c0_i32 = arith.constant 0 : i32
    %c0_i32_0 = arith.constant 0 : i32
    %c0_i32_1 = arith.constant 0 : i32
    return %c0_i32, %c0_i32_0 : i32, i32
  }
  func.func @transform_2(%arg0: i32) -> (i32, i32) {
    %c0_i32 = arith.constant 0 : i32
    %c0_i32_0 = arith.constant 0 : i32
    %c0_i32_1 = arith.constant 0 : i32
    return %c0_i32, %c0_i32_0 : i32, i32
  }
  func.func @transform_3(%arg0: i32) -> (i32, i32) {
    %c0_i32 = arith.constant 0 : i32
    %c0_i32_0 = arith.constant 0 : i32
    %c0_i32_1 = arith.constant 0 : i32
    return %c0_i32, %c0_i32_0 : i32, i32
  }
  func.func @transform_4(%arg0: i32) -> (i32, i32) {
    %c0_i32 = arith.constant 0 : i32
    %c0_i32_0 = arith.constant 0 : i32
    %c0_i32_1 = arith.constant 0 : i32
    return %c0_i32, %c0_i32_0 : i32, i32
  }
  func.func @transform_5(%arg0: i32) -> (i32, i32, i32) {
    %c0_i32 = arith.constant 0 : i32
    %c0_i32_0 = arith.constant 0 : i32
    %c0_i32_1 = arith.constant 0 : i32
    %c0_i32_2 = arith.constant 0 : i32
    return %c0_i32, %c0_i32_0, %c0_i32_1 : i32, i32, i32
  }
  func.func @transform_6(%arg0: i32) -> (i32, i32, i32) {
    %c0_i32 = arith.constant 0 : i32
    %c0_i32_0 = arith.constant 0 : i32
    %c0_i32_1 = arith.constant 0 : i32
    %c0_i32_2 = arith.constant 0 : i32
    return %c0_i32, %c0_i32_0, %c0_i32_1 : i32, i32, i32
  }
  func.func @transform_7(%arg0: i32) -> (i32, i32, i32, i32) {
    %c0_i32 = arith.constant 0 : i32
    %c0_i32_0 = arith.constant 0 : i32
    %c0_i32_1 = arith.constant 0 : i32
    %c0_i32_2 = arith.constant 0 : i32
    %c0_i32_3 = arith.constant 0 : i32
    return %c0_i32, %c0_i32_0, %c0_i32_1, %c0_i32_2 : i32, i32, i32, i32
  }
  func.func @transform_8(%arg0: i32) -> (i32, i32, i32, i32) {
    %c0_i32 = arith.constant 0 : i32
    %c0_i32_0 = arith.constant 0 : i32
    %c0_i32_1 = arith.constant 0 : i32
    %c0_i32_2 = arith.constant 0 : i32
    %c0_i32_3 = arith.constant 0 : i32
    return %c0_i32, %c0_i32_0, %c0_i32_1, %c0_i32_2 : i32, i32, i32, i32
  }
  func.func @transform_9(%arg0: i32) -> (i32, i32, i32) {
    %c0_i32 = arith.constant 0 : i32
    %c0_i32_0 = arith.constant 0 : i32
    %c0_i32_1 = arith.constant 0 : i32
    %c0_i32_2 = arith.constant 0 : i32
    return %c0_i32, %c0_i32_0, %c0_i32_1 : i32, i32, i32
  }
  func.func @transform_10(%arg0: i32) -> (i32, i32, i32) {
    %c0_i32 = arith.constant 0 : i32
    %c0_i32_0 = arith.constant 0 : i32
    %c0_i32_1 = arith.constant 0 : i32
    %c0_i32_2 = arith.constant 0 : i32
    return %c0_i32, %c0_i32_0, %c0_i32_1 : i32, i32, i32
  }
  func.func @transform_11(%arg0: i32) -> (i32, i32, i32) {
    %c0_i32 = arith.constant 0 : i32
    %c0_i32_0 = arith.constant 0 : i32
    %c0_i32_1 = arith.constant 0 : i32
    %c0_i32_2 = arith.constant 0 : i32
    return %c0_i32, %c0_i32_0, %c0_i32_1 : i32, i32, i32
  }
  func.func @transform_12(%arg0: i32) -> (i32, i32, i32) {
    %c0_i32 = arith.constant 0 : i32
    %c0_i32_0 = arith.constant 0 : i32
    %c0_i32_1 = arith.constant 0 : i32
    %c0_i32_2 = arith.constant 0 : i32
    return %c0_i32, %c0_i32_0, %c0_i32_1 : i32, i32, i32
  }
  func.func @transform_13(%arg0: i32) -> (i32, i32, i32) {
    %c0_i32 = arith.constant 0 : i32
    %c0_i32_0 = arith.constant 0 : i32
    %c0_i32_1 = arith.constant 0 : i32
    %c0_i32_2 = arith.constant 0 : i32
    return %c0_i32, %c0_i32_0, %c0_i32_1 : i32, i32, i32
  }
  func.func @transform_14(%arg0: i32) -> (i32, i32, i32) {
    %c0_i32 = arith.constant 0 : i32
    %c0_i32_0 = arith.constant 0 : i32
    %c0_i32_1 = arith.constant 0 : i32
    %c0_i32_2 = arith.constant 0 : i32
    return %c0_i32, %c0_i32_0, %c0_i32_1 : i32, i32, i32
  }
  func.func @transform_15(%arg0: i32) -> (i32, i32, i32) {
    %c0_i32 = arith.constant 0 : i32
    %c0_i32_0 = arith.constant 0 : i32
    %c0_i32_1 = arith.constant 0 : i32
    %c0_i32_2 = arith.constant 0 : i32
    return %c0_i32, %c0_i32_0, %c0_i32_1 : i32, i32, i32
  }
  func.func @transform_16(%arg0: i32) -> (i32, i32, i32) {
    %c0_i32 = arith.constant 0 : i32
    %c0_i32_0 = arith.constant 0 : i32
    %c0_i32_1 = arith.constant 0 : i32
    %c0_i32_2 = arith.constant 0 : i32
    return %c0_i32, %c0_i32_0, %c0_i32_1 : i32, i32, i32
  }
  func.func @transform_17(%arg0: i32) -> (i32, i32) {
    %c0_i32 = arith.constant 0 : i32
    %c0_i32_0 = arith.constant 0 : i32
    %c0_i32_1 = arith.constant 0 : i32
    return %c0_i32, %c0_i32_0 : i32, i32
  }
  func.func @transform_18(%arg0: i32) -> (i32, i32) {
    %c0_i32 = arith.constant 0 : i32
    %c0_i32_0 = arith.constant 0 : i32
    %c0_i32_1 = arith.constant 0 : i32
    return %c0_i32, %c0_i32_0 : i32, i32
  }
  func.func @transform_19(%arg0: i32) -> (i32, i32, i32) {
    %c0_i32 = arith.constant 0 : i32
    %c0_i32_0 = arith.constant 0 : i32
    %c0_i32_1 = arith.constant 0 : i32
    return %arg0, %c0_i32, %c0_i32_0 : i32, i32, i32
  }
}

</mosaic_0001>

<llo_original>
// kernel: transformer_forward.1
$region0: #{transformer_forward.1}
  #allocation0 [shape = 'u32[]', space=smem, size = 0x4, offset = 0x4, fixed_abs, tag = 'smem constant byte address 0x4 - core index']
  #allocation1 [shape = 'u32[144,128]{1,0:T(1,128)}', space=vmem, size = 0x12000, scoped, tag = 'internal scratch']
  #allocation2 [shape = 'f32[72,32]{1,0:T(8,128)}', space=vmem, size = 0x9000, scoped, tag = 'scratch operand']
  %s0 = inlined_call_operand.vmem [shape: s32[2,64], index: 0, kind: input, shape index: {}]
  %s1 = inlined_call_operand.vmem [shape: f32[2,4], index: 1, kind: input, shape index: {}]
  %s2 = inlined_call_operand.vmem [shape: f32[16,32], index: 2, kind: input, shape index: {}]
  %s3 = inlined_call_operand.vmem [shape: f32[64,32], index: 3, kind: input, shape index: {}]
  %s4 = inlined_call_operand.vmem [shape: f32[129,32], index: 4, kind: input, shape index: {}]
  %s5 = inlined_call_operand.vmem [shape: f32[2,1,32], index: 5, kind: input, shape index: {}]
  %s6 = inlined_call_operand.vmem [shape: f32[2,1,32], index: 6, kind: input, shape index: {}]
  %s7 = inlined_call_operand.vmem [shape: f32[2,3,32,32], index: 7, kind: input, shape index: {}]
  %s8 = inlined_call_operand.vmem [shape: f32[2,3,1,32], index: 8, kind: input, shape index: {}]
  %s9 = inlined_call_operand.vmem [shape: f32[2,32,32], index: 9, kind: input, shape index: {}]
  %s10 = inlined_call_operand.vmem [shape: f32[2,1,32], index: 10, kind: input, shape index: {}]
  %s11 = inlined_call_operand.vmem [shape: f32[2,1,32], index: 11, kind: input, shape index: {}]
  %s12 = inlined_call_operand.vmem [shape: f32[2,1,32], index: 12, kind: input, shape index: {}]
  %s13 = inlined_call_operand.vmem [shape: f32[2,128,32], index: 13, kind: input, shape index: {}]
  %s14 = inlined_call_operand.vmem [shape: f32[2,1,128], index: 14, kind: input, shape index: {}]
  %s15 = inlined_call_operand.vmem [shape: f32[2,32,128], index: 15, kind: input, shape index: {}]
  %s16 = inlined_call_operand.vmem [shape: f32[2,1,32], index: 16, kind: input, shape index: {}]
  %s17 = inlined_call_operand.vmem [shape: f32[1,32], index: 17, kind: input, shape index: {}]
  %s18 = inlined_call_operand.vmem [shape: f32[1,32], index: 18, kind: input, shape index: {}]
  %s19 = inlined_call_operand.vmem [shape: f32[2,72,32], index: 19, kind: output, shape index: {}]
  %s20 = sld [smem:[#allocation0]]
  $region113: #{transformer_forward.1} parent=0
    _
  %s22 = ssub.s32 1, %s20
  %s23 = scalar_select 0, %s22, %s20
  $region1: #{transformer_forward.1} parent=0
    #allocation3 [shape = 'u8[1024]{0}', space=smem, size = 0x400, scoped, tag = 'input window, operand 1, single buffered']
    #allocation4 [shape = 's32[2]{0}', space=sflag, size = 0x8, scoped, tag = 'scoped memory for transformer_forward.1']
    %24 = vsyncpa [#allocation4], 0
    loop: start=0, step=1, limit=4
    $region2: #{transformer_forward.1} parent=1 // loop_pre_header
      _
    $region3: #{transformer_forward.1} parent=1 // loop_header
      %s26 = sphi 0, %s30
      %p27 = scmp.ge.s32.totalorder %s26, 4
      %s34 = sphi 0, %s34
      %s36 = sphi 0, %s34
      %s37 = sphi 0, %s36
      %s51 = sphi 0, %s37
      %s55 = sphi 0, %s55
      %s57 = sphi 0, %s55
      %s58 = sphi 0, %s57
      %s72 = sphi 0, %s58
      %s76 = sphi 0, %s76
      %s78 = sphi 0, %s76
      %s79 = sphi 0, %s78
      %s93 = sphi 0, %s79
      %s97 = sphi 0, %s97
      %s99 = sphi 0, %s97
      %s100 = sphi 0, %s99
      %s114 = sphi 0, %s100
      %s118 = sphi 0, %s118
      %s120 = sphi 0, %s118
      %s121 = sphi 0, %s120
      %s135 = sphi 0, %s121
      %s139 = sphi 0, %s139
      %s141 = sphi 0, %s139
      %s142 = sphi 0, %s141
      %s156 = sphi 0, %s142
      %s160 = sphi 0, %s160
      %s162 = sphi 0, %s160
      %s163 = sphi 0, %s162
      %s177 = sphi 0, %s163
      %s181 = sphi 0, %s181
      %s183 = sphi 0, %s181
      %s184 = sphi 0, %s183
      %s198 = sphi 0, %s184
      %s202 = sphi 0, %s202
      %s204 = sphi 0, %s202
      %s205 = sphi 0, %s204
      %s219 = sphi 0, %s205
      %s223 = sphi 0, %s223
      %s225 = sphi 0, %s223
      %s226 = sphi 0, %s225
      %s240 = sphi 0, %s226
      %s244 = sphi 0, %s244
      %s246 = sphi 0, %s244
      %s247 = sphi 0, %s246
      %s261 = sphi 0, %s247
      %s265 = sphi 0, %s265
      %s267 = sphi 0, %s265
      %s268 = sphi 0, %s267
      %s282 = sphi 0, %s268
      %s286 = sphi 0, %s286
      %s288 = sphi 0, %s286
      %s289 = sphi 0, %s288
      %s303 = sphi 0, %s289
      %s307 = sphi 0, %s307
      %s309 = sphi 0, %s307
      %s310 = sphi 0, %s309
      %s324 = sphi 0, %s310
      %s328 = sphi 0, %s328
      %s330 = sphi 0, %s328
      %s331 = sphi 0, %s330
      %s345 = sphi 0, %s331
      %s349 = sphi 0, %s349
      %s351 = sphi 0, %s349
      %s352 = sphi 0, %s351
      %s366 = sphi 0, %s352
      %s370 = sphi 0, %s370
      %s372 = sphi 0, %s370
      %s373 = sphi 0, %s372
      %s387 = sphi 0, %s373
      %s391 = sphi 0, %s391
      %s393 = sphi 0, %s391
      %s394 = sphi 0, %s393
      %s408 = sphi 0, %s394
      %s412 = sphi 0, %s412
      %s414 = sphi 0, %s412
      %s415 = sphi 0, %s414
      %s429 = sphi 0, %s415
      %s435 = sphi 0, %s437
      %s438 = sphi 0, %s435
      %s439 = sphi 0, %s438
      %s455 = sphi 0, %s439
    $region4: #{transformer_forward.1} parent=1 // loop_header_branch
      %29 = sbr.rel (%p27) target = $region8
    $region5: #{transformer_forward.1} parent=1 // loop_body
      %s31 = ssub.s32 %s26, 1
      %s32 = ssub.s32 %s26, 2
      %s33 = sadd.s32 %s26, 1
      %s35 = sadd.s32 %s34, 1
      %p38 = scmp.eq.s32.totalorder %s26, 1
      %p39 = scmp.ne.s32.totalorder %s34, %s36
      %p40 = scmp.eq.s32.totalorder %s26, 0
      %p41 = por %p39, %p40
      %p42 = scmp.ne.s32.totalorder %s34, %s36
      %p43 = scmp.eq.s32.totalorder %s31, 1
      %p44 = por %p42, %p43
      %p45 = scmp.ne.s32.totalorder %s36, %s37
      %p46 = scmp.eq.s32.totalorder %s31, 0
      %p47 = por %p45, %p46
      %p48 = scmp.ne.s32.totalorder %s36, %s37
      %p49 = scmp.eq.s32.totalorder %s32, 1
      %p50 = por %p48, %p49
      %p52 = scmp.ne.s32.totalorder %s37, %s51
      %p53 = scmp.eq.s32.totalorder %s32, 0
      %p54 = por %p52, %p53
      %s56 = sadd.s32 %s55, 1
      %p59 = scmp.eq.s32.totalorder %s26, 1
      %p60 = scmp.ne.s32.totalorder %s55, %s57
      %p61 = scmp.eq.s32.totalorder %s26, 0
      %p62 = por %p60, %p61
      %p63 = scmp.ne.s32.totalorder %s55, %s57
      %p64 = scmp.eq.s32.totalorder %s31, 1
      %p65 = por %p63, %p64
      %p66 = scmp.ne.s32.totalorder %s57, %s58
      %p67 = scmp.eq.s32.totalorder %s31, 0
      %p68 = por %p66, %p67
      %p69 = scmp.ne.s32.totalorder %s57, %s58
      %p70 = scmp.eq.s32.totalorder %s32, 1
      %p71 = por %p69, %p70
      %p73 = scmp.ne.s32.totalorder %s58, %s72
      %p74 = scmp.eq.s32.totalorder %s32, 0
      %p75 = por %p73, %p74
      %s77 = sadd.s32 %s76, 1
      %p80 = scmp.eq.s32.totalorder %s26, 1
      %p81 = scmp.ne.s32.totalorder %s76, %s78
      %p82 = scmp.eq.s32.totalorder %s26, 0
      %p83 = por %p81, %p82
      %p84 = scmp.ne.s32.totalorder %s76, %s78
      %p85 = scmp.eq.s32.totalorder %s31, 1
      %p86 = por %p84, %p85
      %p87 = scmp.ne.s32.totalorder %s78, %s79
      %p88 = scmp.eq.s32.totalorder %s31, 0
      %p89 = por %p87, %p88
      %p90 = scmp.ne.s32.totalorder %s78, %s79
      %p91 = scmp.eq.s32.totalorder %s32, 1
      %p92 = por %p90, %p91
      %p94 = scmp.ne.s32.totalorder %s79, %s93
      %p95 = scmp.eq.s32.totalorder %s32, 0
      %p96 = por %p94, %p95
      %s98 = sadd.s32 %s97, 1
      %p101 = scmp.eq.s32.totalorder %s26, 1
      %p102 = scmp.ne.s32.totalorder %s97, %s99
      %p103 = scmp.eq.s32.totalorder %s26, 0
      %p104 = por %p102, %p103
      %p105 = scmp.ne.s32.totalorder %s97, %s99
      %p106 = scmp.eq.s32.totalorder %s31, 1
      %p107 = por %p105, %p106
      %p108 = scmp.ne.s32.totalorder %s99, %s100
      %p109 = scmp.eq.s32.totalorder %s31, 0
      %p110 = por %p108, %p109
      %p111 = scmp.ne.s32.totalorder %s99, %s100
      %p112 = scmp.eq.s32.totalorder %s32, 1
      %p113 = por %p111, %p112
      %p115 = scmp.ne.s32.totalorder %s100, %s114
      %p116 = scmp.eq.s32.totalorder %s32, 0
      %p117 = por %p115, %p116
      %s119 = sadd.s32 %s118, 1
      %p122 = scmp.eq.s32.totalorder %s26, 1
      %p123 = scmp.ne.s32.totalorder %s118, %s120
      %p124 = scmp.eq.s32.totalorder %s26, 0
      %p125 = por %p123, %p124
      %p126 = scmp.ne.s32.totalorder %s118, %s120
      %p127 = scmp.eq.s32.totalorder %s31, 1
      %p128 = por %p126, %p127
      %p129 = scmp.ne.s32.totalorder %s120, %s121
      %p130 = scmp.eq.s32.totalorder %s31, 0
      %p131 = por %p129, %p130
      %p132 = scmp.ne.s32.totalorder %s120, %s121
      %p133 = scmp.eq.s32.totalorder %s32, 1
      %p134 = por %p132, %p133
      %p136 = scmp.ne.s32.totalorder %s121, %s135
      %p137 = scmp.eq.s32.totalorder %s32, 0
      %p138 = por %p136, %p137
      %s140 = sadd.s32 %s139, 1
      %p143 = scmp.eq.s32.totalorder %s26, 1
      %p144 = scmp.ne.s32.totalorder %s139, %s141
      %p145 = scmp.eq.s32.totalorder %s26, 0
      %p146 = por %p144, %p145
      %p147 = scmp.ne.s32.totalorder %s139, %s141
      %p148 = scmp.eq.s32.totalorder %s31, 1
      %p149 = por %p147, %p148
      %p150 = scmp.ne.s32.totalorder %s141, %s142
      %p151 = scmp.eq.s32.totalorder %s31, 0
      %p152 = por %p150, %p151
      %p153 = scmp.ne.s32.totalorder %s141, %s142
      %p154 = scmp.eq.s32.totalorder %s32, 1
      %p155 = por %p153, %p154
      %p157 = scmp.ne.s32.totalorder %s142, %s156
      %p158 = scmp.eq.s32.totalorder %s32, 0
      %p159 = por %p157, %p158
      %s161 = sadd.s32 %s160, 1
      %p164 = scmp.eq.s32.totalorder %s26, 1
      %p165 = scmp.ne.s32.totalorder %s160, %s162
      %p166 = scmp.eq.s32.totalorder %s26, 0
      %p167 = por %p165, %p166
      %p168 = scmp.ne.s32.totalorder %s160, %s162
      %p169 = scmp.eq.s32.totalorder %s31, 1
      %p170 = por %p168, %p169
      %p171 = scmp.ne.s32.totalorder %s162, %s163
      %p172 = scmp.eq.s32.totalorder %s31, 0
      %p173 = por %p171, %p172
      %p174 = scmp.ne.s32.totalorder %s162, %s163
      %p175 = scmp.eq.s32.totalorder %s32, 1
      %p176 = por %p174, %p175
      %p178 = scmp.ne.s32.totalorder %s163, %s177
      %p179 = scmp.eq.s32.totalorder %s32, 0
      %p180 = por %p178, %p179
      %s182 = sadd.s32 %s181, 1
      %p185 = scmp.eq.s32.totalorder %s26, 1
      %p186 = scmp.ne.s32.totalorder %s181, %s183
      %p187 = scmp.eq.s32.totalorder %s26, 0
      %p188 = por %p186, %p187
      %p189 = scmp.ne.s32.totalorder %s181, %s183
      %p190 = scmp.eq.s32.totalorder %s31, 1
      %p191 = por %p189, %p190
      %p192 = scmp.ne.s32.totalorder %s183, %s184
      %p193 = scmp.eq.s32.totalorder %s31, 0
      %p194 = por %p192, %p193
      %p195 = scmp.ne.s32.totalorder %s183, %s184
      %p196 = scmp.eq.s32.totalorder %s32, 1
      %p197 = por %p195, %p196
      %p199 = scmp.ne.s32.totalorder %s184, %s198
      %p200 = scmp.eq.s32.totalorder %s32, 0
      %p201 = por %p199, %p200
      %s203 = sadd.s32 %s202, 1
      %p206 = scmp.eq.s32.totalorder %s26, 1
      %p207 = scmp.ne.s32.totalorder %s202, %s204
      %p208 = scmp.eq.s32.totalorder %s26, 0
      %p209 = por %p207, %p208
      %p210 = scmp.ne.s32.totalorder %s202, %s204
      %p211 = scmp.eq.s32.totalorder %s31, 1
      %p212 = por %p210, %p211
      %p213 = scmp.ne.s32.totalorder %s204, %s205
      %p214 = scmp.eq.s32.totalorder %s31, 0
      %p215 = por %p213, %p214
      %p216 = scmp.ne.s32.totalorder %s204, %s205
      %p217 = scmp.eq.s32.totalorder %s32, 1
      %p218 = por %p216, %p217
      %p220 = scmp.ne.s32.totalorder %s205, %s219
      %p221 = scmp.eq.s32.totalorder %s32, 0
      %p222 = por %p220, %p221
      %s224 = sadd.s32 %s223, 1
      %p227 = scmp.eq.s32.totalorder %s26, 1
      %p228 = scmp.ne.s32.totalorder %s223, %s225
      %p229 = scmp.eq.s32.totalorder %s26, 0
      %p230 = por %p228, %p229
      %p231 = scmp.ne.s32.totalorder %s223, %s225
      %p232 = scmp.eq.s32.totalorder %s31, 1
      %p233 = por %p231, %p232
      %p234 = scmp.ne.s32.totalorder %s225, %s226
      %p235 = scmp.eq.s32.totalorder %s31, 0
      %p236 = por %p234, %p235
      %p237 = scmp.ne.s32.totalorder %s225, %s226
      %p238 = scmp.eq.s32.totalorder %s32, 1
      %p239 = por %p237, %p238
      %p241 = scmp.ne.s32.totalorder %s226, %s240
      %p242 = scmp.eq.s32.totalorder %s32, 0
      %p243 = por %p241, %p242
      %s245 = sadd.s32 %s244, 1
      %p248 = scmp.eq.s32.totalorder %s26, 1
      %p249 = scmp.ne.s32.totalorder %s244, %s246
      %p250 = scmp.eq.s32.totalorder %s26, 0
      %p251 = por %p249, %p250
      %p252 = scmp.ne.s32.totalorder %s244, %s246
      %p253 = scmp.eq.s32.totalorder %s31, 1
      %p254 = por %p252, %p253
      %p255 = scmp.ne.s32.totalorder %s246, %s247
      %p256 = scmp.eq.s32.totalorder %s31, 0
      %p257 = por %p255, %p256
      %p258 = scmp.ne.s32.totalorder %s246, %s247
      %p259 = scmp.eq.s32.totalorder %s32, 1
      %p260 = por %p258, %p259
      %p262 = scmp.ne.s32.totalorder %s247, %s261
      %p263 = scmp.eq.s32.totalorder %s32, 0
      %p264 = por %p262, %p263
      %s266 = sadd.s32 %s265, 1
      %p269 = scmp.eq.s32.totalorder %s26, 1
      %p270 = scmp.ne.s32.totalorder %s265, %s267
      %p271 = scmp.eq.s32.totalorder %s26, 0
      %p272 = por %p270, %p271
      %p273 = scmp.ne.s32.totalorder %s265, %s267
      %p274 = scmp.eq.s32.totalorder %s31, 1
      %p275 = por %p273, %p274
      %p276 = scmp.ne.s32.totalorder %s267, %s268
      %p277 = scmp.eq.s32.totalorder %s31, 0
      %p278 = por %p276, %p277
      %p279 = scmp.ne.s32.totalorder %s267, %s268
      %p280 = scmp.eq.s32.totalorder %s32, 1
      %p281 = por %p279, %p280
      %p283 = scmp.ne.s32.totalorder %s268, %s282
      %p284 = scmp.eq.s32.totalorder %s32, 0
      %p285 = por %p283, %p284
      %s287 = sadd.s32 %s286, 1
      %p290 = scmp.eq.s32.totalorder %s26, 1
      %p291 = scmp.ne.s32.totalorder %s286, %s288
      %p292 = scmp.eq.s32.totalorder %s26, 0
      %p293 = por %p291, %p292
      %p294 = scmp.ne.s32.totalorder %s286, %s288
      %p295 = scmp.eq.s32.totalorder %s31, 1
      %p296 = por %p294, %p295
      %p297 = scmp.ne.s32.totalorder %s288, %s289
      %p298 = scmp.eq.s32.totalorder %s31, 0
      %p299 = por %p297, %p298
      %p300 = scmp.ne.s32.totalorder %s288, %s289
      %p301 = scmp.eq.s32.totalorder %s32, 1
      %p302 = por %p300, %p301
      %p304 = scmp.ne.s32.totalorder %s289, %s303
      %p305 = scmp.eq.s32.totalorder %s32, 0
      %p306 = por %p304, %p305
      %s308 = sadd.s32 %s307, 1
      %p311 = scmp.eq.s32.totalorder %s26, 1
      %p312 = scmp.ne.s32.totalorder %s307, %s309
      %p313 = scmp.eq.s32.totalorder %s26, 0
      %p314 = por %p312, %p313
      %p315 = scmp.ne.s32.totalorder %s307, %s309
      %p316 = scmp.eq.s32.totalorder %s31, 1
      %p317 = por %p315, %p316
      %p318 = scmp.ne.s32.totalorder %s309, %s310
      %p319 = scmp.eq.s32.totalorder %s31, 0
      %p320 = por %p318, %p319
      %p321 = scmp.ne.s32.totalorder %s309, %s310
      %p322 = scmp.eq.s32.totalorder %s32, 1
      %p323 = por %p321, %p322
      %p325 = scmp.ne.s32.totalorder %s310, %s324
      %p326 = scmp.eq.s32.totalorder %s32, 0
      %p327 = por %p325, %p326
      %s329 = sadd.s32 %s328, 1
      %p332 = scmp.eq.s32.totalorder %s26, 1
      %p333 = scmp.ne.s32.totalorder %s328, %s330
      %p334 = scmp.eq.s32.totalorder %s26, 0
      %p335 = por %p333, %p334
      %p336 = scmp.ne.s32.totalorder %s328, %s330
      %p337 = scmp.eq.s32.totalorder %s31, 1
      %p338 = por %p336, %p337
      %p339 = scmp.ne.s32.totalorder %s330, %s331
      %p340 = scmp.eq.s32.totalorder %s31, 0
      %p341 = por %p339, %p340
      %p342 = scmp.ne.s32.totalorder %s330, %s331
      %p343 = scmp.eq.s32.totalorder %s32, 1
      %p344 = por %p342, %p343
      %p346 = scmp.ne.s32.totalorder %s331, %s345
      %p347 = scmp.eq.s32.totalorder %s32, 0
      %p348 = por %p346, %p347
      %s350 = sadd.s32 %s349, 1
      %p353 = scmp.eq.s32.totalorder %s26, 1
      %p354 = scmp.ne.s32.totalorder %s349, %s351
      %p355 = scmp.eq.s32.totalorder %s26, 0
      %p356 = por %p354, %p355
      %p357 = scmp.ne.s32.totalorder %s349, %s351
      %p358 = scmp.eq.s32.totalorder %s31, 1
      %p359 = por %p357, %p358
      %p360 = scmp.ne.s32.totalorder %s351, %s352
      %p361 = scmp.eq.s32.totalorder %s31, 0
      %p362 = por %p360, %p361
      %p363 = scmp.ne.s32.totalorder %s351, %s352
      %p364 = scmp.eq.s32.totalorder %s32, 1
      %p365 = por %p363, %p364
      %p367 = scmp.ne.s32.totalorder %s352, %s366
      %p368 = scmp.eq.s32.totalorder %s32, 0
      %p369 = por %p367, %p368
      %s371 = sadd.s32 %s370, 1
      %p374 = scmp.eq.s32.totalorder %s26, 1
      %p375 = scmp.ne.s32.totalorder %s370, %s372
      %p376 = scmp.eq.s32.totalorder %s26, 0
      %p377 = por %p375, %p376
      %p378 = scmp.ne.s32.totalorder %s370, %s372
      %p379 = scmp.eq.s32.totalorder %s31, 1
      %p380 = por %p378, %p379
      %p381 = scmp.ne.s32.totalorder %s372, %s373
      %p382 = scmp.eq.s32.totalorder %s31, 0
      %p383 = por %p381, %p382
      %p384 = scmp.ne.s32.totalorder %s372, %s373
      %p385 = scmp.eq.s32.totalorder %s32, 1
      %p386 = por %p384, %p385
      %p388 = scmp.ne.s32.totalorder %s373, %s387
      %p389 = scmp.eq.s32.totalorder %s32, 0
      %p390 = por %p388, %p389
      %s392 = sadd.s32 %s391, 1
      %p395 = scmp.eq.s32.totalorder %s26, 1
      %p396 = scmp.ne.s32.totalorder %s391, %s393
      %p397 = scmp.eq.s32.totalorder %s26, 0
      %p398 = por %p396, %p397
      %p399 = scmp.ne.s32.totalorder %s391, %s393
      %p400 = scmp.eq.s32.totalorder %s31, 1
      %p401 = por %p399, %p400
      %p402 = scmp.ne.s32.totalorder %s393, %s394
      %p403 = scmp.eq.s32.totalorder %s31, 0
      %p404 = por %p402, %p403
      %p405 = scmp.ne.s32.totalorder %s393, %s394
      %p406 = scmp.eq.s32.totalorder %s32, 1
      %p407 = por %p405, %p406
      %p409 = scmp.ne.s32.totalorder %s394, %s408
      %p410 = scmp.eq.s32.totalorder %s32, 0
      %p411 = por %p409, %p410
      %s413 = sadd.s32 %s412, 1
      %p416 = scmp.eq.s32.totalorder %s26, 1
      %p417 = scmp.ne.s32.totalorder %s412, %s414
      %p418 = scmp.eq.s32.totalorder %s26, 0
      %p419 = por %p417, %p418
      %p420 = scmp.ne.s32.totalorder %s412, %s414
      %p421 = scmp.eq.s32.totalorder %s31, 1
      %p422 = por %p420, %p421
      %p423 = scmp.ne.s32.totalorder %s414, %s415
      %p424 = scmp.eq.s32.totalorder %s31, 0
      %p425 = por %p423, %p424
      %p426 = scmp.ne.s32.totalorder %s414, %s415
      %p427 = scmp.eq.s32.totalorder %s32, 1
      %p428 = por %p426, %p427
      %p430 = scmp.ne.s32.totalorder %s415, %s429
      %p431 = scmp.eq.s32.totalorder %s32, 0
      %p432 = por %p430, %p431
      %s433 = ssub.s32 %s26, %s33
      %p434 = scmp.eq.s32.totalorder %s433, 0
      %s436 = sadd.s32 %s435, 1
      %s437 = scalar_select %p434, %s435, %s436
      %p440 = pneg %p434
      %p441 = scmp.eq.s32.totalorder %s26, 1
      %p442 = por %p440, %p441
      %p443 = scmp.ne.s32.totalorder %s435, %s438
      %p444 = scmp.eq.s32.totalorder %s26, 0
      %p445 = por %p443, %p444
      %p446 = scmp.ne.s32.totalorder %s435, %s438
      %p447 = scmp.eq.s32.totalorder %s31, 1
      %p448 = por %p446, %p447
      %p449 = scmp.ne.s32.totalorder %s438, %s439
      %p450 = scmp.eq.s32.totalorder %s31, 0
      %p451 = por %p449, %p450
      %p452 = scmp.ne.s32.totalorder %s438, %s439
      %p453 = scmp.eq.s32.totalorder %s32, 1
      %p454 = por %p452, %p453
      %p456 = scmp.ne.s32.totalorder %s439, %s455
      %p457 = scmp.eq.s32.totalorder %s32, 0
      %p458 = por %p456, %p457
      %p459 = scmp.le.s32.totalorder 1, %s26
      %p460 = scmp.lt.s32.totalorder %s26, 3
      %p461 = pnand %p459, %p460
      %p462 = pneg %p461
      // Predicated region
      $region9: #{transformer_forward.1} parent=5 // pred_check
        _
      $region10: #{transformer_forward.1} parent=5 // pred_check_branch
        %464 = sbr.rel (%p461) target = $region12
      $region11: #{transformer_forward.1} parent=5 // pred_region
        %s465 = ssub.s32 %s26, 1
        // Predicated region
        $region13: #{transformer_forward.1} parent=11 // pred_check
          %p466 = pneg %p47
        $region14: #{transformer_forward.1} parent=11 // pred_check_branch
          %468 = sbr.rel (%p466) target = $region16
        $region15: #{transformer_forward.1} parent=11 // pred_region
          _
        $region16: #{transformer_forward.1} parent=11 // pred_fallthru
          _
        // Predicated region
        $region17: #{transformer_forward.1} parent=11 // pred_check
          %p469 = pneg %p68
        $region18: #{transformer_forward.1} parent=11 // pred_check_branch
          %471 = sbr.rel (%p469) target = $region20
        $region19: #{transformer_forward.1} parent=11 // pred_region
          %s473 = ssub.s32 32, 32
          %474 = vsyncadd [#allocation4], %s473
          %s476 = sshll.u32 %s1, 4
          %s477 = int_to_ptr.vmem [resolvable:$true] %s476
          %479 = dma.vmem_to_smem %s477, 32, [#allocation3], [#allocation4]
        $region20: #{transformer_forward.1} parent=11 // pred_fallthru
          _
        // Predicated region
        $region21: #{transformer_forward.1} parent=11 // pred_check
          %p480 = pneg %p89
        $region22: #{transformer_forward.1} parent=11 // pred_check_branch
          %482 = sbr.rel (%p480) target = $region24
        $region23: #{transformer_forward.1} parent=11 // pred_region
          _
        $region24: #{transformer_forward.1} parent=11 // pred_fallthru
          _
        // Predicated region
        $region25: #{transformer_forward.1} parent=11 // pred_check
          %p483 = pneg %p110
        $region26: #{transformer_forward.1} parent=11 // pred_check_branch
          %485 = sbr.rel (%p483) target = $region28
        $region27: #{transformer_forward.1} parent=11 // pred_region
          _
        $region28: #{transformer_forward.1} parent=11 // pred_fallthru
          _
        // Predicated region
        $region29: #{transformer_forward.1} parent=11 // pred_check
          %p486 = pneg %p131
        $region30: #{transformer_forward.1} parent=11 // pred_check_branch
          %488 = sbr.rel (%p486) target = $region32
        $region31: #{transformer_forward.1} parent=11 // pred_region
          _
        $region32: #{transformer_forward.1} parent=11 // pred_fallthru
          _
        // Predicated region
        $region33: #{transformer_forward.1} parent=11 // pred_check
          %p489 = pneg %p152
        $region34: #{transformer_forward.1} parent=11 // pred_check_branch
          %491 = sbr.rel (%p489) target = $region36
        $region35: #{transformer_forward.1} parent=11 // pred_region
          _
        $region36: #{transformer_forward.1} parent=11 // pred_fallthru
          _
        // Predicated region
        $region37: #{transformer_forward.1} parent=11 // pred_check
          %p492 = pneg %p173
        $region38: #{transformer_forward.1} parent=11 // pred_check_branch
          %494 = sbr.rel (%p492) target = $region40
        $region39: #{transformer_forward.1} parent=11 // pred_region
          _
        $region40: #{transformer_forward.1} parent=11 // pred_fallthru
          _
        // Predicated region
        $region41: #{transformer_forward.1} parent=11 // pred_check
          %p495 = pneg %p194
        $region42: #{transformer_forward.1} parent=11 // pred_check_branch
          %497 = sbr.rel (%p495) target = $region44
        $region43: #{transformer_forward.1} parent=11 // pred_region
          _
        $region44: #{transformer_forward.1} parent=11 // pred_fallthru
          _
        // Predicated region
        $region45: #{transformer_forward.1} parent=11 // pred_check
          %p498 = pneg %p215
        $region46: #{transformer_forward.1} parent=11 // pred_check_branch
          %500 = sbr.rel (%p498) target = $region48
        $region47: #{transformer_forward.1} parent=11 // pred_region
          _
        $region48: #{transformer_forward.1} parent=11 // pred_fallthru
          _
        // Predicated region
        $region49: #{transformer_forward.1} parent=11 // pred_check
          %p501 = pneg %p236
        $region50: #{transformer_forward.1} parent=11 // pred_check_branch
          %503 = sbr.rel (%p501) target = $region52
        $region51: #{transformer_forward.1} parent=11 // pred_region
          _
        $region52: #{transformer_forward.1} parent=11 // pred_fallthru
          _
        // Predicated region
        $region53: #{transformer_forward.1} parent=11 // pred_check
          %p504 = pneg %p257
        $region54: #{transformer_forward.1} parent=11 // pred_check_branch
          %506 = sbr.rel (%p504) target = $region56
        $region55: #{transformer_forward.1} parent=11 // pred_region
          _
        $region56: #{transformer_forward.1} parent=11 // pred_fallthru
          _
        // Predicated region
        $region57: #{transformer_forward.1} parent=11 // pred_check
          %p507 = pneg %p278
        $region58: #{transformer_forward.1} parent=11 // pred_check_branch
          %509 = sbr.rel (%p507) target = $region60
        $region59: #{transformer_forward.1} parent=11 // pred_region
          _
        $region60: #{transformer_forward.1} parent=11 // pred_fallthru
          _
        // Predicated region
        $region61: #{transformer_forward.1} parent=11 // pred_check
          %p510 = pneg %p299
        $region62: #{transformer_forward.1} parent=11 // pred_check_branch
          %512 = sbr.rel (%p510) target = $region64
        $region63: #{transformer_forward.1} parent=11 // pred_region
          _
        $region64: #{transformer_forward.1} parent=11 // pred_fallthru
          _
        // Predicated region
        $region65: #{transformer_forward.1} parent=11 // pred_check
          %p513 = pneg %p320
        $region66: #{transformer_forward.1} parent=11 // pred_check_branch
          %515 = sbr.rel (%p513) target = $region68
        $region67: #{transformer_forward.1} parent=11 // pred_region
          _
        $region68: #{transformer_forward.1} parent=11 // pred_fallthru
          _
        // Predicated region
        $region69: #{transformer_forward.1} parent=11 // pred_check
          %p516 = pneg %p341
        $region70: #{transformer_forward.1} parent=11 // pred_check_branch
          %518 = sbr.rel (%p516) target = $region72
        $region71: #{transformer_forward.1} parent=11 // pred_region
          _
        $region72: #{transformer_forward.1} parent=11 // pred_fallthru
          _
        // Predicated region
        $region73: #{transformer_forward.1} parent=11 // pred_check
          %p519 = pneg %p362
        $region74: #{transformer_forward.1} parent=11 // pred_check_branch
          %521 = sbr.rel (%p519) target = $region76
        $region75: #{transformer_forward.1} parent=11 // pred_region
          _
        $region76: #{transformer_forward.1} parent=11 // pred_fallthru
          _
        // Predicated region
        $region77: #{transformer_forward.1} parent=11 // pred_check
          %p522 = pneg %p383
        $region78: #{transformer_forward.1} parent=11 // pred_check_branch
          %524 = sbr.rel (%p522) target = $region80
        $region79: #{transformer_forward.1} parent=11 // pred_region
          _
        $region80: #{transformer_forward.1} parent=11 // pred_fallthru
          _
        // Predicated region
        $region81: #{transformer_forward.1} parent=11 // pred_check
          %p525 = pneg %p404
        $region82: #{transformer_forward.1} parent=11 // pred_check_branch
          %527 = sbr.rel (%p525) target = $region84
        $region83: #{transformer_forward.1} parent=11 // pred_region
          _
        $region84: #{transformer_forward.1} parent=11 // pred_fallthru
          _
        // Predicated region
        $region85: #{transformer_forward.1} parent=11 // pred_check
          %p528 = pneg %p425
        $region86: #{transformer_forward.1} parent=11 // pred_check_branch
          %530 = sbr.rel (%p528) target = $region88
        $region87: #{transformer_forward.1} parent=11 // pred_region
          _
        $region88: #{transformer_forward.1} parent=11 // pred_fallthru
          _
      $region12: #{transformer_forward.1} parent=5 // pred_fallthru
        _
      %p531 = scmp.lt.s32.totalorder %s26, 2
      // Predicated region
      $region89: #{transformer_forward.1} parent=5 // pred_check
        %p532 = pneg %p531
      $region90: #{transformer_forward.1} parent=5 // pred_check_branch
        %534 = sbr.rel (%p532) target = $region92
      $region91: #{transformer_forward.1} parent=5 // pred_region
        _
      $region92: #{transformer_forward.1} parent=5 // pred_fallthru
        _
      %p535 = scmp.le.s32.totalorder 1, %s26
      %p536 = scmp.lt.s32.totalorder %s26, 3
      %p537 = pnand %p535, %p536
      %p538 = pneg %p537
      // Predicated region
      $region93: #{transformer_forward.1} parent=5 // pred_check
        _
      $region94: #{transformer_forward.1} parent=5 // pred_check_branch
        %540 = sbr.rel (%p537) target = $region96
      $region95: #{transformer_forward.1} parent=5 // pred_region
        %s541 = ssub.s32 %s26, 1
        // Predicated region
        $region97: #{transformer_forward.1} parent=95 // pred_check
          %p542 = pneg %p68
        $region98: #{transformer_forward.1} parent=95 // pred_check_branch
          %544 = sbr.rel (%p542) target = $region100
        $region99: #{transformer_forward.1} parent=95 // pred_region
          %545 = dma.done [#allocation4], 32
        $region100: #{transformer_forward.1} parent=95 // pred_fallthru
          _
        %546 = sfence
        %p547 = pneg %p47
        %p548 = pneg %p44
        %p549 = pneg %p68
        %p550 = pneg %p65
        %p551 = pneg %p89
        %p552 = pneg %p86
        %p553 = pneg %p110
        %p554 = pneg %p107
        %p555 = pneg %p131
        %p556 = pneg %p128
        %p557 = pneg %p152
        %p558 = pneg %p149
        %p559 = pneg %p173
        %p560 = pneg %p170
        %p561 = pneg %p194
        %p562 = pneg %p191
        %p563 = pneg %p215
        %p564 = pneg %p212
        %p565 = pneg %p236
        %p566 = pneg %p233
        %p567 = pneg %p257
        %p568 = pneg %p254
        %p569 = pneg %p278
        %p570 = pneg %p275
        %p571 = pneg %p299
        %p572 = pneg %p296
        %p573 = pneg %p320
        %p574 = pneg %p317
        %p575 = pneg %p341
        %p576 = pneg %p338
        %p577 = pneg %p362
        %p578 = pneg %p359
        %p579 = pneg %p383
        %p580 = pneg %p380
        %p581 = pneg %p404
        %p582 = pneg %p401
        %p583 = pneg %p425
        %p584 = pneg %p422
        %p585 = pneg %p451
        %p586 = pneg %p448
        %p587 = scmp.lt.s32.totalorder %s31, 1
        %s588 = scalar_select %p587, %s31, 1
        %s589 = smul.addr %s588, 9
        %s590 = smul.addr %s589, 8
        %s591 = scalar_lea.vmem %s19, %s590
        %p592 = scmp.lt.s32.totalorder %s31, 1
        %s593 = scalar_select %p592, %s31, 1
        %s594 = smul.addr %s593, 9
        %s595 = smul.addr %s594, 8
        %s596 = scalar_lea.vmem %s19, %s595
        %s597 = scalar_lea.vmem %s0, %s31
        %v598 = vld [vmem:[%s597] sm:$0x1]
        %v599 = vlaneseq
        %v600 = vshrl.u32 %v599, 7
        %v601 = vadd.s32 %v600, 8
        %v602 = vlaneseq
        %v603 = vshrl.u32 %v602, 7
        %v604 = vsub.s32 0, %v603
        %v605 = vrot.slane %v598, %v604
        %vm606 = vcmp.eq.s32.totalorder %v600, %v605
        %vm607 = vcmp.eq.s32.totalorder %v601, %v605
        %v608 = vsel %vm606, 1, 0
        %v609 = vsel %vm607, 1, 0
        %v610 = vcvt.s32.f32 %v608
        %v611 = vcvt.s32.f32 %v609
        %v612 = vld [vmem:[%s2] sm:$0xff]
        %v613 = vld [vmem:[%s2 + $0x8] sm:$0xff]
        %v614 = vld [vmem:[%s3] sm:$0xff]
        %v615 = vld [vmem:[%s3 + $0x8] sm:$0xff]
        %v616 = vld [vmem:[%s3 + $0x10] sm:$0xff]
        %v617 = vld [vmem:[%s3 + $0x18] sm:$0xff]
        %v618 = vld [vmem:[%s3 + $0x20] sm:$0xff]
        %v619 = vld [vmem:[%s3 + $0x28] sm:$0xff]
        %v620 = vld [vmem:[%s3 + $0x30] sm:$0xff]
        %v621 = vld [vmem:[%s3 + $0x38] sm:$0xff]
        %622 = vxpose.xlu0.b32.start [1/16] %v610, 128
        %623 = vxpose.xlu0.b32.cont [2/16] %v611, 128
        %624 = vxpose.xlu0.b32.cont [3/16] 0.0, 128
        %625 = vxpose.xlu0.b32.cont [4/16] 0.0, 128
        %626 = vxpose.xlu0.b32.cont [5/16] 0.0, 128
        %627 = vxpose.xlu0.b32.cont [6/16] 0.0, 128
        %628 = vxpose.xlu0.b32.cont [7/16] 0.0, 128
        %629 = vxpose.xlu0.b32.cont [8/16] 0.0, 128
        %630 = vxpose.xlu0.b32.cont [9/16] 0.0, 128
        %631 = vxpose.xlu0.b32.cont [10/16] 0.0, 128
        %632 = vxpose.xlu0.b32.cont [11/16] 0.0, 128
        %633 = vxpose.xlu0.b32.cont [12/16] 0.0, 128
        %634 = vxpose.xlu0.b32.cont [13/16] 0.0, 128
        %635 = vxpose.xlu0.b32.cont [14/16] 0.0, 128
        %636 = vxpose.xlu0.b32.cont [15/16] 0.0, 128
        %637 = vxpose.xlu0.b32.end [16/16] 0.0, 128
        %v638 = vpop.trf.xlu0
        %v639 = vpop.trf.xlu0
        %v640 = vpop.trf.xlu0
        %v641 = vpop.trf.xlu0
        %v642 = vpop.trf.xlu0
        %v643 = vpop.trf.xlu0
        %v644 = vpop.trf.xlu0
        %v645 = vpop.trf.xlu0
        %v646 = vpop.trf.xlu0
        %v647 = vpop.trf.xlu0
        %v648 = vpop.trf.xlu0
        %v649 = vpop.trf.xlu0
        %v650 = vpop.trf.xlu0
        %v651 = vpop.trf.xlu0
        %v652 = vpop.trf.xlu0
        %v653 = vpop.trf.xlu0
        %vm654 = vcmask 130048
        %v656 = vsel %vm654, %v638, 0
        %v659 = vsel %vm654, %v639, 0
        %v662 = vsel %vm654, %v640, 0
        %v665 = vsel %vm654, %v641, 0
        %v668 = vsel %vm654, %v642, 0
        %v671 = vsel %vm654, %v643, 0
        %v674 = vsel %vm654, %v644, 0
        %v677 = vsel %vm654, %v645, 0
        %679 = vmatprep.subr.mxu0 0.0
        %680 = vmatpush1.msra.mxu0 %v612
        %681 = vmatprep.subr.mxu0 0.0
        %682 = vmatpush1.msra.mxu0 %v613
        %683 = vmatprep.subr.mxu0 0.0
        %684 = vmatpush1.msra.mxu0 0.0
        %685 = vmatprep.subr.mxu0 0.0
        %686 = vmatpush1.msra.mxu0 0.0
        %687 = vmatprep.subr.mxu0 0.0
        %688 = vmatpush1.msra.mxu0 0.0
        %689 = vmatprep.subr.mxu0 0.0
        %690 = vmatpush1.msra.mxu0 0.0
        %691 = vmatprep.subr.mxu0 0.0
        %692 = vmatpush1.msra.mxu0 0.0
        %693 = vmatprep.subr.mxu0 0.0
        %694 = vmatpush1.msra.mxu0 0.0
        %695 = vmatprep.subr.mxu0 0.0
        %696 = vmatpush1.msra.mxu0 0.0
        %697 = vmatprep.subr.mxu0 0.0
        %698 = vmatpush1.msra.mxu0 0.0
        %699 = vmatprep.subr.mxu0 0.0
        %700 = vmatpush1.msra.mxu0 0.0
        %701 = vmatprep.subr.mxu0 0.0
        %702 = vmatpush1.msra.mxu0 0.0
        %703 = vmatprep.subr.mxu0 0.0
        %704 = vmatpush1.msra.mxu0 0.0
        %705 = vmatprep.subr.mxu0 0.0
        %706 = vmatpush1.msra.mxu0 0.0
        %707 = vmatprep.subr.mxu0 0.0
        %708 = vmatpush1.msra.mxu0 0.0
        %709 = vmatprep.subr.mxu0 0.0
        %710 = vmatpush1.msra.mxu0 0.0
        %711 = vmatprep.subr.mxu0 0.0
        %712 = vmatpush1.msra.mxu0 0.0
        %713 = vmatprep.subr.mxu0 0.0
        %714 = vmatpush1.msra.mxu0 0.0
        %715 = vmatprep.subr.mxu0 0.0
        %716 = vmatpush1.msra.mxu0 0.0
        %717 = vmatprep.subr.mxu0 0.0
        %718 = vmatpush1.msra.mxu0 0.0
        %719 = vmatprep.subr.mxu0 0.0
        %720 = vmatpush1.msra.mxu0 0.0
        %721 = vmatprep.subr.mxu0 0.0
        %722 = vmatpush1.msra.mxu0 0.0
        %723 = vmatprep.subr.mxu0 0.0
        %724 = vmatpush1.msra.mxu0 0.0
        %725 = vmatprep.subr.mxu0 0.0
        %726 = vmatpush1.msra.mxu0 0.0
        %727 = vmatprep.subr.mxu0 0.0
        %728 = vmatpush1.msra.mxu0 0.0
        %729 = vmatprep.subr.mxu0 0.0
        %730 = vmatpush1.msra.mxu0 0.0
        %731 = vmatprep.subr.mxu0 0.0
        %732 = vmatpush1.msra.mxu0 0.0
        %733 = vmatprep.subr.mxu0 0.0
        %734 = vmatpush1.msra.mxu0 0.0
        %735 = vmatprep.subr.mxu0 0.0
        %736 = vmatpush1.msra.mxu0 0.0
        %737 = vmatprep.subr.mxu0 0.0
        %738 = vmatpush1.msra.mxu0 0.0
        %739 = vmatprep.subr.mxu0 0.0
        %740 = vmatpush1.msra.mxu0 0.0
        %741 = vmatprep.subr.mxu0 0.0
        %742 = vmatpush1.msra.mxu0 0.0
        %743 = vmatprep.mubr.f32.mxu0 0.0
        %744 = vmatmul.mubr.f32.gmra.mrb[0].mxu0 %v656
        %v745 = vpop.f32.mrb[0].mxu0
        %v746 = vadd.f32 %v614, %v745
        %v747 = vpop.f32.mrb[0].mxu0
        %748 = vmatprep.mubr.f32.mxu0 0.0
        %749 = vmatmul.mubr.f32.gmra.mrb[0].mxu0 %v659
        %v750 = vpop.f32.mrb[0].mxu0
        %v751 = vadd.f32 %v615, %v750
        %v752 = vpop.f32.mrb[0].mxu0
        %753 = vmatprep.mubr.f32.mxu0 0.0
        %754 = vmatmul.mubr.f32.gmra.mrb[0].mxu0 %v662
        %v755 = vpop.f32.mrb[0].mxu0
        %v756 = vadd.f32 %v616, %v755
        %v757 = vpop.f32.mrb[0].mxu0
        %758 = vmatprep.mubr.f32.mxu0 0.0
        %759 = vmatmul.mubr.f32.gmra.mrb[0].mxu0 %v665
        %v760 = vpop.f32.mrb[0].mxu0
        %v761 = vadd.f32 %v617, %v760
        %v762 = vpop.f32.mrb[0].mxu0
        %763 = vmatprep.mubr.f32.mxu0 0.0
        %764 = vmatmul.mubr.f32.gmra.mrb[0].mxu0 %v668
        %v765 = vpop.f32.mrb[0].mxu0
        %v766 = vadd.f32 %v618, %v765
        %v767 = vpop.f32.mrb[0].mxu0
        %768 = vmatprep.mubr.f32.mxu0 0.0
        %769 = vmatmul.mubr.f32.gmra.mrb[0].mxu0 %v671
        %v770 = vpop.f32.mrb[0].mxu0
        %v771 = vadd.f32 %v619, %v770
        %v772 = vpop.f32.mrb[0].mxu0
        %773 = vmatprep.mubr.f32.mxu0 0.0
        %774 = vmatmul.mubr.f32.gmra.mrb[0].mxu0 %v674
        %v775 = vpop.f32.mrb[0].mxu0
        %v776 = vadd.f32 %v620, %v775
        %v777 = vpop.f32.mrb[0].mxu0
        %778 = vmatprep.mubr.f32.mxu0 0.0
        %779 = vmatmul.mubr.f32.gmra.mrb[0].mxu0 %v677
        %v780 = vpop.f32.mrb[0].mxu0
        %v781 = vadd.f32 %v621, %v780
        %v782 = vpop.f32.mrb[0].mxu0
        %783 = vdwg.mxu0
        %vm784 = vcmask 261120
        %785 = vst.msk [vmem:[#allocation2] sm:$0xff] %vm784, %v746
        %786 = vst.msk [vmem:[#allocation2 + $0x8] sm:$0xff] %vm784, %v751
        %787 = vst.msk [vmem:[#allocation2 + $0x10] sm:$0xff] %vm784, %v756
        %788 = vst.msk [vmem:[#allocation2 + $0x18] sm:$0xff] %vm784, %v761
        %789 = vst.msk [vmem:[#allocation2 + $0x20] sm:$0xff] %vm784, %v766
        %790 = vst.msk [vmem:[#allocation2 + $0x28] sm:$0xff] %vm784, %v771
        %791 = vst.msk [vmem:[#allocation2 + $0x30] sm:$0xff] %vm784, %v776
        %792 = vst.msk [vmem:[#allocation2 + $0x38] sm:$0xff] %vm784, %v781
        %s793 = smul.u32 %s31, 128
        %s794 = sld [smem:[#allocation3 + %s793]]
        %v795 = vstv %s794
        %vm796 = vcmask 253952
        %797 = vst.msk [vmem:[#allocation2 + $0x40] sm:$0x1] %vm796, %v795
        %s798 = sadd.s32 %s793, 1
        %s799 = sld [smem:[#allocation3 + %s798]]
        %v800 = vstv %s799
        %801 = vst.msk [vmem:[#allocation2 + $0x41] sm:$0x1] %vm796, %v800
        %s802 = sadd.s32 %s793, 2
        %s803 = sld [smem:[#allocation3 + %s802]]
        %v804 = vstv %s803
        %805 = vst.msk [vmem:[#allocation2 + $0x42] sm:$0x1] %vm796, %v804
        %s806 = sadd.s32 %s793, 3
        %s807 = sld [smem:[#allocation3 + %s806]]
        %v808 = vstv %s807
        %809 = vst.msk [vmem:[#allocation2 + $0x43] sm:$0x1] %vm796, %v808
        %v810 = vld [vmem:[%s4 + $0x80] sm:$0x1]
        %811 = vst.msk [vmem:[#allocation2 + $0x44] sm:$0x1] %vm796, %v810
        %812 = vst.msk [vmem:[#allocation2 + $0x45] sm:$0x1] %vm796, %v810
        %813 = vst.msk [vmem:[#allocation2 + $0x46] sm:$0x1] %vm796, %v810
        %814 = vst.msk [vmem:[#allocation2 + $0x47] sm:$0x1] %vm796, %v810
        %v815 = vld [vmem:[#allocation2] sm:$0xff]
        %v816 = vld [vmem:[#allocation2 + $0x8] sm:$0xff]
        %v817 = vld [vmem:[#allocation2 + $0x10] sm:$0xff]
        %v818 = vld [vmem:[#allocation2 + $0x18] sm:$0xff]
        %v819 = vld [vmem:[#allocation2 + $0x20] sm:$0xff]
        %v820 = vld [vmem:[#allocation2 + $0x28] sm:$0xff]
        %v821 = vld [vmem:[#allocation2 + $0x30] sm:$0xff]
        %v822 = vld [vmem:[#allocation2 + $0x38] sm:$0xff]
        %v823 = vld [vmem:[#allocation2 + $0x40] sm:$0xff]
        %v824 = vlaneseq
        %v825 = vand.u32 %v824, 127
        %v826 = vld [vmem:[%s5] sm:$0x1]
        %v827 = vld [vmem:[%s6] sm:$0x1]
        %v828 = vsel %vm784, %v815, 0.0
        %829 = vadd.xlane.f32.xlu0 %v828
        %v830 = vpop.xlane.xlu0 %829
        %v831 = vsel %vm784, %v816, 0.0
        %832 = vadd.xlane.f32.xlu0 %v831
        %v833 = vpop.xlane.xlu0 %832
        %v834 = vsel %vm784, %v817, 0.0
        %835 = vadd.xlane.f32.xlu0 %v834
        %v836 = vpop.xlane.xlu0 %835
        %v837 = vsel %vm784, %v818, 0.0
        %838 = vadd.xlane.f32.xlu0 %v837
        %v839 = vpop.xlane.xlu0 %838
        %v840 = vsel %vm784, %v819, 0.0
        %841 = vadd.xlane.f32.xlu0 %v840
        %v842 = vpop.xlane.xlu0 %841
        %v843 = vsel %vm784, %v820, 0.0
        %844 = vadd.xlane.f32.xlu0 %v843
        %v845 = vpop.xlane.xlu0 %844
        %v846 = vsel %vm784, %v821, 0.0
        %847 = vadd.xlane.f32.xlu0 %v846
        %v848 = vpop.xlane.xlu0 %847
        %v849 = vsel %vm784, %v822, 0.0
        %850 = vadd.xlane.f32.xlu0 %v849
        %v851 = vpop.xlane.xlu0 %850
        %v852 = vsel %vm784, %v823, 0.0
        %853 = vadd.xlane.f32.xlu0 %v852
        %v854 = vpop.xlane.xlu0 %853
        %v855 = vrcp.pop 32.0
        %v856 = vmul.f32 %v830, %v855
        %v857 = vmul.f32 %v833, %v855
        %v858 = vmul.f32 %v836, %v855
        %v859 = vmul.f32 %v839, %v855
        %v860 = vmul.f32 %v842, %v855
        %v861 = vmul.f32 %v845, %v855
        %v862 = vmul.f32 %v848, %v855
        %v863 = vmul.f32 %v851, %v855
        %v864 = vmul.f32 %v854, %v855
        %v865 = vsub.f32 %v815, %v856
        %v866 = vsub.f32 %v816, %v857
        %v867 = vsub.f32 %v817, %v858
        %v868 = vsub.f32 %v818, %v859
        %v869 = vsub.f32 %v819, %v860
        %v870 = vsub.f32 %v820, %v861
        %v871 = vsub.f32 %v821, %v862
        %v872 = vsub.f32 %v822, %v863
        %v873 = vsub.f32 %v823, %v864
        %v874 = vmul.f32 %v865, %v865
        %v875 = vmul.f32 %v866, %v866
        %v876 = vmul.f32 %v867, %v867
        %v877 = vmul.f32 %v868, %v868
        %v878 = vmul.f32 %v869, %v869
        %v879 = vmul.f32 %v870, %v870
        %v880 = vmul.f32 %v871, %v871
        %v881 = vmul.f32 %v872, %v872
        %v882 = vmul.f32 %v873, %v873
        %v883 = vsel %vm784, %v874, 0.0
        %884 = vadd.xlane.f32.xlu0 %v883
        %v885 = vpop.xlane.xlu0 %884
        %v886 = vsel %vm784, %v875, 0.0
        %887 = vadd.xlane.f32.xlu0 %v886
        %v888 = vpop.xlane.xlu0 %887
        %v889 = vsel %vm784, %v876, 0.0
        %890 = vadd.xlane.f32.xlu0 %v889
        %v891 = vpop.xlane.xlu0 %890
        %v892 = vsel %vm784, %v877, 0.0
        %893 = vadd.xlane.f32.xlu0 %v892
        %v894 = vpop.xlane.xlu0 %893
        %v895 = vsel %vm784, %v878, 0.0
        %896 = vadd.xlane.f32.xlu0 %v895
        %v897 = vpop.xlane.xlu0 %896
        %v898 = vsel %vm784, %v879, 0.0
        %899 = vadd.xlane.f32.xlu0 %v898
        %v900 = vpop.xlane.xlu0 %899
        %v901 = vsel %vm784, %v880, 0.0
        %902 = vadd.xlane.f32.xlu0 %v901
        %v903 = vpop.xlane.xlu0 %902
        %v904 = vsel %vm784, %v881, 0.0
        %905 = vadd.xlane.f32.xlu0 %v904
        %v906 = vpop.xlane.xlu0 %905
        %v907 = vsel %vm784, %v882, 0.0
        %908 = vadd.xlane.f32.xlu0 %v907
        %v909 = vpop.xlane.xlu0 %908
        %v910 = vmul.f32 %v885, %v855
        %v911 = vmul.f32 %v888, %v855
        %v912 = vmul.f32 %v891, %v855
        %v913 = vmul.f32 %v894, %v855
        %v914 = vmul.f32 %v897, %v855
        %v915 = vmul.f32 %v900, %v855
        %v916 = vmul.f32 %v903, %v855
        %v917 = vmul.f32 %v906, %v855
        %v918 = vmul.f32 %v909, %v855
        %v919 = vadd.f32 %v910, 1e-05
        %v920 = vadd.f32 %v911, 1e-05
        %v921 = vadd.f32 %v912, 1e-05
        %v922 = vadd.f32 %v913, 1e-05
        %v923 = vadd.f32 %v914, 1e-05
        %v924 = vadd.f32 %v915, 1e-05
        %v925 = vadd.f32 %v916, 1e-05
        %v926 = vadd.f32 %v917, 1e-05
        %v927 = vadd.f32 %v918, 1e-05
        %v928 = vrsqrt.pop %v919
        %v929 = vrsqrt.pop %v920
        %v930 = vrsqrt.pop %v921
        %v931 = vrsqrt.pop %v922
        %v932 = vrsqrt.pop %v923
        %v933 = vrsqrt.pop %v924
        %v934 = vrsqrt.pop %v925
        %v935 = vrsqrt.pop %v926
        %v936 = vrsqrt.pop %v927
        %v937 = vmul.f32 %v865, %v928
        %v938 = vmul.f32 %v866, %v929
        %v939 = vmul.f32 %v867, %v930
        %v940 = vmul.f32 %v868, %v931
        %v941 = vmul.f32 %v869, %v932
        %v942 = vmul.f32 %v870, %v933
        %v943 = vmul.f32 %v871, %v934
        %v944 = vmul.f32 %v872, %v935
        %v945 = vmul.f32 %v873, %v936
        %v947 = vlaneseq
        %v948 = vshrl.u32 %v947, 7
        %v949 = vsub.s32 0, %v948
        %v950 = vrot.slane %v826, %v949
        %v952 = vmul.f32 %v937, %v950
        %v953 = vmul.f32 %v938, %v950
        %v954 = vmul.f32 %v939, %v950
        %v955 = vmul.f32 %v940, %v950
        %v956 = vmul.f32 %v941, %v950
        %v957 = vmul.f32 %v942, %v950
        %v958 = vmul.f32 %v943, %v950
        %v959 = vmul.f32 %v944, %v950
        %v960 = vmul.f32 %v945, %v950
        %v962 = vlaneseq
        %v963 = vshrl.u32 %v962, 7
        %v964 = vsub.s32 0, %v963
        %v965 = vrot.slane %v827, %v964
        %v967 = vadd.f32 %v952, %v965
        %v968 = vadd.f32 %v953, %v965
        %v969 = vadd.f32 %v954, %v965
        %v970 = vadd.f32 %v955, %v965
        %v971 = vadd.f32 %v956, %v965
        %v972 = vadd.f32 %v957, %v965
        %v973 = vadd.f32 %v958, %v965
        %v974 = vadd.f32 %v959, %v965
        %v975 = vadd.f32 %v960, %v965
        %v976 = vld [vmem:[%s7] sm:$0xff]
        %v977 = vld [vmem:[%s7 + $0x8] sm:$0xff]
        %v978 = vld [vmem:[%s7 + $0x10] sm:$0xff]
        %v979 = vld [vmem:[%s7 + $0x18] sm:$0xff]
        %v980 = vld [vmem:[%s8] sm:$0x1]
        %v982 = vlaneseq
        %v983 = vshrl.u32 %v982, 7
        %v984 = vsub.s32 0, %v983
        %v985 = vrot.slane %v980, %v984
        %v988 = vsel %vm784, %v967, 0
        %v991 = vsel %vm784, %v968, 0
        %v994 = vsel %vm784, %v969, 0
        %v997 = vsel %vm784, %v970, 0
        %v1000 = vsel %vm784, %v971, 0
        %v1003 = vsel %vm784, %v972, 0
        %v1006 = vsel %vm784, %v973, 0
        %v1009 = vsel %vm784, %v974, 0
        %v1012 = vsel %vm784, %v975, 0
        %v1015 = vsel %vm784, %v976, 0
        %v1018 = vsel %vm784, %v977, 0
        %v1021 = vsel %vm784, %v978, 0
        %v1024 = vsel %vm784, %v979, 0
        %1026 = vmatprep.subr.mxu0 0.0
        %1027 = vmatpush1.xpose.msra.mxu0 %v1015
        %1028 = vmatprep.subr.mxu0 0.0
        %1029 = vmatpush1.xpose.msra.mxu0 %v1018
        %1030 = vmatprep.subr.mxu0 0.0
        %1031 = vmatpush1.xpose.msra.mxu0 %v1021
        %1032 = vmatprep.subr.mxu0 0.0
        %1033 = vmatpush1.xpose.msra.mxu0 %v1024
        %1034 = vmatprep.subr.mxu0 0.0
        %1035 = vmatpush1.xpose.msra.mxu0 0.0
        %1036 = vmatprep.subr.mxu0 0.0
        %1037 = vmatpush1.xpose.msra.mxu0 0.0
        %1038 = vmatprep.subr.mxu0 0.0
        %1039 = vmatpush1.xpose.msra.mxu0 0.0
        %1040 = vmatprep.subr.mxu0 0.0
        %1041 = vmatpush1.xpose.msra.mxu0 0.0
        %1042 = vmatprep.subr.mxu0 0.0
        %1043 = vmatpush1.xpose.msra.mxu0 0.0
        %1044 = vmatprep.subr.mxu0 0.0
        %1045 = vmatpush1.xpose.msra.mxu0 0.0
        %1046 = vmatprep.subr.mxu0 0.0
        %1047 = vmatpush1.xpose.msra.mxu0 0.0
        %1048 = vmatprep.subr.mxu0 0.0
        %1049 = vmatpush1.xpose.msra.mxu0 0.0
        %1050 = vmatprep.subr.mxu0 0.0
        %1051 = vmatpush1.xpose.msra.mxu0 0.0
        %1052 = vmatprep.subr.mxu0 0.0
        %1053 = vmatpush1.xpose.msra.mxu0 0.0
        %1054 = vmatprep.subr.mxu0 0.0
        %1055 = vmatpush1.xpose.msra.mxu0 0.0
        %1056 = vmatprep.subr.mxu0 0.0
        %1057 = vmatpush1.xpose.msra.mxu0 0.0
        %1058 = vmatprep.subr.mxu0 0.0
        %1059 = vmatpush1.xpose.msra.mxu0 0.0
        %1060 = vmatprep.subr.mxu0 0.0
        %1061 = vmatpush1.xpose.msra.mxu0 0.0
        %1062 = vmatprep.subr.mxu0 0.0
        %1063 = vmatpush1.xpose.msra.mxu0 0.0
        %1064 = vmatprep.subr.mxu0 0.0
        %1065 = vmatpush1.xpose.msra.mxu0 0.0
        %1066 = vmatprep.subr.mxu0 0.0
        %1067 = vmatpush1.xpose.msra.mxu0 0.0
        %1068 = vmatprep.subr.mxu0 0.0
        %1069 = vmatpush1.xpose.msra.mxu0 0.0
        %1070 = vmatprep.subr.mxu0 0.0
        %1071 = vmatpush1.xpose.msra.mxu0 0.0
        %1072 = vmatprep.subr.mxu0 0.0
        %1073 = vmatpush1.xpose.msra.mxu0 0.0
        %1074 = vmatprep.subr.mxu0 0.0
        %1075 = vmatpush1.xpose.msra.mxu0 0.0
        %1076 = vmatprep.subr.mxu0 0.0
        %1077 = vmatpush1.xpose.msra.mxu0 0.0
        %1078 = vmatprep.subr.mxu0 0.0
        %1079 = vmatpush1.xpose.msra.mxu0 0.0
        %1080 = vmatprep.subr.mxu0 0.0
        %1081 = vmatpush1.xpose.msra.mxu0 0.0
        %1082 = vmatprep.subr.mxu0 0.0
        %1083 = vmatpush1.xpose.msra.mxu0 0.0
        %1084 = vmatprep.subr.mxu0 0.0
        %1085 = vmatpush1.xpose.msra.mxu0 0.0
        %1086 = vmatprep.subr.mxu0 0.0
        %1087 = vmatpush1.xpose.msra.mxu0 0.0
        %1088 = vmatprep.subr.mxu0 0.0
        %1089 = vmatpush1.xpose.msra.mxu0 0.0
        %1090 = vmatprep.mubr.f32.mxu0 0.0
        %1091 = vmatmul.mubr.f32.gmra.mrb[0].mxu0 %v988
        %v1092 = vpop.f32.mrb[0].mxu0
        %v1093 = vadd.f32 %v985, %v1092
        %v1094 = vpop.f32.mrb[0].mxu0
        %1095 = vmatprep.mubr.f32.mxu0 0.0
        %1096 = vmatmul.mubr.f32.gmra.mrb[0].mxu0 %v991
        %v1097 = vpop.f32.mrb[0].mxu0
        %v1098 = vadd.f32 %v985, %v1097
        %v1099 = vpop.f32.mrb[0].mxu0
        %1100 = vmatprep.mubr.f32.mxu0 0.0
        %1101 = vmatmul.mubr.f32.gmra.mrb[0].mxu0 %v994
        %v1102 = vpop.f32.mrb[0].mxu0
        %v1103 = vadd.f32 %v985, %v1102
        %v1104 = vpop.f32.mrb[0].mxu0
        %1105 = vmatprep.mubr.f32.mxu0 0.0
        %1106 = vmatmul.mubr.f32.gmra.mrb[0].mxu0 %v997
        %v1107 = vpop.f32.mrb[0].mxu0
        %v1108 = vadd.f32 %v985, %v1107
        %v1109 = vpop.f32.mrb[0].mxu0
        %1110 = vmatprep.mubr.f32.mxu0 0.0
        %1111 = vmatmul.mubr.f32.gmra.mrb[0].mxu0 %v1000
        %v1112 = vpop.f32.mrb[0].mxu0
        %v1113 = vadd.f32 %v985, %v1112
        %v1114 = vpop.f32.mrb[0].mxu0
        %1115 = vmatprep.mubr.f32.mxu0 0.0
        %1116 = vmatmul.mubr.f32.gmra.mrb[0].mxu0 %v1003
        %v1117 = vpop.f32.mrb[0].mxu0
        %v1118 = vadd.f32 %v985, %v1117
        %v1119 = vpop.f32.mrb[0].mxu0
        %1120 = vmatprep.mubr.f32.mxu0 0.0
        %1121 = vmatmul.mubr.f32.gmra.mrb[0].mxu0 %v1006
        %v1122 = vpop.f32.mrb[0].mxu0
        %v1123 = vadd.f32 %v985, %v1122
        %v1124 = vpop.f32.mrb[0].mxu0
        %1125 = vmatprep.mubr.f32.mxu0 0.0
        %1126 = vmatmul.mubr.f32.gmra.mrb[0].mxu0 %v1009
        %v1127 = vpop.f32.mrb[0].mxu0
        %v1128 = vadd.f32 %v985, %v1127
        %v1129 = vpop.f32.mrb[0].mxu0
        %1130 = vmatprep.mubr.f32.mxu0 0.0
        %1131 = vmatmul.mubr.f32.gmra.mrb[0].mxu0 %v1012
        %v1132 = vpop.f32.mrb[0].mxu0
        %v1133 = vadd.f32 %v985, %v1132
        %v1134 = vpop.f32.mrb[0].mxu0
        %1135 = vdwg.mxu0
        %s1136 = scalar_lea.vmem %s7, 32
        %v1137 = vld [vmem:[%s1136] sm:$0xff]
        %v1138 = vld [vmem:[%s1136 + $0x8] sm:$0xff]
        %v1139 = vld [vmem:[%s1136 + $0x10] sm:$0xff]
        %v1140 = vld [vmem:[%s1136 + $0x18] sm:$0xff]
        %s1141 = scalar_lea.vmem %s8, 1
        %v1142 = vld [vmem:[%s1141] sm:$0x1]
        %v1144 = vlaneseq
        %v1145 = vshrl.u32 %v1144, 7
        %v1146 = vsub.s32 0, %v1145
        %v1147 = vrot.slane %v1142, %v1146
        %v1150 = vsel %vm784, %v1137, 0
        %v1153 = vsel %vm784, %v1138, 0
        %v1156 = vsel %vm784, %v1139, 0
        %v1159 = vsel %vm784, %v1140, 0
        %1161 = vmatprep.subr.mxu0 0.0
        %1162 = vmatpush1.xpose.msra.mxu0 %v1150
        %1163 = vmatprep.subr.mxu0 0.0
        %1164 = vmatpush1.xpose.msra.mxu0 %v1153
        %1165 = vmatprep.subr.mxu0 0.0
        %1166 = vmatpush1.xpose.msra.mxu0 %v1156
        %1167 = vmatprep.subr.mxu0 0.0
        %1168 = vmatpush1.xpose.msra.mxu0 %v1159
        %1169 = vmatprep.subr.mxu0 0.0
        %1170 = vmatpush1.xpose.msra.mxu0 0.0
        %1171 = vmatprep.subr.mxu0 0.0
        %1172 = vmatpush1.xpose.msra.mxu0 0.0
        %1173 = vmatprep.subr.mxu0 0.0
        %1174 = vmatpush1.xpose.msra.mxu0 0.0
        %1175 = vmatprep.subr.mxu0 0.0
        %1176 = vmatpush1.xpose.msra.mxu0 0.0
        %1177 = vmatprep.subr.mxu0 0.0
        %1178 = vmatpush1.xpose.msra.mxu0 0.0
        %1179 = vmatprep.subr.mxu0 0.0
        %1180 = vmatpush1.xpose.msra.mxu0 0.0
        %1181 = vmatprep.subr.mxu0 0.0
        %1182 = vmatpush1.xpose.msra.mxu0 0.0
        %1183 = vmatprep.subr.mxu0 0.0
        %1184 = vmatpush1.xpose.msra.mxu0 0.0
        %1185 = vmatprep.subr.mxu0 0.0
        %1186 = vmatpush1.xpose.msra.mxu0 0.0
        %1187 = vmatprep.subr.mxu0 0.0
        %1188 = vmatpush1.xpose.msra.mxu0 0.0
        %1189 = vmatprep.subr.mxu0 0.0
        %1190 = vmatpush1.xpose.msra.mxu0 0.0
        %1191 = vmatprep.subr.mxu0 0.0
        %1192 = vmatpush1.xpose.msra.mxu0 0.0
        %1193 = vmatprep.subr.mxu0 0.0
        %1194 = vmatpush1.xpose.msra.mxu0 0.0
        %1195 = vmatprep.subr.mxu0 0.0
        %1196 = vmatpush1.xpose.msra.mxu0 0.0
        %1197 = vmatprep.subr.mxu0 0.0
        %1198 = vmatpush1.xpose.msra.mxu0 0.0
        %1199 = vmatprep.subr.mxu0 0.0
        %1200 = vmatpush1.xpose.msra.mxu0 0.0
        %1201 = vmatprep.subr.mxu0 0.0
        %1202 = vmatpush1.xpose.msra.mxu0 0.0
        %1203 = vmatprep.subr.mxu0 0.0
        %1204 = vmatpush1.xpose.msra.mxu0 0.0
        %1205 = vmatprep.subr.mxu0 0.0
        %1206 = vmatpush1.xpose.msra.mxu0 0.0
        %1207 = vmatprep.subr.mxu0 0.0
        %1208 = vmatpush1.xpose.msra.mxu0 0.0
        %1209 = vmatprep.subr.mxu0 0.0
        %1210 = vmatpush1.xpose.msra.mxu0 0.0
        %1211 = vmatprep.subr.mxu0 0.0
        %1212 = vmatpush1.xpose.msra.mxu0 0.0
        %1213 = vmatprep.subr.mxu0 0.0
        %1214 = vmatpush1.xpose.msra.mxu0 0.0
        %1215 = vmatprep.subr.mxu0 0.0
        %1216 = vmatpush1.xpose.msra.mxu0 0.0
        %1217 = vmatprep.subr.mxu0 0.0
        %1218 = vmatpush1.xpose.msra.mxu0 0.0
        %1219 = vmatprep.subr.mxu0 0.0
        %1220 = vmatpush1.xpose.msra.mxu0 0.0
        %1221 = vmatprep.subr.mxu0 0.0
        %1222 = vmatpush1.xpose.msra.mxu0 0.0
        %1223 = vmatprep.subr.mxu0 0.0
        %1224 = vmatpush1.xpose.msra.mxu0 0.0
        %1225 = vmatprep.mubr.f32.mxu0 0.0
        %1226 = vmatmul.mubr.f32.gmra.mrb[0].mxu0 %v988
        %v1227 = vpop.f32.mrb[0].mxu0
        %v1228 = vadd.f32 %v1147, %v1227
        %v1229 = vpop.f32.mrb[0].mxu0
        %1230 = vmatprep.mubr.f32.mxu0 0.0
        %1231 = vmatmul.mubr.f32.gmra.mrb[0].mxu0 %v991
        %v1232 = vpop.f32.mrb[0].mxu0
        %v1233 = vadd.f32 %v1147, %v1232
        %v1234 = vpop.f32.mrb[0].mxu0
        %1235 = vmatprep.mubr.f32.mxu0 0.0
        %1236 = vmatmul.mubr.f32.gmra.mrb[0].mxu0 %v994
        %v1237 = vpop.f32.mrb[0].mxu0
        %v1238 = vadd.f32 %v1147, %v1237
        %v1239 = vpop.f32.mrb[0].mxu0
        %1240 = vmatprep.mubr.f32.mxu0 0.0
        %1241 = vmatmul.mubr.f32.gmra.mrb[0].mxu0 %v997
        %v1242 = vpop.f32.mrb[0].mxu0
        %v1243 = vadd.f32 %v1147, %v1242
        %v1244 = vpop.f32.mrb[0].mxu0
        %1245 = vmatprep.mubr.f32.mxu0 0.0
        %1246 = vmatmul.mubr.f32.gmra.mrb[0].mxu0 %v1000
        %v1247 = vpop.f32.mrb[0].mxu0
        %v1248 = vadd.f32 %v1147, %v1247
        %v1249 = vpop.f32.mrb[0].mxu0
        %1250 = vmatprep.mubr.f32.mxu0 0.0
        %1251 = vmatmul.mubr.f32.gmra.mrb[0].mxu0 %v1003
        %v1252 = vpop.f32.mrb[0].mxu0
        %v1253 = vadd.f32 %v1147, %v1252
        %v1254 = vpop.f32.mrb[0].mxu0
        %1255 = vmatprep.mubr.f32.mxu0 0.0
        %1256 = vmatmul.mubr.f32.gmra.mrb[0].mxu0 %v1006
        %v1257 = vpop.f32.mrb[0].mxu0
        %v1258 = vadd.f32 %v1147, %v1257
        %v1259 = vpop.f32.mrb[0].mxu0
        %1260 = vmatprep.mubr.f32.mxu0 0.0
        %1261 = vmatmul.mubr.f32.gmra.mrb[0].mxu0 %v1009
        %v1262 = vpop.f32.mrb[0].mxu0
        %v1263 = vadd.f32 %v1147, %v1262
        %v1264 = vpop.f32.mrb[0].mxu0
        %1265 = vmatprep.mubr.f32.mxu0 0.0
        %1266 = vmatmul.mubr.f32.gmra.mrb[0].mxu0 %v1012
        %v1267 = vpop.f32.mrb[0].mxu0
        %v1268 = vadd.f32 %v1147, %v1267
        %v1269 = vpop.f32.mrb[0].mxu0
        %1270 = vdwg.mxu0
        %s1271 = scalar_lea.vmem %s7, 64
        %v1272 = vld [vmem:[%s1271] sm:$0xff]
        %v1273 = vld [vmem:[%s1271 + $0x8] sm:$0xff]
        %v1274 = vld [vmem:[%s1271 + $0x10] sm:$0xff]
        %v1275 = vld [vmem:[%s1271 + $0x18] sm:$0xff]
        %s1276 = scalar_lea.vmem %s8, 2
        %v1277 = vld [vmem:[%s1276] sm:$0x1]
        %v1279 = vlaneseq
        %v1280 = vshrl.u32 %v1279, 7
        %v1281 = vsub.s32 0, %v1280
        %v1282 = vrot.slane %v1277, %v1281
        %v1285 = vsel %vm784, %v1272, 0
        %v1288 = vsel %vm784, %v1273, 0
        %v1291 = vsel %vm784, %v1274, 0
        %v1294 = vsel %vm784, %v1275, 0
        %1296 = vmatprep.subr.mxu0 0.0
        %1297 = vmatpush1.xpose.msra.mxu0 %v1285
        %1298 = vmatprep.subr.mxu0 0.0
        %1299 = vmatpush1.xpose.msra.mxu0 %v1288
        %1300 = vmatprep.subr.mxu0 0.0
        %1301 = vmatpush1.xpose.msra.mxu0 %v1291
        %1302 = vmatprep.subr.mxu0 0.0
        %1303 = vmatpush1.xpose.msra.mxu0 %v1294
        %1304 = vmatprep.subr.mxu0 0.0
        %1305 = vmatpush1.xpose.msra.mxu0 0.0
        %1306 = vmatprep.subr.mxu0 0.0
        %1307 = vmatpush1.xpose.msra.mxu0 0.0
        %1308 = vmatprep.subr.mxu0 0.0
        %1309 = vmatpush1.xpose.msra.mxu0 0.0
        %1310 = vmatprep.subr.mxu0 0.0
        %1311 = vmatpush1.xpose.msra.mxu0 0.0
        %1312 = vmatprep.subr.mxu0 0.0
        %1313 = vmatpush1.xpose.msra.mxu0 0.0
        %1314 = vmatprep.subr.mxu0 0.0
        %1315 = vmatpush1.xpose.msra.mxu0 0.0
        %1316 = vmatprep.subr.mxu0 0.0
        %1317 = vmatpush1.xpose.msra.mxu0 0.0
        %1318 = vmatprep.subr.mxu0 0.0
        %1319 = vmatpush1.xpose.msra.mxu0 0.0
        %1320 = vmatprep.subr.mxu0 0.0
        %1321 = vmatpush1.xpose.msra.mxu0 0.0
        %1322 = vmatprep.subr.mxu0 0.0
        %1323 = vmatpush1.xpose.msra.mxu0 0.0
        %1324 = vmatprep.subr.mxu0 0.0
        %1325 = vmatpush1.xpose.msra.mxu0 0.0
        %1326 = vmatprep.subr.mxu0 0.0
        %1327 = vmatpush1.xpose.msra.mxu0 0.0
        %1328 = vmatprep.subr.mxu0 0.0
        %1329 = vmatpush1.xpose.msra.mxu0 0.0
        %1330 = vmatprep.subr.mxu0 0.0
        %1331 = vmatpush1.xpose.msra.mxu0 0.0
        %1332 = vmatprep.subr.mxu0 0.0
        %1333 = vmatpush1.xpose.msra.mxu0 0.0
        %1334 = vmatprep.subr.mxu0 0.0
        %1335 = vmatpush1.xpose.msra.mxu0 0.0
        %1336 = vmatprep.subr.mxu0 0.0
        %1337 = vmatpush1.xpose.msra.mxu0 0.0
        %1338 = vmatprep.subr.mxu0 0.0
        %1339 = vmatpush1.xpose.msra.mxu0 0.0
        %1340 = vmatprep.subr.mxu0 0.0
        %1341 = vmatpush1.xpose.msra.mxu0 0.0
        %1342 = vmatprep.subr.mxu0 0.0
        %1343 = vmatpush1.xpose.msra.mxu0 0.0
        %1344 = vmatprep.subr.mxu0 0.0
        %1345 = vmatpush1.xpose.msra.mxu0 0.0
        %1346 = vmatprep.subr.mxu0 0.0
        %1347 = vmatpush1.xpose.msra.mxu0 0.0
        %1348 = vmatprep.subr.mxu0 0.0
        %1349 = vmatpush1.xpose.msra.mxu0 0.0
        %1350 = vmatprep.subr.mxu0 0.0
        %1351 = vmatpush1.xpose.msra.mxu0 0.0
        %1352 = vmatprep.subr.mxu0 0.0
        %1353 = vmatpush1.xpose.msra.mxu0 0.0
        %1354 = vmatprep.subr.mxu0 0.0
        %1355 = vmatpush1.xpose.msra.mxu0 0.0
        %1356 = vmatprep.subr.mxu0 0.0
        %1357 = vmatpush1.xpose.msra.mxu0 0.0
        %1358 = vmatprep.subr.mxu0 0.0
        %1359 = vmatpush1.xpose.msra.mxu0 0.0
        %1360 = vmatprep.mubr.f32.mxu0 0.0
        %1361 = vmatmul.mubr.f32.gmra.mrb[0].mxu0 %v988
        %v1362 = vpop.f32.mrb[0].mxu0
        %v1363 = vadd.f32 %v1282, %v1362
        %v1364 = vpop.f32.mrb[0].mxu0
        %1365 = vmatprep.mubr.f32.mxu0 0.0
        %1366 = vmatmul.mubr.f32.gmra.mrb[0].mxu0 %v991
        %v1367 = vpop.f32.mrb[0].mxu0
        %v1368 = vadd.f32 %v1282, %v1367
        %v1369 = vpop.f32.mrb[0].mxu0
        %1370 = vmatprep.mubr.f32.mxu0 0.0
        %1371 = vmatmul.mubr.f32.gmra.mrb[0].mxu0 %v994
        %v1372 = vpop.f32.mrb[0].mxu0
        %v1373 = vadd.f32 %v1282, %v1372
        %v1374 = vpop.f32.mrb[0].mxu0
        %1375 = vmatprep.mubr.f32.mxu0 0.0
        %1376 = vmatmul.mubr.f32.gmra.mrb[0].mxu0 %v997
        %v1377 = vpop.f32.mrb[0].mxu0
        %v1378 = vadd.f32 %v1282, %v1377
        %v1379 = vpop.f32.mrb[0].mxu0
        %1380 = vmatprep.mubr.f32.mxu0 0.0
        %1381 = vmatmul.mubr.f32.gmra.mrb[0].mxu0 %v1000
        %v1382 = vpop.f32.mrb[0].mxu0
        %v1383 = vadd.f32 %v1282, %v1382
        %v1384 = vpop.f32.mrb[0].mxu0
        %1385 = vmatprep.mubr.f32.mxu0 0.0
        %1386 = vmatmul.mubr.f32.gmra.mrb[0].mxu0 %v1003
        %v1387 = vpop.f32.mrb[0].mxu0
        %v1388 = vadd.f32 %v1282, %v1387
        %v1389 = vpop.f32.mrb[0].mxu0
        %1390 = vmatprep.mubr.f32.mxu0 0.0
        %1391 = vmatmul.mubr.f32.gmra.mrb[0].mxu0 %v1006
        %v1392 = vpop.f32.mrb[0].mxu0
        %v1393 = vadd.f32 %v1282, %v1392
        %v1394 = vpop.f32.mrb[0].mxu0
        %1395 = vmatprep.mubr.f32.mxu0 0.0
        %1396 = vmatmul.mubr.f32.gmra.mrb[0].mxu0 %v1009
        %v1397 = vpop.f32.mrb[0].mxu0
        %v1398 = vadd.f32 %v1282, %v1397
        %v1399 = vpop.f32.mrb[0].mxu0
        %1400 = vmatprep.mubr.f32.mxu0 0.0
        %1401 = vmatmul.mubr.f32.gmra.mrb[0].mxu0 %v1012
        %v1402 = vpop.f32.mrb[0].mxu0
        %v1403 = vadd.f32 %v1282, %v1402
        %v1404 = vpop.f32.mrb[0].mxu0
        %1405 = vdwg.mxu0
        %vm1406 = vcmp.ge.s32.totalorder %v825, 0
        %vm1407 = vcmp.lt.s32.totalorder %v825, 16
        %vm1408 = vmand %vm1406, %vm1407
        %v1409 = vsel %vm1408, 1, 0
        %vm1410 = vcmp.eq.s32.totalorder %v1409, 1
        %v1411 = vsel %vm1410, %v1093, 0.0
        %v1412 = vsel %vm1410, %v1098, 0.0
        %v1413 = vsel %vm1410, %v1103, 0.0
        %v1414 = vsel %vm1410, %v1108, 0.0
        %v1415 = vsel %vm1410, %v1113, 0.0
        %v1416 = vsel %vm1410, %v1118, 0.0
        %v1417 = vsel %vm1410, %v1123, 0.0
        %v1418 = vsel %vm1410, %v1128, 0.0
        %v1419 = vsel %vm1410, %v1133, 0.0
        %v1420 = vsel %vm1410, %v1363, 0.0
        %v1421 = vsel %vm1410, %v1368, 0.0
        %v1422 = vsel %vm1410, %v1373, 0.0
        %v1423 = vsel %vm1410, %v1378, 0.0
        %v1424 = vsel %vm1410, %v1383, 0.0
        %v1425 = vsel %vm1410, %v1388, 0.0
        %v1426 = vsel %vm1410, %v1393, 0.0
        %v1427 = vsel %vm1410, %v1398, 0.0
        %v1428 = vsel %vm1410, %v1403, 0.0
        %v1430 = vsel %vm784, %v1411, 0
        %v1433 = vsel %vm784, %v1412, 0
        %v1436 = vsel %vm784, %v1413, 0
        %v1439 = vsel %vm784, %v1414, 0
        %v1442 = vsel %vm784, %v1415, 0
        %v1445 = vsel %vm784, %v1416, 0
        %v1448 = vsel %vm784, %v1417, 0
        %v1451 = vsel %vm784, %v1418, 0
        %v1454 = vsel %vm784, %v1419, 0
        %v1457 = vsel %vm784, %v1228, 0
        %v1460 = vsel %vm784, %v1233, 0
        %v1463 = vsel %vm784, %v1238, 0
        %v1466 = vsel %vm784, %v1243, 0
        %v1469 = vsel %vm784, %v1248, 0
        %v1472 = vsel %vm784, %v1253, 0
        %v1475 = vsel %vm784, %v1258, 0
        %v1478 = vsel %vm784, %v1263, 0
        %v1481 = vsel %vm784, %v1268, 0
        %1483 = vmatprep.subr.mxu0 0.0
        %1484 = vmatpush1.xpose.msra.mxu0 %v1457
        %1485 = vmatprep.subr.mxu0 0.0
        %1486 = vmatpush1.xpose.msra.mxu0 %v1460
        %1487 = vmatprep.subr.mxu0 0.0
        %1488 = vmatpush1.xpose.msra.mxu0 %v1463
        %1489 = vmatprep.subr.mxu0 0.0
        %1490 = vmatpush1.xpose.msra.mxu0 %v1466
        %1491 = vmatprep.subr.mxu0 0.0
        %1492 = vmatpush1.xpose.msra.mxu0 %v1469
        %1493 = vmatprep.subr.mxu0 0.0
        %1494 = vmatpush1.xpose.msra.mxu0 %v1472
        %1495 = vmatprep.subr.mxu0 0.0
        %1496 = vmatpush1.xpose.msra.mxu0 %v1475
        %1497 = vmatprep.subr.mxu0 0.0
        %1498 = vmatpush1.xpose.msra.mxu0 %v1478
        %1499 = vmatprep.subr.mxu0 0.0
        %1500 = vmatpush1.xpose.msra.mxu0 %v1481
        %1501 = vmatprep.subr.mxu0 0.0
        %1502 = vmatpush1.xpose.msra.mxu0 0.0
        %1503 = vmatprep.subr.mxu0 0.0
        %1504 = vmatpush1.xpose.msra.mxu0 0.0
        %1505 = vmatprep.subr.mxu0 0.0
        %1506 = vmatpush1.xpose.msra.mxu0 0.0
        %1507 = vmatprep.subr.mxu0 0.0
        %1508 = vmatpush1.xpose.msra.mxu0 0.0
        %1509 = vmatprep.subr.mxu0 0.0
        %1510 = vmatpush1.xpose.msra.mxu0 0.0
        %1511 = vmatprep.subr.mxu0 0.0
        %1512 = vmatpush1.xpose.msra.mxu0 0.0
        %1513 = vmatprep.subr.mxu0 0.0
        %1514 = vmatpush1.xpose.msra.mxu0 0.0
        %1515 = vmatprep.subr.mxu0 0.0
        %1516 = vmatpush1.xpose.msra.mxu0 0.0
        %1517 = vmatprep.subr.mxu0 0.0
        %1518 = vmatpush1.xpose.msra.mxu0 0.0
        %1519 = vmatprep.subr.mxu0 0.0
        %1520 = vmatpush1.xpose.msra.mxu0 0.0
        %1521 = vmatprep.subr.mxu0 0.0
        %1522 = vmatpush1.xpose.msra.mxu0 0.0
        %1523 = vmatprep.subr.mxu0 0.0
        %1524 = vmatpush1.xpose.msra.mxu0 0.0
        %1525 = vmatprep.subr.mxu0 0.0
        %1526 = vmatpush1.xpose.msra.mxu0 0.0
        %1527 = vmatprep.subr.mxu0 0.0
        %1528 = vmatpush1.xpose.msra.mxu0 0.0
        %1529 = vmatprep.subr.mxu0 0.0
        %1530 = vmatpush1.xpose.msra.mxu0 0.0
        %1531 = vmatprep.subr.mxu0 0.0
        %1532 = vmatpush1.xpose.msra.mxu0 0.0
        %1533 = vmatprep.subr.mxu0 0.0
        %1534 = vmatpush1.xpose.msra.mxu0 0.0
        %1535 = vmatprep.subr.mxu0 0.0
        %1536 = vmatpush1.xpose.msra.mxu0 0.0
        %1537 = vmatprep.subr.mxu0 0.0
        %1538 = vmatpush1.xpose.msra.mxu0 0.0
        %1539 = vmatprep.subr.mxu0 0.0
        %1540 = vmatpush1.xpose.msra.mxu0 0.0
        %1541 = vmatprep.subr.mxu0 0.0
        %1542 = vmatpush1.xpose.msra.mxu0 0.0
        %1543 = vmatprep.subr.mxu0 0.0
        %1544 = vmatpush1.xpose.msra.mxu0 0.0
        %1545 = vmatprep.subr.mxu0 0.0
        %1546 = vmatpush1.xpose.msra.mxu0 0.0
        %1547 = vmatprep.mubr.f32.mxu0 0.0
        %1548 = vmatmul.mubr.f32.gmra.mrb[0].mxu0 %v1430
        %v1549 = vpop.f32.mrb[0].mxu0
        %v1550 = vadd.f32 0.0, %v1549
        %v1551 = vpop.f32.mrb[0].mxu0
        %1552 = vmatprep.mubr.f32.mxu0 0.0
        %1553 = vmatmul.mubr.f32.gmra.mrb[0].mxu0 %v1433
        %v1554 = vpop.f32.mrb[0].mxu0
        %v1555 = vadd.f32 0.0, %v1554
        %v1556 = vpop.f32.mrb[0].mxu0
        %1557 = vmatprep.mubr.f32.mxu0 0.0
        %1558 = vmatmul.mubr.f32.gmra.mrb[0].mxu0 %v1436
        %v1559 = vpop.f32.mrb[0].mxu0
        %v1560 = vadd.f32 0.0, %v1559
        %v1561 = vpop.f32.mrb[0].mxu0
        %1562 = vmatprep.mubr.f32.mxu0 0.0
        %1563 = vmatmul.mubr.f32.gmra.mrb[0].mxu0 %v1439
        %v1564 = vpop.f32.mrb[0].mxu0
        %v1565 = vadd.f32 0.0, %v1564
        %v1566 = vpop.f32.mrb[0].mxu0
        %1567 = vmatprep.mubr.f32.mxu0 0.0
        %1568 = vmatmul.mubr.f32.gmra.mrb[0].mxu0 %v1442
        %v1569 = vpop.f32.mrb[0].mxu0
        %v1570 = vadd.f32 0.0, %v1569
        %v1571 = vpop.f32.mrb[0].mxu0
        %1572 = vmatprep.mubr.f32.mxu0 0.0
        %1573 = vmatmul.mubr.f32.gmra.mrb[0].mxu0 %v1445
        %v1574 = vpop.f32.mrb[0].mxu0
        %v1575 = vadd.f32 0.0, %v1574
        %v1576 = vpop.f32.mrb[0].mxu0
        %1577 = vmatprep.mubr.f32.mxu0 0.0
        %1578 = vmatmul.mubr.f32.gmra.mrb[0].mxu0 %v1448
        %v1579 = vpop.f32.mrb[0].mxu0
        %v1580 = vadd.f32 0.0, %v1579
        %v1581 = vpop.f32.mrb[0].mxu0
        %1582 = vmatprep.mubr.f32.mxu0 0.0
        %1583 = vmatmul.mubr.f32.gmra.mrb[0].mxu0 %v1451
        %v1584 = vpop.f32.mrb[0].mxu0
        %v1585 = vadd.f32 0.0, %v1584
        %v1586 = vpop.f32.mrb[0].mxu0
        %1587 = vmatprep.mubr.f32.mxu0 0.0
        %1588 = vmatmul.mubr.f32.gmra.mrb[0].mxu0 %v1454
        %v1589 = vpop.f32.mrb[0].mxu0
        %v1590 = vadd.f32 0.0, %v1589
        %v1591 = vpop.f32.mrb[0].mxu0
        %1592 = vdwg.mxu0
        %v1593 = vmul.f32 %v1550, 0.25
        %v1594 = vmul.f32 %v1555, 0.25
        %v1595 = vmul.f32 %v1560, 0.25
        %v1596 = vmul.f32 %v1565, 0.25
        %v1597 = vmul.f32 %v1570, 0.25
        %v1598 = vmul.f32 %v1575, 0.25
        %v1599 = vmul.f32 %v1580, 0.25
        %v1600 = vmul.f32 %v1585, 0.25
        %v1601 = vmul.f32 %v1590, 0.25
        %vm1602 = vcmask 588800
        %v1603 = vsel %vm1602, %v1593, -inf
        %1604 = vmax.xlane.f32.xlu0 %v1603
        %v1605 = vpop.xlane.xlu0 %1604
        %v1606 = vsel %vm1602, %v1594, -inf
        %1607 = vmax.xlane.f32.xlu0 %v1606
        %v1608 = vpop.xlane.xlu0 %1607
        %v1609 = vsel %vm1602, %v1595, -inf
        %1610 = vmax.xlane.f32.xlu0 %v1609
        %v1611 = vpop.xlane.xlu0 %1610
        %v1612 = vsel %vm1602, %v1596, -inf
        %1613 = vmax.xlane.f32.xlu0 %v1612
        %v1614 = vpop.xlane.xlu0 %1613
        %v1615 = vsel %vm1602, %v1597, -inf
        %1616 = vmax.xlane.f32.xlu0 %v1615
        %v1617 = vpop.xlane.xlu0 %1616
        %v1618 = vsel %vm1602, %v1598, -inf
        %1619 = vmax.xlane.f32.xlu0 %v1618
        %v1620 = vpop.xlane.xlu0 %1619
        %v1621 = vsel %vm1602, %v1599, -inf
        %1622 = vmax.xlane.f32.xlu0 %v1621
        %v1623 = vpop.xlane.xlu0 %1622
        %v1624 = vsel %vm1602, %v1600, -inf
        %1625 = vmax.xlane.f32.xlu0 %v1624
        %v1626 = vpop.xlane.xlu0 %1625
        %v1627 = vsel %vm1602, %v1601, -inf
        %1628 = vmax.xlane.f32.xlu0 %v1627
        %v1629 = vpop.xlane.xlu0 %1628
        %v1630 = vsub.f32 %v1593, %v1605
        %v1631 = vsub.f32 %v1594, %v1608
        %v1632 = vsub.f32 %v1595, %v1611
        %v1633 = vsub.f32 %v1596, %v1614
        %v1634 = vsub.f32 %v1597, %v1617
        %v1635 = vsub.f32 %v1598, %v1620
        %v1636 = vsub.f32 %v1599, %v1623
        %v1637 = vsub.f32 %v1600, %v1626
        %v1638 = vsub.f32 %v1601, %v1629
        %v1639 = vmul.f32 %v1630, 1.442695
        %v1640 = vpow.pop %v1639
        %v1641 = vmul.f32 %v1631, 1.442695
        %v1642 = vpow.pop %v1641
        %v1643 = vmul.f32 %v1632, 1.442695
        %v1644 = vpow.pop %v1643
        %v1645 = vmul.f32 %v1633, 1.442695
        %v1646 = vpow.pop %v1645
        %v1647 = vmul.f32 %v1634, 1.442695
        %v1648 = vpow.pop %v1647
        %v1649 = vmul.f32 %v1635, 1.442695
        %v1650 = vpow.pop %v1649
        %v1651 = vmul.f32 %v1636, 1.442695
        %v1652 = vpow.pop %v1651
        %v1653 = vmul.f32 %v1637, 1.442695
        %v1654 = vpow.pop %v1653
        %v1655 = vmul.f32 %v1638, 1.442695
        %v1656 = vpow.pop %v1655
        %v1657 = vsel %vm1602, %v1640, 0.0
        %1658 = vadd.xlane.f32.xlu0 %v1657
        %v1659 = vpop.xlane.xlu0 %1658
        %v1660 = vsel %vm1602, %v1642, 0.0
        %1661 = vadd.xlane.f32.xlu0 %v1660
        %v1662 = vpop.xlane.xlu0 %1661
        %v1663 = vsel %vm1602, %v1644, 0.0
        %1664 = vadd.xlane.f32.xlu0 %v1663
        %v1665 = vpop.xlane.xlu0 %1664
        %v1666 = vsel %vm1602, %v1646, 0.0
        %1667 = vadd.xlane.f32.xlu0 %v1666
        %v1668 = vpop.xlane.xlu0 %1667
        %v1669 = vsel %vm1602, %v1648, 0.0
        %1670 = vadd.xlane.f32.xlu0 %v1669
        %v1671 = vpop.xlane.xlu0 %1670
        %v1672 = vsel %vm1602, %v1650, 0.0
        %1673 = vadd.xlane.f32.xlu0 %v1672
        %v1674 = vpop.xlane.xlu0 %1673
        %v1675 = vsel %vm1602, %v1652, 0.0
        %1676 = vadd.xlane.f32.xlu0 %v1675
        %v1677 = vpop.xlane.xlu0 %1676
        %v1678 = vsel %vm1602, %v1654, 0.0
        %1679 = vadd.xlane.f32.xlu0 %v1678
        %v1680 = vpop.xlane.xlu0 %1679
        %v1681 = vsel %vm1602, %v1656, 0.0
        %1682 = vadd.xlane.f32.xlu0 %v1681
        %v1683 = vpop.xlane.xlu0 %1682
        %v1684 = vrcp.pop %v1659
        %v1685 = vmul.f32 %v1640, %v1684
        %v1686 = vrcp.pop %v1662
        %v1687 = vmul.f32 %v1642, %v1686
        %v1688 = vrcp.pop %v1665
        %v1689 = vmul.f32 %v1644, %v1688
        %v1690 = vrcp.pop %v1668
        %v1691 = vmul.f32 %v1646, %v1690
        %v1692 = vrcp.pop %v1671
        %v1693 = vmul.f32 %v1648, %v1692
        %v1694 = vrcp.pop %v1674
        %v1695 = vmul.f32 %v1650, %v1694
        %v1696 = vrcp.pop %v1677
        %v1697 = vmul.f32 %v1652, %v1696
        %v1698 = vrcp.pop %v1680
        %v1699 = vmul.f32 %v1654, %v1698
        %v1700 = vrcp.pop %v1683
        %v1701 = vmul.f32 %v1656, %v1700
        %vm1702 = vcmp.ge.s32.totalorder %v825, 16
        %vm1703 = vcmp.lt.s32.totalorder %v825, 32
        %vm1704 = vmand %vm1702, %vm1703
        %v1705 = vsel %vm1704, 1, 0
        %vm1706 = vcmp.eq.s32.totalorder %v1705, 1
        %v1707 = vsel %vm1706, %v1093, 0.0
        %v1708 = vsel %vm1706, %v1098, 0.0
        %v1709 = vsel %vm1706, %v1103, 0.0
        %v1710 = vsel %vm1706, %v1108, 0.0
        %v1711 = vsel %vm1706, %v1113, 0.0
        %v1712 = vsel %vm1706, %v1118, 0.0
        %v1713 = vsel %vm1706, %v1123, 0.0
        %v1714 = vsel %vm1706, %v1128, 0.0
        %v1715 = vsel %vm1706, %v1133, 0.0
        %v1716 = vsel %vm1706, %v1363, 0.0
        %v1717 = vsel %vm1706, %v1368, 0.0
        %v1718 = vsel %vm1706, %v1373, 0.0
        %v1719 = vsel %vm1706, %v1378, 0.0
        %v1720 = vsel %vm1706, %v1383, 0.0
        %v1721 = vsel %vm1706, %v1388, 0.0
        %v1722 = vsel %vm1706, %v1393, 0.0
        %v1723 = vsel %vm1706, %v1398, 0.0
        %v1724 = vsel %vm1706, %v1403, 0.0
        %v1726 = vsel %vm784, %v1707, 0
        %v1729 = vsel %vm784, %v1708, 0
        %v1732 = vsel %vm784, %v1709, 0
        %v1735 = vsel %vm784, %v1710, 0
        %v1738 = vsel %vm784, %v1711, 0
        %v1741 = vsel %vm784, %v1712, 0
        %v1744 = vsel %vm784, %v1713, 0
        %v1747 = vsel %vm784, %v1714, 0
        %v1750 = vsel %vm784, %v1715, 0
        %1752 = vmatprep.subr.mxu0 0.0
        %1753 = vmatpush1.xpose.msra.mxu0 %v1457
        %1754 = vmatprep.subr.mxu0 0.0
        %1755 = vmatpush1.xpose.msra.mxu0 %v1460
        %1756 = vmatprep.subr.mxu0 0.0
        %1757 = vmatpush1.xpose.msra.mxu0 %v1463
        %1758 = vmatprep.subr.mxu0 0.0
        %1759 = vmatpush1.xpose.msra.mxu0 %v1466
        %1760 = vmatprep.subr.mxu0 0.0
        %1761 = vmatpush1.xpose.msra.mxu0 %v1469
        %1762 = vmatprep.subr.mxu0 0.0
        %1763 = vmatpush1.xpose.msra.mxu0 %v1472
        %1764 = vmatprep.subr.mxu0 0.0
        %1765 = vmatpush1.xpose.msra.mxu0 %v1475
        %1766 = vmatprep.subr.mxu0 0.0
        %1767 = vmatpush1.xpose.msra.mxu0 %v1478
        %1768 = vmatprep.subr.mxu0 0.0
        %1769 = vmatpush1.xpose.msra.mxu0 %v1481
        %1770 = vmatprep.subr.mxu0 0.0
        %1771 = vmatpush1.xpose.msra.mxu0 0.0
        %1772 = vmatprep.subr.mxu0 0.0
        %1773 = vmatpush1.xpose.msra.mxu0 0.0
        %1774 = vmatprep.subr.mxu0 0.0
        %1775 = vmatpush1.xpose.msra.mxu0 0.0
        %1776 = vmatprep.subr.mxu0 0.0
        %1777 = vmatpush1.xpose.msra.mxu0 0.0
        %1778 = vmatprep.subr.mxu0 0.0
        %1779 = vmatpush1.xpose.msra.mxu0 0.0
        %1780 = vmatprep.subr.mxu0 0.0
        %1781 = vmatpush1.xpose.msra.mxu0 0.0
        %1782 = vmatprep.subr.mxu0 0.0
        %1783 = vmatpush1.xpose.msra.mxu0 0.0
        %1784 = vmatprep.subr.mxu0 0.0
        %1785 = vmatpush1.xpose.msra.mxu0 0.0
        %1786 = vmatprep.subr.mxu0 0.0
        %1787 = vmatpush1.xpose.msra.mxu0 0.0
        %1788 = vmatprep.subr.mxu0 0.0
        %1789 = vmatpush1.xpose.msra.mxu0 0.0
        %1790 = vmatprep.subr.mxu0 0.0
        %1791 = vmatpush1.xpose.msra.mxu0 0.0
        %1792 = vmatprep.subr.mxu0 0.0
        %1793 = vmatpush1.xpose.msra.mxu0 0.0
        %1794 = vmatprep.subr.mxu0 0.0
        %1795 = vmatpush1.xpose.msra.mxu0 0.0
        %1796 = vmatprep.subr.mxu0 0.0
        %1797 = vmatpush1.xpose.msra.mxu0 0.0
        %1798 = vmatprep.subr.mxu0 0.0
        %1799 = vmatpush1.xpose.msra.mxu0 0.0
        %1800 = vmatprep.subr.mxu0 0.0
        %1801 = vmatpush1.xpose.msra.mxu0 0.0
        %1802 = vmatprep.subr.mxu0 0.0
        %1803 = vmatpush1.xpose.msra.mxu0 0.0
        %1804 = vmatprep.subr.mxu0 0.0
        %1805 = vmatpush1.xpose.msra.mxu0 0.0
        %1806 = vmatprep.subr.mxu0 0.0
        %1807 = vmatpush1.xpose.msra.mxu0 0.0
        %1808 = vmatprep.subr.mxu0 0.0
        %1809 = vmatpush1.xpose.msra.mxu0 0.0
        %1810 = vmatprep.subr.mxu0 0.0
        %1811 = vmatpush1.xpose.msra.mxu0 0.0
        %1812 = vmatprep.subr.mxu0 0.0
        %1813 = vmatpush1.xpose.msra.mxu0 0.0
        %1814 = vmatprep.subr.mxu0 0.0
        %1815 = vmatpush1.xpose.msra.mxu0 0.0
        %1816 = vmatprep.mubr.f32.mxu0 0.0
        %1817 = vmatmul.mubr.f32.gmra.mrb[0].mxu0 %v1726
        %v1818 = vpop.f32.mrb[0].mxu0
        %v1819 = vadd.f32 0.0, %v1818
        %v1820 = vpop.f32.mrb[0].mxu0
        %1821 = vmatprep.mubr.f32.mxu0 0.0
        %1822 = vmatmul.mubr.f32.gmra.mrb[0].mxu0 %v1729
        %v1823 = vpop.f32.mrb[0].mxu0
        %v1824 = vadd.f32 0.0, %v1823
        %v1825 = vpop.f32.mrb[0].mxu0
        %1826 = vmatprep.mubr.f32.mxu0 0.0
        %1827 = vmatmul.mubr.f32.gmra.mrb[0].mxu0 %v1732
        %v1828 = vpop.f32.mrb[0].mxu0
        %v1829 = vadd.f32 0.0, %v1828
        %v1830 = vpop.f32.mrb[0].mxu0
        %1831 = vmatprep.mubr.f32.mxu0 0.0
        %1832 = vmatmul.mubr.f32.gmra.mrb[0].mxu0 %v1735
        %v1833 = vpop.f32.mrb[0].mxu0
        %v1834 = vadd.f32 0.0, %v1833
        %v1835 = vpop.f32.mrb[0].mxu0
        %1836 = vmatprep.mubr.f32.mxu0 0.0
        %1837 = vmatmul.mubr.f32.gmra.mrb[0].mxu0 %v1738
        %v1838 = vpop.f32.mrb[0].mxu0
        %v1839 = vadd.f32 0.0, %v1838
        %v1840 = vpop.f32.mrb[0].mxu0
        %1841 = vmatprep.mubr.f32.mxu0 0.0
        %1842 = vmatmul.mubr.f32.gmra.mrb[0].mxu0 %v1741
        %v1843 = vpop.f32.mrb[0].mxu0
        %v1844 = vadd.f32 0.0, %v1843
        %v1845 = vpop.f32.mrb[0].mxu0
        %1846 = vmatprep.mubr.f32.mxu0 0.0
        %1847 = vmatmul.mubr.f32.gmra.mrb[0].mxu0 %v1744
        %v1848 = vpop.f32.mrb[0].mxu0
        %v1849 = vadd.f32 0.0, %v1848
        %v1850 = vpop.f32.mrb[0].mxu0
        %1851 = vmatprep.mubr.f32.mxu0 0.0
        %1852 = vmatmul.mubr.f32.gmra.mrb[0].mxu0 %v1747
        %v1853 = vpop.f32.mrb[0].mxu0
        %v1854 = vadd.f32 0.0, %v1853
        %v1855 = vpop.f32.mrb[0].mxu0
        %1856 = vmatprep.mubr.f32.mxu0 0.0
        %1857 = vmatmul.mubr.f32.gmra.mrb[0].mxu0 %v1750
        %v1858 = vpop.f32.mrb[0].mxu0
        %v1859 = vadd.f32 0.0, %v1858
        %v1860 = vpop.f32.mrb[0].mxu0
        %1861 = vdwg.mxu0
        %v1862 = vmul.f32 %v1819, 0.25
        %v1863 = vmul.f32 %v1824, 0.25
        %v1864 = vmul.f32 %v1829, 0.25
        %v1865 = vmul.f32 %v1834, 0.25
        %v1866 = vmul.f32 %v1839, 0.25
        %v1867 = vmul.f32 %v1844, 0.25
        %v1868 = vmul.f32 %v1849, 0.25
        %v1869 = vmul.f32 %v1854, 0.25
        %v1870 = vmul.f32 %v1859, 0.25
        %v1871 = vsel %vm1602, %v1862, -inf
        %1872 = vmax.xlane.f32.xlu0 %v1871
        %v1873 = vpop.xlane.xlu0 %1872
        %v1874 = vsel %vm1602, %v1863, -inf
        %1875 = vmax.xlane.f32.xlu0 %v1874
        %v1876 = vpop.xlane.xlu0 %1875
        %v1877 = vsel %vm1602, %v1864, -inf
        %1878 = vmax.xlane.f32.xlu0 %v1877
        %v1879 = vpop.xlane.xlu0 %1878
        %v1880 = vsel %vm1602, %v1865, -inf
        %1881 = vmax.xlane.f32.xlu0 %v1880
        %v1882 = vpop.xlane.xlu0 %1881
        %v1883 = vsel %vm1602, %v1866, -inf
        %1884 = vmax.xlane.f32.xlu0 %v1883
        %v1885 = vpop.xlane.xlu0 %1884
        %v1886 = vsel %vm1602, %v1867, -inf
        %1887 = vmax.xlane.f32.xlu0 %v1886
        %v1888 = vpop.xlane.xlu0 %1887
        %v1889 = vsel %vm1602, %v1868, -inf
        %1890 = vmax.xlane.f32.xlu0 %v1889
        %v1891 = vpop.xlane.xlu0 %1890
        %v1892 = vsel %vm1602, %v1869, -inf
        %1893 = vmax.xlane.f32.xlu0 %v1892
        %v1894 = vpop.xlane.xlu0 %1893
        %v1895 = vsel %vm1602, %v1870, -inf
        %1896 = vmax.xlane.f32.xlu0 %v1895
        %v1897 = vpop.xlane.xlu0 %1896
        %v1898 = vsub.f32 %v1862, %v1873
        %v1899 = vsub.f32 %v1863, %v1876
        %v1900 = vsub.f32 %v1864, %v1879
        %v1901 = vsub.f32 %v1865, %v1882
        %v1902 = vsub.f32 %v1866, %v1885
        %v1903 = vsub.f32 %v1867, %v1888
        %v1904 = vsub.f32 %v1868, %v1891
        %v1905 = vsub.f32 %v1869, %v1894
        %v1906 = vsub.f32 %v1870, %v1897
        %v1907 = vmul.f32 %v1898, 1.442695
        %v1908 = vpow.pop %v1907
        %v1909 = vmul.f32 %v1899, 1.442695
        %v1910 = vpow.pop %v1909
        %v1911 = vmul.f32 %v1900, 1.442695
        %v1912 = vpow.pop %v1911
        %v1913 = vmul.f32 %v1901, 1.442695
        %v1914 = vpow.pop %v1913
        %v1915 = vmul.f32 %v1902, 1.442695
        %v1916 = vpow.pop %v1915
        %v1917 = vmul.f32 %v1903, 1.442695
        %v1918 = vpow.pop %v1917
        %v1919 = vmul.f32 %v1904, 1.442695
        %v1920 = vpow.pop %v1919
        %v1921 = vmul.f32 %v1905, 1.442695
        %v1922 = vpow.pop %v1921
        %v1923 = vmul.f32 %v1906, 1.442695
        %v1924 = vpow.pop %v1923
        %v1925 = vsel %vm1602, %v1908, 0.0
        %1926 = vadd.xlane.f32.xlu0 %v1925
        %v1927 = vpop.xlane.xlu0 %1926
        %v1928 = vsel %vm1602, %v1910, 0.0
        %1929 = vadd.xlane.f32.xlu0 %v1928
        %v1930 = vpop.xlane.xlu0 %1929
        %v1931 = vsel %vm1602, %v1912, 0.0
        %1932 = vadd.xlane.f32.xlu0 %v1931
        %v1933 = vpop.xlane.xlu0 %1932
        %v1934 = vsel %vm1602, %v1914, 0.0
        %1935 = vadd.xlane.f32.xlu0 %v1934
        %v1936 = vpop.xlane.xlu0 %1935
        %v1937 = vsel %vm1602, %v1916, 0.0
        %1938 = vadd.xlane.f32.xlu0 %v1937
        %v1939 = vpop.xlane.xlu0 %1938
        %v1940 = vsel %vm1602, %v1918, 0.0
        %1941 = vadd.xlane.f32.xlu0 %v1940
        %v1942 = vpop.xlane.xlu0 %1941
        %v1943 = vsel %vm1602, %v1920, 0.0
        %1944 = vadd.xlane.f32.xlu0 %v1943
        %v1945 = vpop.xlane.xlu0 %1944
        %v1946 = vsel %vm1602, %v1922, 0.0
        %1947 = vadd.xlane.f32.xlu0 %v1946
        %v1948 = vpop.xlane.xlu0 %1947
        %v1949 = vsel %vm1602, %v1924, 0.0
        %1950 = vadd.xlane.f32.xlu0 %v1949
        %v1951 = vpop.xlane.xlu0 %1950
        %v1952 = vrcp.pop %v1927
        %v1953 = vmul.f32 %v1908, %v1952
        %v1954 = vrcp.pop %v1930
        %v1955 = vmul.f32 %v1910, %v1954
        %v1956 = vrcp.pop %v1933
        %v1957 = vmul.f32 %v1912, %v1956
        %v1958 = vrcp.pop %v1936
        %v1959 = vmul.f32 %v1914, %v1958
        %v1960 = vrcp.pop %v1939
        %v1961 = vmul.f32 %v1916, %v1960
        %v1962 = vrcp.pop %v1942
        %v1963 = vmul.f32 %v1918, %v1962
        %v1964 = vrcp.pop %v1945
        %v1965 = vmul.f32 %v1920, %v1964
        %v1966 = vrcp.pop %v1948
        %v1967 = vmul.f32 %v1922, %v1966
        %v1968 = vrcp.pop %v1951
        %v1969 = vmul.f32 %v1924, %v1968
        %v1971 = vsel %vm1602, %v1953, 0
        %v1974 = vsel %vm1602, %v1955, 0
        %v1977 = vsel %vm1602, %v1957, 0
        %v1980 = vsel %vm1602, %v1959, 0
        %v1983 = vsel %vm1602, %v1961, 0
        %v1986 = vsel %vm1602, %v1963, 0
        %v1989 = vsel %vm1602, %v1965, 0
        %v1992 = vsel %vm1602, %v1967, 0
        %v1995 = vsel %vm1602, %v1969, 0
        %1997 = vmatprep.subr.mxu0 0.0
        %1998 = vmatpush1.msra.mxu0 %v1716
        %1999 = vmatprep.subr.mxu0 0.0
        %2000 = vmatpush1.msra.mxu0 %v1717
        %2001 = vmatprep.subr.mxu0 0.0
        %2002 = vmatpush1.msra.mxu0 %v1718
        %2003 = vmatprep.subr.mxu0 0.0
        %2004 = vmatpush1.msra.mxu0 %v1719
        %2005 = vmatprep.subr.mxu0 0.0
        %2006 = vmatpush1.msra.mxu0 %v1720
        %2007 = vmatprep.subr.mxu0 0.0
        %2008 = vmatpush1.msra.mxu0 %v1721
        %2009 = vmatprep.subr.mxu0 0.0
        %2010 = vmatpush1.msra.mxu0 %v1722
        %2011 = vmatprep.subr.mxu0 0.0
        %2012 = vmatpush1.msra.mxu0 %v1723
        %2013 = vmatprep.subr.mxu0 0.0
        %2014 = vmatpush1.msra.mxu0 %v1724
        %2015 = vmatprep.subr.mxu0 0.0
        %2016 = vmatpush1.msra.mxu0 0.0
        %2017 = vmatprep.subr.mxu0 0.0
        %2018 = vmatpush1.msra.mxu0 0.0
        %2019 = vmatprep.subr.mxu0 0.0
        %2020 = vmatpush1.msra.mxu0 0.0
        %2021 = vmatprep.subr.mxu0 0.0
        %2022 = vmatpush1.msra.mxu0 0.0
        %2023 = vmatprep.subr.mxu0 0.0
        %2024 = vmatpush1.msra.mxu0 0.0
        %2025 = vmatprep.subr.mxu0 0.0
        %2026 = vmatpush1.msra.mxu0 0.0
        %2027 = vmatprep.subr.mxu0 0.0
        %2028 = vmatpush1.msra.mxu0 0.0
        %2029 = vmatprep.subr.mxu0 0.0
        %2030 = vmatpush1.msra.mxu0 0.0
        %2031 = vmatprep.subr.mxu0 0.0
        %2032 = vmatpush1.msra.mxu0 0.0
        %2033 = vmatprep.subr.mxu0 0.0
        %2034 = vmatpush1.msra.mxu0 0.0
        %2035 = vmatprep.subr.mxu0 0.0
        %2036 = vmatpush1.msra.mxu0 0.0
        %2037 = vmatprep.subr.mxu0 0.0
        %2038 = vmatpush1.msra.mxu0 0.0
        %2039 = vmatprep.subr.mxu0 0.0
        %2040 = vmatpush1.msra.mxu0 0.0
        %2041 = vmatprep.subr.mxu0 0.0
        %2042 = vmatpush1.msra.mxu0 0.0
        %2043 = vmatprep.subr.mxu0 0.0
        %2044 = vmatpush1.msra.mxu0 0.0
        %2045 = vmatprep.subr.mxu0 0.0
        %2046 = vmatpush1.msra.mxu0 0.0
        %2047 = vmatprep.subr.mxu0 0.0
        %2048 = vmatpush1.msra.mxu0 0.0
        %2049 = vmatprep.subr.mxu0 0.0
        %2050 = vmatpush1.msra.mxu0 0.0
        %2051 = vmatprep.subr.mxu0 0.0
        %2052 = vmatpush1.msra.mxu0 0.0
        %2053 = vmatprep.subr.mxu0 0.0
        %2054 = vmatpush1.msra.mxu0 0.0
        %2055 = vmatprep.subr.mxu0 0.0
        %2056 = vmatpush1.msra.mxu0 0.0
        %2057 = vmatprep.subr.mxu0 0.0
        %2058 = vmatpush1.msra.mxu0 0.0
        %2059 = vmatprep.subr.mxu0 0.0
        %2060 = vmatpush1.msra.mxu0 0.0
        %2061 = vmatprep.mubr.f32.mxu0 0.0
        %2062 = vmatmul.mubr.f32.gmra.mrb[0].mxu0 %v1971
        %v2063 = vpop.f32.mrb[0].mxu0
        %v2064 = vadd.f32 0.0, %v2063
        %v2065 = vpop.f32.mrb[0].mxu0
        %2066 = vmatprep.mubr.f32.mxu0 0.0
        %2067 = vmatmul.mubr.f32.gmra.mrb[0].mxu0 %v1974
        %v2068 = vpop.f32.mrb[0].mxu0
        %v2069 = vadd.f32 0.0, %v2068
        %v2070 = vpop.f32.mrb[0].mxu0
        %2071 = vmatprep.mubr.f32.mxu0 0.0
        %2072 = vmatmul.mubr.f32.gmra.mrb[0].mxu0 %v1977
        %v2073 = vpop.f32.mrb[0].mxu0
        %v2074 = vadd.f32 0.0, %v2073
        %v2075 = vpop.f32.mrb[0].mxu0
        %2076 = vmatprep.mubr.f32.mxu0 0.0
        %2077 = vmatmul.mubr.f32.gmra.mrb[0].mxu0 %v1980
        %v2078 = vpop.f32.mrb[0].mxu0
        %v2079 = vadd.f32 0.0, %v2078
        %v2080 = vpop.f32.mrb[0].mxu0
        %2081 = vmatprep.mubr.f32.mxu0 0.0
        %2082 = vmatmul.mubr.f32.gmra.mrb[0].mxu0 %v1983
        %v2083 = vpop.f32.mrb[0].mxu0
        %v2084 = vadd.f32 0.0, %v2083
        %v2085 = vpop.f32.mrb[0].mxu0
        %2086 = vmatprep.mubr.f32.mxu0 0.0
        %2087 = vmatmul.mubr.f32.gmra.mrb[0].mxu0 %v1986
        %v2088 = vpop.f32.mrb[0].mxu0
        %v2089 = vadd.f32 0.0, %v2088
        %v2090 = vpop.f32.mrb[0].mxu0
        %2091 = vmatprep.mubr.f32.mxu0 0.0
        %2092 = vmatmul.mubr.f32.gmra.mrb[0].mxu0 %v1989
        %v2093 = vpop.f32.mrb[0].mxu0
        %v2094 = vadd.f32 0.0, %v2093
        %v2095 = vpop.f32.mrb[0].mxu0
        %2096 = vmatprep.mubr.f32.mxu0 0.0
        %2097 = vmatmul.mubr.f32.gmra.mrb[0].mxu0 %v1992
        %v2098 = vpop.f32.mrb[0].mxu0
        %v2099 = vadd.f32 0.0, %v2098
        %v2100 = vpop.f32.mrb[0].mxu0
        %2101 = vmatprep.mubr.f32.mxu0 0.0
        %2102 = vmatmul.mubr.f32.gmra.mrb[0].mxu0 %v1995
        %v2103 = vpop.f32.mrb[0].mxu0
        %v2104 = vadd.f32 0.0, %v2103
        %v2105 = vpop.f32.mrb[0].mxu0
        %2106 = vdwg.mxu0
        %v2108 = vsel %vm1602, %v1685, 0
        %v2111 = vsel %vm1602, %v1687, 0
        %v2114 = vsel %vm1602, %v1689, 0
        %v2117 = vsel %vm1602, %v1691, 0
        %v2120 = vsel %vm1602, %v1693, 0
        %v2123 = vsel %vm1602, %v1695, 0
        %v2126 = vsel %vm1602, %v1697, 0
        %v2129 = vsel %vm1602, %v1699, 0
        %v2132 = vsel %vm1602, %v1701, 0
        %2134 = vmatprep.subr.mxu0 0.0
        %2135 = vmatpush1.msra.mxu0 %v1420
        %2136 = vmatprep.subr.mxu0 0.0
        %2137 = vmatpush1.msra.mxu0 %v1421
        %2138 = vmatprep.subr.mxu0 0.0
        %2139 = vmatpush1.msra.mxu0 %v1422
        %2140 = vmatprep.subr.mxu0 0.0
        %2141 = vmatpush1.msra.mxu0 %v1423
        %2142 = vmatprep.subr.mxu0 0.0
        %2143 = vmatpush1.msra.mxu0 %v1424
        %2144 = vmatprep.subr.mxu0 0.0
        %2145 = vmatpush1.msra.mxu0 %v1425
        %2146 = vmatprep.subr.mxu0 0.0
        %2147 = vmatpush1.msra.mxu0 %v1426
        %2148 = vmatprep.subr.mxu0 0.0
        %2149 = vmatpush1.msra.mxu0 %v1427
        %2150 = vmatprep.subr.mxu0 0.0
        %2151 = vmatpush1.msra.mxu0 %v1428
        %2152 = vmatprep.subr.mxu0 0.0
        %2153 = vmatpush1.msra.mxu0 0.0
        %2154 = vmatprep.subr.mxu0 0.0
        %2155 = vmatpush1.msra.mxu0 0.0
        %2156 = vmatprep.subr.mxu0 0.0
        %2157 = vmatpush1.msra.mxu0 0.0
        %2158 = vmatprep.subr.mxu0 0.0
        %2159 = vmatpush1.msra.mxu0 0.0
        %2160 = vmatprep.subr.mxu0 0.0
        %2161 = vmatpush1.msra.mxu0 0.0
        %2162 = vmatprep.subr.mxu0 0.0
        %2163 = vmatpush1.msra.mxu0 0.0
        %2164 = vmatprep.subr.mxu0 0.0
        %2165 = vmatpush1.msra.mxu0 0.0
        %2166 = vmatprep.subr.mxu0 0.0
        %2167 = vmatpush1.msra.mxu0 0.0
        %2168 = vmatprep.subr.mxu0 0.0
        %2169 = vmatpush1.msra.mxu0 0.0
        %2170 = vmatprep.subr.mxu0 0.0
        %2171 = vmatpush1.msra.mxu0 0.0
        %2172 = vmatprep.subr.mxu0 0.0
        %2173 = vmatpush1.msra.mxu0 0.0
        %2174 = vmatprep.subr.mxu0 0.0
        %2175 = vmatpush1.msra.mxu0 0.0
        %2176 = vmatprep.subr.mxu0 0.0
        %2177 = vmatpush1.msra.mxu0 0.0
        %2178 = vmatprep.subr.mxu0 0.0
        %2179 = vmatpush1.msra.mxu0 0.0
        %2180 = vmatprep.subr.mxu0 0.0
        %2181 = vmatpush1.msra.mxu0 0.0
        %2182 = vmatprep.subr.mxu0 0.0
        %2183 = vmatpush1.msra.mxu0 0.0
        %2184 = vmatprep.subr.mxu0 0.0
        %2185 = vmatpush1.msra.mxu0 0.0
        %2186 = vmatprep.subr.mxu0 0.0
        %2187 = vmatpush1.msra.mxu0 0.0
        %2188 = vmatprep.subr.mxu0 0.0
        %2189 = vmatpush1.msra.mxu0 0.0
        %2190 = vmatprep.subr.mxu0 0.0
        %2191 = vmatpush1.msra.mxu0 0.0
        %2192 = vmatprep.subr.mxu0 0.0
        %2193 = vmatpush1.msra.mxu0 0.0
        %2194 = vmatprep.subr.mxu0 0.0
        %2195 = vmatpush1.msra.mxu0 0.0
        %2196 = vmatprep.subr.mxu0 0.0
        %2197 = vmatpush1.msra.mxu0 0.0
        %2198 = vmatprep.mubr.f32.mxu0 0.0
        %2199 = vmatmul.mubr.f32.gmra.mrb[0].mxu0 %v2108
        %v2200 = vpop.f32.mrb[0].mxu0
        %v2201 = vadd.f32 %v2064, %v2200
        %v2202 = vpop.f32.mrb[0].mxu0
        %2203 = vmatprep.mubr.f32.mxu0 0.0
        %2204 = vmatmul.mubr.f32.gmra.mrb[0].mxu0 %v2111
        %v2205 = vpop.f32.mrb[0].mxu0
        %v2206 = vadd.f32 %v2069, %v2205
        %v2207 = vpop.f32.mrb[0].mxu0
        %2208 = vmatprep.mubr.f32.mxu0 0.0
        %2209 = vmatmul.mubr.f32.gmra.mrb[0].mxu0 %v2114
        %v2210 = vpop.f32.mrb[0].mxu0
        %v2211 = vadd.f32 %v2074, %v2210
        %v2212 = vpop.f32.mrb[0].mxu0
        %2213 = vmatprep.mubr.f32.mxu0 0.0
        %2214 = vmatmul.mubr.f32.gmra.mrb[0].mxu0 %v2117
        %v2215 = vpop.f32.mrb[0].mxu0
        %v2216 = vadd.f32 %v2079, %v2215
        %v2217 = vpop.f32.mrb[0].mxu0
        %2218 = vmatprep.mubr.f32.mxu0 0.0
        %2219 = vmatmul.mubr.f32.gmra.mrb[0].mxu0 %v2120
        %v2220 = vpop.f32.mrb[0].mxu0
        %v2221 = vadd.f32 %v2084, %v2220
        %v2222 = vpop.f32.mrb[0].mxu0
        %2223 = vmatprep.mubr.f32.mxu0 0.0
        %2224 = vmatmul.mubr.f32.gmra.mrb[0].mxu0 %v2123
        %v2225 = vpop.f32.mrb[0].mxu0
        %v2226 = vadd.f32 %v2089, %v2225
        %v2227 = vpop.f32.mrb[0].mxu0
        %2228 = vmatprep.mubr.f32.mxu0 0.0
        %2229 = vmatmul.mubr.f32.gmra.mrb[0].mxu0 %v2126
        %v2230 = vpop.f32.mrb[0].mxu0
        %v2231 = vadd.f32 %v2094, %v2230
        %v2232 = vpop.f32.mrb[0].mxu0
        %2233 = vmatprep.mubr.f32.mxu0 0.0
        %2234 = vmatmul.mubr.f32.gmra.mrb[0].mxu0 %v2129
        %v2235 = vpop.f32.mrb[0].mxu0
        %v2236 = vadd.f32 %v2099, %v2235
        %v2237 = vpop.f32.mrb[0].mxu0
        %2238 = vmatprep.mubr.f32.mxu0 0.0
        %2239 = vmatmul.mubr.f32.gmra.mrb[0].mxu0 %v2132
        %v2240 = vpop.f32.mrb[0].mxu0
        %v2241 = vadd.f32 %v2104, %v2240
        %v2242 = vpop.f32.mrb[0].mxu0
        %2243 = vdwg.mxu0
        %v2244 = vld [vmem:[%s9] sm:$0xff]
        %v2245 = vld [vmem:[%s9 + $0x8] sm:$0xff]
        %v2246 = vld [vmem:[%s9 + $0x10] sm:$0xff]
        %v2247 = vld [vmem:[%s9 + $0x18] sm:$0xff]
        %v2248 = vld [vmem:[%s10] sm:$0x1]
        %v2250 = vlaneseq
        %v2251 = vshrl.u32 %v2250, 7
        %v2252 = vsub.s32 0, %v2251
        %v2253 = vrot.slane %v2248, %v2252
        %v2256 = vsel %vm784, %v2201, 0
        %v2259 = vsel %vm784, %v2206, 0
        %v2262 = vsel %vm784, %v2211, 0
        %v2265 = vsel %vm784, %v2216, 0
        %v2268 = vsel %vm784, %v2221, 0
        %v2271 = vsel %vm784, %v2226, 0
        %v2274 = vsel %vm784, %v2231, 0
        %v2277 = vsel %vm784, %v2236, 0
        %v2280 = vsel %vm784, %v2241, 0
        %v2283 = vsel %vm784, %v2244, 0
        %v2286 = vsel %vm784, %v2245, 0
        %v2289 = vsel %vm784, %v2246, 0
        %v2292 = vsel %vm784, %v2247, 0
        %2294 = vmatprep.subr.mxu0 0.0
        %2295 = vmatpush1.xpose.msra.mxu0 %v2283
        %2296 = vmatprep.subr.mxu0 0.0
        %2297 = vmatpush1.xpose.msra.mxu0 %v2286
        %2298 = vmatprep.subr.mxu0 0.0
        %2299 = vmatpush1.xpose.msra.mxu0 %v2289
        %2300 = vmatprep.subr.mxu0 0.0
        %2301 = vmatpush1.xpose.msra.mxu0 %v2292
        %2302 = vmatprep.subr.mxu0 0.0
        %2303 = vmatpush1.xpose.msra.mxu0 0.0
        %2304 = vmatprep.subr.mxu0 0.0
        %2305 = vmatpush1.xpose.msra.mxu0 0.0
        %2306 = vmatprep.subr.mxu0 0.0
        %2307 = vmatpush1.xpose.msra.mxu0 0.0
        %2308 = vmatprep.subr.mxu0 0.0
        %2309 = vmatpush1.xpose.msra.mxu0 0.0
        %2310 = vmatprep.subr.mxu0 0.0
        %2311 = vmatpush1.xpose.msra.mxu0 0.0
        %2312 = vmatprep.subr.mxu0 0.0
        %2313 = vmatpush1.xpose.msra.mxu0 0.0
        %2314 = vmatprep.subr.mxu0 0.0
        %2315 = vmatpush1.xpose.msra.mxu0 0.0
        %2316 = vmatprep.subr.mxu0 0.0
        %2317 = vmatpush1.xpose.msra.mxu0 0.0
        %2318 = vmatprep.subr.mxu0 0.0
        %2319 = vmatpush1.xpose.msra.mxu0 0.0
        %2320 = vmatprep.subr.mxu0 0.0
        %2321 = vmatpush1.xpose.msra.mxu0 0.0
        %2322 = vmatprep.subr.mxu0 0.0
        %2323 = vmatpush1.xpose.msra.mxu0 0.0
        %2324 = vmatprep.subr.mxu0 0.0
        %2325 = vmatpush1.xpose.msra.mxu0 0.0
        %2326 = vmatprep.subr.mxu0 0.0
        %2327 = vmatpush1.xpose.msra.mxu0 0.0
        %2328 = vmatprep.subr.mxu0 0.0
        %2329 = vmatpush1.xpose.msra.mxu0 0.0
        %2330 = vmatprep.subr.mxu0 0.0
        %2331 = vmatpush1.xpose.msra.mxu0 0.0
        %2332 = vmatprep.subr.mxu0 0.0
        %2333 = vmatpush1.xpose.msra.mxu0 0.0
        %2334 = vmatprep.subr.mxu0 0.0
        %2335 = vmatpush1.xpose.msra.mxu0 0.0
        %2336 = vmatprep.subr.mxu0 0.0
        %2337 = vmatpush1.xpose.msra.mxu0 0.0
        %2338 = vmatprep.subr.mxu0 0.0
        %2339 = vmatpush1.xpose.msra.mxu0 0.0
        %2340 = vmatprep.subr.mxu0 0.0
        %2341 = vmatpush1.xpose.msra.mxu0 0.0
        %2342 = vmatprep.subr.mxu0 0.0
        %2343 = vmatpush1.xpose.msra.mxu0 0.0
        %2344 = vmatprep.subr.mxu0 0.0
        %2345 = vmatpush1.xpose.msra.mxu0 0.0
        %2346 = vmatprep.subr.mxu0 0.0
        %2347 = vmatpush1.xpose.msra.mxu0 0.0
        %2348 = vmatprep.subr.mxu0 0.0
        %2349 = vmatpush1.xpose.msra.mxu0 0.0
        %2350 = vmatprep.subr.mxu0 0.0
        %2351 = vmatpush1.xpose.msra.mxu0 0.0
        %2352 = vmatprep.subr.mxu0 0.0
        %2353 = vmatpush1.xpose.msra.mxu0 0.0
        %2354 = vmatprep.subr.mxu0 0.0
        %2355 = vmatpush1.xpose.msra.mxu0 0.0
        %2356 = vmatprep.subr.mxu0 0.0
        %2357 = vmatpush1.xpose.msra.mxu0 0.0
        %2358 = vmatprep.mubr.f32.mxu0 0.0
        %2359 = vmatmul.mubr.f32.gmra.mrb[0].mxu0 %v2256
        %v2360 = vpop.f32.mrb[0].mxu0
        %v2361 = vadd.f32 %v2253, %v2360
        %v2362 = vpop.f32.mrb[0].mxu0
        %2363 = vmatprep.mubr.f32.mxu0 0.0
        %2364 = vmatmul.mubr.f32.gmra.mrb[0].mxu0 %v2259
        %v2365 = vpop.f32.mrb[0].mxu0
        %v2366 = vadd.f32 %v2253, %v2365
        %v2367 = vpop.f32.mrb[0].mxu0
        %2368 = vmatprep.mubr.f32.mxu0 0.0
        %2369 = vmatmul.mubr.f32.gmra.mrb[0].mxu0 %v2262
        %v2370 = vpop.f32.mrb[0].mxu0
        %v2371 = vadd.f32 %v2253, %v2370
        %v2372 = vpop.f32.mrb[0].mxu0
        %2373 = vmatprep.mubr.f32.mxu0 0.0
        %2374 = vmatmul.mubr.f32.gmra.mrb[0].mxu0 %v2265
        %v2375 = vpop.f32.mrb[0].mxu0
        %v2376 = vadd.f32 %v2253, %v2375
        %v2377 = vpop.f32.mrb[0].mxu0
        %2378 = vmatprep.mubr.f32.mxu0 0.0
        %2379 = vmatmul.mubr.f32.gmra.mrb[0].mxu0 %v2268
        %v2380 = vpop.f32.mrb[0].mxu0
        %v2381 = vadd.f32 %v2253, %v2380
        %v2382 = vpop.f32.mrb[0].mxu0
        %2383 = vmatprep.mubr.f32.mxu0 0.0
        %2384 = vmatmul.mubr.f32.gmra.mrb[0].mxu0 %v2271
        %v2385 = vpop.f32.mrb[0].mxu0
        %v2386 = vadd.f32 %v2253, %v2385
        %v2387 = vpop.f32.mrb[0].mxu0
        %2388 = vmatprep.mubr.f32.mxu0 0.0
        %2389 = vmatmul.mubr.f32.gmra.mrb[0].mxu0 %v2274
        %v2390 = vpop.f32.mrb[0].mxu0
        %v2391 = vadd.f32 %v2253, %v2390
        %v2392 = vpop.f32.mrb[0].mxu0
        %2393 = vmatprep.mubr.f32.mxu0 0.0
        %2394 = vmatmul.mubr.f32.gmra.mrb[0].mxu0 %v2277
        %v2395 = vpop.f32.mrb[0].mxu0
        %v2396 = vadd.f32 %v2253, %v2395
        %v2397 = vpop.f32.mrb[0].mxu0
        %2398 = vmatprep.mubr.f32.mxu0 0.0
        %2399 = vmatmul.mubr.f32.gmra.mrb[0].mxu0 %v2280
        %v2400 = vpop.f32.mrb[0].mxu0
        %v2401 = vadd.f32 %v2253, %v2400
        %v2402 = vpop.f32.mrb[0].mxu0
        %2403 = vdwg.mxu0
        %v2404 = vadd.f32 %v815, %v2361
        %v2405 = vadd.f32 %v816, %v2366
        %v2406 = vadd.f32 %v817, %v2371
        %v2407 = vadd.f32 %v818, %v2376
        %v2408 = vadd.f32 %v819, %v2381
        %v2409 = vadd.f32 %v820, %v2386
        %v2410 = vadd.f32 %v821, %v2391
        %v2411 = vadd.f32 %v822, %v2396
        %v2412 = vadd.f32 %v823, %v2401
        %v2413 = vld [vmem:[%s11] sm:$0x1]
        %v2414 = vld [vmem:[%s12] sm:$0x1]
        %v2415 = vsel %vm784, %v2404, 0.0
        %2416 = vadd.xlane.f32.xlu0 %v2415
        %v2417 = vpop.xlane.xlu0 %2416
        %v2418 = vsel %vm784, %v2405, 0.0
        %2419 = vadd.xlane.f32.xlu0 %v2418
        %v2420 = vpop.xlane.xlu0 %2419
        %v2421 = vsel %vm784, %v2406, 0.0
        %2422 = vadd.xlane.f32.xlu0 %v2421
        %v2423 = vpop.xlane.xlu0 %2422
        %v2424 = vsel %vm784, %v2407, 0.0
        %2425 = vadd.xlane.f32.xlu0 %v2424
        %v2426 = vpop.xlane.xlu0 %2425
        %v2427 = vsel %vm784, %v2408, 0.0
        %2428 = vadd.xlane.f32.xlu0 %v2427
        %v2429 = vpop.xlane.xlu0 %2428
        %v2430 = vsel %vm784, %v2409, 0.0
        %2431 = vadd.xlane.f32.xlu0 %v2430
        %v2432 = vpop.xlane.xlu0 %2431
        %v2433 = vsel %vm784, %v2410, 0.0
        %2434 = vadd.xlane.f32.xlu0 %v2433
        %v2435 = vpop.xlane.xlu0 %2434
        %v2436 = vsel %vm784, %v2411, 0.0
        %2437 = vadd.xlane.f32.xlu0 %v2436
        %v2438 = vpop.xlane.xlu0 %2437
        %v2439 = vsel %vm784, %v2412, 0.0
        %2440 = vadd.xlane.f32.xlu0 %v2439
        %v2441 = vpop.xlane.xlu0 %2440
        %v2442 = vmul.f32 %v2417, %v855
        %v2443 = vmul.f32 %v2420, %v855
        %v2444 = vmul.f32 %v2423, %v855
        %v2445 = vmul.f32 %v2426, %v855
        %v2446 = vmul.f32 %v2429, %v855
        %v2447 = vmul.f32 %v2432, %v855
        %v2448 = vmul.f32 %v2435, %v855
        %v2449 = vmul.f32 %v2438, %v855
        %v2450 = vmul.f32 %v2441, %v855
        %v2451 = vsub.f32 %v2404, %v2442
        %v2452 = vsub.f32 %v2405, %v2443
        %v2453 = vsub.f32 %v2406, %v2444
        %v2454 = vsub.f32 %v2407, %v2445
        %v2455 = vsub.f32 %v2408, %v2446
        %v2456 = vsub.f32 %v2409, %v2447
        %v2457 = vsub.f32 %v2410, %v2448
        %v2458 = vsub.f32 %v2411, %v2449
        %v2459 = vsub.f32 %v2412, %v2450
        %v2460 = vmul.f32 %v2451, %v2451
        %v2461 = vmul.f32 %v2452, %v2452
        %v2462 = vmul.f32 %v2453, %v2453
        %v2463 = vmul.f32 %v2454, %v2454
        %v2464 = vmul.f32 %v2455, %v2455
        %v2465 = vmul.f32 %v2456, %v2456
        %v2466 = vmul.f32 %v2457, %v2457
        %v2467 = vmul.f32 %v2458, %v2458
        %v2468 = vmul.f32 %v2459, %v2459
        %v2469 = vsel %vm784, %v2460, 0.0
        %2470 = vadd.xlane.f32.xlu0 %v2469
        %v2471 = vpop.xlane.xlu0 %2470
        %v2472 = vsel %vm784, %v2461, 0.0
        %2473 = vadd.xlane.f32.xlu0 %v2472
        %v2474 = vpop.xlane.xlu0 %2473
        %v2475 = vsel %vm784, %v2462, 0.0
        %2476 = vadd.xlane.f32.xlu0 %v2475
        %v2477 = vpop.xlane.xlu0 %2476
        %v2478 = vsel %vm784, %v2463, 0.0
        %2479 = vadd.xlane.f32.xlu0 %v2478
        %v2480 = vpop.xlane.xlu0 %2479
        %v2481 = vsel %vm784, %v2464, 0.0
        %2482 = vadd.xlane.f32.xlu0 %v2481
        %v2483 = vpop.xlane.xlu0 %2482
        %v2484 = vsel %vm784, %v2465, 0.0
        %2485 = vadd.xlane.f32.xlu0 %v2484
        %v2486 = vpop.xlane.xlu0 %2485
        %v2487 = vsel %vm784, %v2466, 0.0
        %2488 = vadd.xlane.f32.xlu0 %v2487
        %v2489 = vpop.xlane.xlu0 %2488
        %v2490 = vsel %vm784, %v2467, 0.0
        %2491 = vadd.xlane.f32.xlu0 %v2490
        %v2492 = vpop.xlane.xlu0 %2491
        %v2493 = vsel %vm784, %v2468, 0.0
        %2494 = vadd.xlane.f32.xlu0 %v2493
        %v2495 = vpop.xlane.xlu0 %2494
        %v2496 = vmul.f32 %v2471, %v855
        %v2497 = vmul.f32 %v2474, %v855
        %v2498 = vmul.f32 %v2477, %v855
        %v2499 = vmul.f32 %v2480, %v855
        %v2500 = vmul.f32 %v2483, %v855
        %v2501 = vmul.f32 %v2486, %v855
        %v2502 = vmul.f32 %v2489, %v855
        %v2503 = vmul.f32 %v2492, %v855
        %v2504 = vmul.f32 %v2495, %v855
        %v2505 = vadd.f32 %v2496, 1e-05
        %v2506 = vadd.f32 %v2497, 1e-05
        %v2507 = vadd.f32 %v2498, 1e-05
        %v2508 = vadd.f32 %v2499, 1e-05
        %v2509 = vadd.f32 %v2500, 1e-05
        %v2510 = vadd.f32 %v2501, 1e-05
        %v2511 = vadd.f32 %v2502, 1e-05
        %v2512 = vadd.f32 %v2503, 1e-05
        %v2513 = vadd.f32 %v2504, 1e-05
        %v2514 = vrsqrt.pop %v2505
        %v2515 = vrsqrt.pop %v2506
        %v2516 = vrsqrt.pop %v2507
        %v2517 = vrsqrt.pop %v2508
        %v2518 = vrsqrt.pop %v2509
        %v2519 = vrsqrt.pop %v2510
        %v2520 = vrsqrt.pop %v2511
        %v2521 = vrsqrt.pop %v2512
        %v2522 = vrsqrt.pop %v2513
        %v2523 = vmul.f32 %v2451, %v2514
        %v2524 = vmul.f32 %v2452, %v2515
        %v2525 = vmul.f32 %v2453, %v2516
        %v2526 = vmul.f32 %v2454, %v2517
        %v2527 = vmul.f32 %v2455, %v2518
        %v2528 = vmul.f32 %v2456, %v2519
        %v2529 = vmul.f32 %v2457, %v2520
        %v2530 = vmul.f32 %v2458, %v2521
        %v2531 = vmul.f32 %v2459, %v2522
        %v2533 = vlaneseq
        %v2534 = vshrl.u32 %v2533, 7
        %v2535 = vsub.s32 0, %v2534
        %v2536 = vrot.slane %v2413, %v2535
        %v2538 = vmul.f32 %v2523, %v2536
        %v2539 = vmul.f32 %v2524, %v2536
        %v2540 = vmul.f32 %v2525, %v2536
        %v2541 = vmul.f32 %v2526, %v2536
        %v2542 = vmul.f32 %v2527, %v2536
        %v2543 = vmul.f32 %v2528, %v2536
        %v2544 = vmul.f32 %v2529, %v2536
        %v2545 = vmul.f32 %v2530, %v2536
        %v2546 = vmul.f32 %v2531, %v2536
        %v2548 = vlaneseq
        %v2549 = vshrl.u32 %v2548, 7
        %v2550 = vsub.s32 0, %v2549
        %v2551 = vrot.slane %v2414, %v2550
        %v2553 = vadd.f32 %v2538, %v2551
        %v2554 = vadd.f32 %v2539, %v2551
        %v2555 = vadd.f32 %v2540, %v2551
        %v2556 = vadd.f32 %v2541, %v2551
        %v2557 = vadd.f32 %v2542, %v2551
        %v2558 = vadd.f32 %v2543, %v2551
        %v2559 = vadd.f32 %v2544, %v2551
        %v2560 = vadd.f32 %v2545, %v2551
        %v2561 = vadd.f32 %v2546, %v2551
        %v2562 = vld [vmem:[%s13] sm:$0xff]
        %v2563 = vld [vmem:[%s13 + $0x8] sm:$0xff]
        %v2564 = vld [vmem:[%s13 + $0x10] sm:$0xff]
        %v2565 = vld [vmem:[%s13 + $0x18] sm:$0xff]
        %v2566 = vld [vmem:[%s13 + $0x20] sm:$0xff]
        %v2567 = vld [vmem:[%s13 + $0x28] sm:$0xff]
        %v2568 = vld [vmem:[%s13 + $0x30] sm:$0xff]
        %v2569 = vld [vmem:[%s13 + $0x38] sm:$0xff]
        %v2570 = vld [vmem:[%s13 + $0x40] sm:$0xff]
        %v2571 = vld [vmem:[%s13 + $0x48] sm:$0xff]
        %v2572 = vld [vmem:[%s13 + $0x50] sm:$0xff]
        %v2573 = vld [vmem:[%s13 + $0x58] sm:$0xff]
        %v2574 = vld [vmem:[%s13 + $0x60] sm:$0xff]
        %v2575 = vld [vmem:[%s13 + $0x68] sm:$0xff]
        %v2576 = vld [vmem:[%s13 + $0x70] sm:$0xff]
        %v2577 = vld [vmem:[%s13 + $0x78] sm:$0xff]
        %v2578 = vld [vmem:[%s14] sm:$0x1]
        %v2580 = vlaneseq
        %v2581 = vshrl.u32 %v2580, 7
        %v2582 = vsub.s32 0, %v2581
        %v2583 = vrot.slane %v2578, %v2582
        %v2586 = vsel %vm784, %v2553, 0
        %v2589 = vsel %vm784, %v2554, 0
        %v2592 = vsel %vm784, %v2555, 0
        %v2595 = vsel %vm784, %v2556, 0
        %v2598 = vsel %vm784, %v2557, 0
        %v2601 = vsel %vm784, %v2558, 0
        %v2604 = vsel %vm784, %v2559, 0
        %v2607 = vsel %vm784, %v2560, 0
        %v2610 = vsel %vm784, %v2561, 0
        %v2613 = vsel %vm784, %v2562, 0
        %v2616 = vsel %vm784, %v2563, 0
        %v2619 = vsel %vm784, %v2564, 0
        %v2622 = vsel %vm784, %v2565, 0
        %v2625 = vsel %vm784, %v2566, 0
        %v2628 = vsel %vm784, %v2567, 0
        %v2631 = vsel %vm784, %v2568, 0
        %v2634 = vsel %vm784, %v2569, 0
        %v2637 = vsel %vm784, %v2570, 0
        %v2640 = vsel %vm784, %v2571, 0
        %v2643 = vsel %vm784, %v2572, 0
        %v2646 = vsel %vm784, %v2573, 0
        %v2649 = vsel %vm784, %v2574, 0
        %v2652 = vsel %vm784, %v2575, 0
        %v2655 = vsel %vm784, %v2576, 0
        %v2658 = vsel %vm784, %v2577, 0
        %2660 = vmatprep.subr.mxu0 0.0
        %2661 = vmatpush1.xpose.msra.mxu0 %v2613
        %2662 = vmatprep.subr.mxu0 0.0
        %2663 = vmatpush1.xpose.msra.mxu0 %v2616
        %2664 = vmatprep.subr.mxu0 0.0
        %2665 = vmatpush1.xpose.msra.mxu0 %v2619
        %2666 = vmatprep.subr.mxu0 0.0
        %2667 = vmatpush1.xpose.msra.mxu0 %v2622
        %2668 = vmatprep.subr.mxu0 0.0
        %2669 = vmatpush1.xpose.msra.mxu0 %v2625
        %2670 = vmatprep.subr.mxu0 0.0
        %2671 = vmatpush1.xpose.msra.mxu0 %v2628
        %2672 = vmatprep.subr.mxu0 0.0
        %2673 = vmatpush1.xpose.msra.mxu0 %v2631
        %2674 = vmatprep.subr.mxu0 0.0
        %2675 = vmatpush1.xpose.msra.mxu0 %v2634
        %2676 = vmatprep.subr.mxu0 0.0
        %2677 = vmatpush1.xpose.msra.mxu0 %v2637
        %2678 = vmatprep.subr.mxu0 0.0
        %2679 = vmatpush1.xpose.msra.mxu0 %v2640
        %2680 = vmatprep.subr.mxu0 0.0
        %2681 = vmatpush1.xpose.msra.mxu0 %v2643
        %2682 = vmatprep.subr.mxu0 0.0
        %2683 = vmatpush1.xpose.msra.mxu0 %v2646
        %2684 = vmatprep.subr.mxu0 0.0
        %2685 = vmatpush1.xpose.msra.mxu0 %v2649
        %2686 = vmatprep.subr.mxu0 0.0
        %2687 = vmatpush1.xpose.msra.mxu0 %v2652
        %2688 = vmatprep.subr.mxu0 0.0
        %2689 = vmatpush1.xpose.msra.mxu0 %v2655
        %2690 = vmatprep.subr.mxu0 0.0
        %2691 = vmatpush1.xpose.msra.mxu0 %v2658
        %2692 = vmatprep.subr.mxu0 0.0
        %2693 = vmatpush1.xpose.msra.mxu0 0.0
        %2694 = vmatprep.subr.mxu0 0.0
        %2695 = vmatpush1.xpose.msra.mxu0 0.0
        %2696 = vmatprep.subr.mxu0 0.0
        %2697 = vmatpush1.xpose.msra.mxu0 0.0
        %2698 = vmatprep.subr.mxu0 0.0
        %2699 = vmatpush1.xpose.msra.mxu0 0.0
        %2700 = vmatprep.subr.mxu0 0.0
        %2701 = vmatpush1.xpose.msra.mxu0 0.0
        %2702 = vmatprep.subr.mxu0 0.0
        %2703 = vmatpush1.xpose.msra.mxu0 0.0
        %2704 = vmatprep.subr.mxu0 0.0
        %2705 = vmatpush1.xpose.msra.mxu0 0.0
        %2706 = vmatprep.subr.mxu0 0.0
        %2707 = vmatpush1.xpose.msra.mxu0 0.0
        %2708 = vmatprep.subr.mxu0 0.0
        %2709 = vmatpush1.xpose.msra.mxu0 0.0
        %2710 = vmatprep.subr.mxu0 0.0
        %2711 = vmatpush1.xpose.msra.mxu0 0.0
        %2712 = vmatprep.subr.mxu0 0.0
        %2713 = vmatpush1.xpose.msra.mxu0 0.0
        %2714 = vmatprep.subr.mxu0 0.0
        %2715 = vmatpush1.xpose.msra.mxu0 0.0
        %2716 = vmatprep.subr.mxu0 0.0
        %2717 = vmatpush1.xpose.msra.mxu0 0.0
        %2718 = vmatprep.subr.mxu0 0.0
        %2719 = vmatpush1.xpose.msra.mxu0 0.0
        %2720 = vmatprep.subr.mxu0 0.0
        %2721 = vmatpush1.xpose.msra.mxu0 0.0
        %2722 = vmatprep.subr.mxu0 0.0
        %2723 = vmatpush1.xpose.msra.mxu0 0.0
        %2724 = vmatprep.mubr.f32.mxu0 0.0
        %2725 = vmatmul.mubr.f32.gmra.mrb[0].mxu0 %v2586
        %v2726 = vpop.f32.mrb[0].mxu0
        %v2727 = vadd.f32 %v2583, %v2726
        %v2728 = vpop.f32.mrb[0].mxu0
        %2729 = vmatprep.mubr.f32.mxu0 0.0
        %2730 = vmatmul.mubr.f32.gmra.mrb[0].mxu0 %v2589
        %v2731 = vpop.f32.mrb[0].mxu0
        %v2732 = vadd.f32 %v2583, %v2731
        %v2733 = vpop.f32.mrb[0].mxu0
        %2734 = vmatprep.mubr.f32.mxu0 0.0
        %2735 = vmatmul.mubr.f32.gmra.mrb[0].mxu0 %v2592
        %v2736 = vpop.f32.mrb[0].mxu0
        %v2737 = vadd.f32 %v2583, %v2736
        %v2738 = vpop.f32.mrb[0].mxu0
        %2739 = vmatprep.mubr.f32.mxu0 0.0
        %2740 = vmatmul.mubr.f32.gmra.mrb[0].mxu0 %v2595
        %v2741 = vpop.f32.mrb[0].mxu0
        %v2742 = vadd.f32 %v2583, %v2741
        %v2743 = vpop.f32.mrb[0].mxu0
        %2744 = vmatprep.mubr.f32.mxu0 0.0
        %2745 = vmatmul.mubr.f32.gmra.mrb[0].mxu0 %v2598
        %v2746 = vpop.f32.mrb[0].mxu0
        %v2747 = vadd.f32 %v2583, %v2746
        %v2748 = vpop.f32.mrb[0].mxu0
        %2749 = vmatprep.mubr.f32.mxu0 0.0
        %2750 = vmatmul.mubr.f32.gmra.mrb[0].mxu0 %v2601
        %v2751 = vpop.f32.mrb[0].mxu0
        %v2752 = vadd.f32 %v2583, %v2751
        %v2753 = vpop.f32.mrb[0].mxu0
        %2754 = vmatprep.mubr.f32.mxu0 0.0
        %2755 = vmatmul.mubr.f32.gmra.mrb[0].mxu0 %v2604
        %v2756 = vpop.f32.mrb[0].mxu0
        %v2757 = vadd.f32 %v2583, %v2756
        %v2758 = vpop.f32.mrb[0].mxu0
        %2759 = vmatprep.mubr.f32.mxu0 0.0
        %2760 = vmatmul.mubr.f32.gmra.mrb[0].mxu0 %v2607
        %v2761 = vpop.f32.mrb[0].mxu0
        %v2762 = vadd.f32 %v2583, %v2761
        %v2763 = vpop.f32.mrb[0].mxu0
        %2764 = vmatprep.mubr.f32.mxu0 0.0
        %2765 = vmatmul.mubr.f32.gmra.mrb[0].mxu0 %v2610
        %v2766 = vpop.f32.mrb[0].mxu0
        %v2767 = vadd.f32 %v2583, %v2766
        %v2768 = vpop.f32.mrb[0].mxu0
        %2769 = vdwg.mxu0
        %v2770 = vmul.f32 %v2727, %v2727
        %v2771 = vmul.f32 %v2732, %v2732
        %v2772 = vmul.f32 %v2737, %v2737
        %v2773 = vmul.f32 %v2742, %v2742
        %v2774 = vmul.f32 %v2747, %v2747
        %v2775 = vmul.f32 %v2752, %v2752
        %v2776 = vmul.f32 %v2757, %v2757
        %v2777 = vmul.f32 %v2762, %v2762
        %v2778 = vmul.f32 %v2767, %v2767
        %v2779 = vmul.f32 %v2727, %v2770
        %v2780 = vmul.f32 %v2732, %v2771
        %v2781 = vmul.f32 %v2737, %v2772
        %v2782 = vmul.f32 %v2742, %v2773
        %v2783 = vmul.f32 %v2747, %v2774
        %v2784 = vmul.f32 %v2752, %v2775
        %v2785 = vmul.f32 %v2757, %v2776
        %v2786 = vmul.f32 %v2762, %v2777
        %v2787 = vmul.f32 %v2767, %v2778
        %v2788 = vmul.f32 %v2779, 0.044715
        %v2789 = vmul.f32 %v2780, 0.044715
        %v2790 = vmul.f32 %v2781, 0.044715
        %v2791 = vmul.f32 %v2782, 0.044715
        %v2792 = vmul.f32 %v2783, 0.044715
        %v2793 = vmul.f32 %v2784, 0.044715
        %v2794 = vmul.f32 %v2785, 0.044715
        %v2795 = vmul.f32 %v2786, 0.044715
        %v2796 = vmul.f32 %v2787, 0.044715
        %v2797 = vadd.f32 %v2727, %v2788
        %v2798 = vadd.f32 %v2732, %v2789
        %v2799 = vadd.f32 %v2737, %v2790
        %v2800 = vadd.f32 %v2742, %v2791
        %v2801 = vadd.f32 %v2747, %v2792
        %v2802 = vadd.f32 %v2752, %v2793
        %v2803 = vadd.f32 %v2757, %v2794
        %v2804 = vadd.f32 %v2762, %v2795
        %v2805 = vadd.f32 %v2767, %v2796
        %v2806 = vmul.f32 %v2797, 0.7978846
        %v2807 = vmul.f32 %v2798, 0.7978846
        %v2808 = vmul.f32 %v2799, 0.7978846
        %v2809 = vmul.f32 %v2800, 0.7978846
        %v2810 = vmul.f32 %v2801, 0.7978846
        %v2811 = vmul.f32 %v2802, 0.7978846
        %v2812 = vmul.f32 %v2803, 0.7978846
        %v2813 = vmul.f32 %v2804, 0.7978846
        %v2814 = vmul.f32 %v2805, 0.7978846
        %v2815 = vtanh.pop %v2806
        %v2816 = vtanh.pop %v2807
        %v2817 = vtanh.pop %v2808
        %v2818 = vtanh.pop %v2809
        %v2819 = vtanh.pop %v2810
        %v2820 = vtanh.pop %v2811
        %v2821 = vtanh.pop %v2812
        %v2822 = vtanh.pop %v2813
        %v2823 = vtanh.pop %v2814
        %v2824 = vadd.f32 %v2815, 1.0
        %v2825 = vadd.f32 %v2816, 1.0
        %v2826 = vadd.f32 %v2817, 1.0
        %v2827 = vadd.f32 %v2818, 1.0
        %v2828 = vadd.f32 %v2819, 1.0
        %v2829 = vadd.f32 %v2820, 1.0
        %v2830 = vadd.f32 %v2821, 1.0
        %v2831 = vadd.f32 %v2822, 1.0
        %v2832 = vadd.f32 %v2823, 1.0
        %v2833 = vmul.f32 %v2824, 0.5
        %v2834 = vmul.f32 %v2825, 0.5
        %v2835 = vmul.f32 %v2826, 0.5
        %v2836 = vmul.f32 %v2827, 0.5
        %v2837 = vmul.f32 %v2828, 0.5
        %v2838 = vmul.f32 %v2829, 0.5
        %v2839 = vmul.f32 %v2830, 0.5
        %v2840 = vmul.f32 %v2831, 0.5
        %v2841 = vmul.f32 %v2832, 0.5
        %v2842 = vmul.f32 %v2727, %v2833
        %v2843 = vmul.f32 %v2732, %v2834
        %v2844 = vmul.f32 %v2737, %v2835
        %v2845 = vmul.f32 %v2742, %v2836
        %v2846 = vmul.f32 %v2747, %v2837
        %v2847 = vmul.f32 %v2752, %v2838
        %v2848 = vmul.f32 %v2757, %v2839
        %v2849 = vmul.f32 %v2762, %v2840
        %v2850 = vmul.f32 %v2767, %v2841
        %v2851 = vld [vmem:[%s15] sm:$0xff]
        %v2852 = vld [vmem:[%s15 + $0x8] sm:$0xff]
        %v2853 = vld [vmem:[%s15 + $0x10] sm:$0xff]
        %v2854 = vld [vmem:[%s15 + $0x18] sm:$0xff]
        %v2855 = vld [vmem:[%s16] sm:$0x1]
        %v2857 = vlaneseq
        %v2858 = vshrl.u32 %v2857, 7
        %v2859 = vsub.s32 0, %v2858
        %v2860 = vrot.slane %v2855, %v2859
        %2862 = vmatprep.subr.mxu0 0.0
        %2863 = vmatpush1.xpose.msra.mxu0 %v2851
        %2864 = vmatprep.subr.mxu0 0.0
        %2865 = vmatpush1.xpose.msra.mxu0 %v2852
        %2866 = vmatprep.subr.mxu0 0.0
        %2867 = vmatpush1.xpose.msra.mxu0 %v2853
        %2868 = vmatprep.subr.mxu0 0.0
        %2869 = vmatpush1.xpose.msra.mxu0 %v2854
        %2870 = vmatprep.subr.mxu0 0.0
        %2871 = vmatpush1.xpose.msra.mxu0 0.0
        %2872 = vmatprep.subr.mxu0 0.0
        %2873 = vmatpush1.xpose.msra.mxu0 0.0
        %2874 = vmatprep.subr.mxu0 0.0
        %2875 = vmatpush1.xpose.msra.mxu0 0.0
        %2876 = vmatprep.subr.mxu0 0.0
        %2877 = vmatpush1.xpose.msra.mxu0 0.0
        %2878 = vmatprep.subr.mxu0 0.0
        %2879 = vmatpush1.xpose.msra.mxu0 0.0
        %2880 = vmatprep.subr.mxu0 0.0
        %2881 = vmatpush1.xpose.msra.mxu0 0.0
        %2882 = vmatprep.subr.mxu0 0.0
        %2883 = vmatpush1.xpose.msra.mxu0 0.0
        %2884 = vmatprep.subr.mxu0 0.0
        %2885 = vmatpush1.xpose.msra.mxu0 0.0
        %2886 = vmatprep.subr.mxu0 0.0
        %2887 = vmatpush1.xpose.msra.mxu0 0.0
        %2888 = vmatprep.subr.mxu0 0.0
        %2889 = vmatpush1.xpose.msra.mxu0 0.0
        %2890 = vmatprep.subr.mxu0 0.0
        %2891 = vmatpush1.xpose.msra.mxu0 0.0
        %2892 = vmatprep.subr.mxu0 0.0
        %2893 = vmatpush1.xpose.msra.mxu0 0.0
        %2894 = vmatprep.subr.mxu0 0.0
        %2895 = vmatpush1.xpose.msra.mxu0 0.0
        %2896 = vmatprep.subr.mxu0 0.0
        %2897 = vmatpush1.xpose.msra.mxu0 0.0
        %2898 = vmatprep.subr.mxu0 0.0
        %2899 = vmatpush1.xpose.msra.mxu0 0.0
        %2900 = vmatprep.subr.mxu0 0.0
        %2901 = vmatpush1.xpose.msra.mxu0 0.0
        %2902 = vmatprep.subr.mxu0 0.0
        %2903 = vmatpush1.xpose.msra.mxu0 0.0
        %2904 = vmatprep.subr.mxu0 0.0
        %2905 = vmatpush1.xpose.msra.mxu0 0.0
        %2906 = vmatprep.subr.mxu0 0.0
        %2907 = vmatpush1.xpose.msra.mxu0 0.0
        %2908 = vmatprep.subr.mxu0 0.0
        %2909 = vmatpush1.xpose.msra.mxu0 0.0
        %2910 = vmatprep.subr.mxu0 0.0
        %2911 = vmatpush1.xpose.msra.mxu0 0.0
        %2912 = vmatprep.subr.mxu0 0.0
        %2913 = vmatpush1.xpose.msra.mxu0 0.0
        %2914 = vmatprep.subr.mxu0 0.0
        %2915 = vmatpush1.xpose.msra.mxu0 0.0
        %2916 = vmatprep.subr.mxu0 0.0
        %2917 = vmatpush1.xpose.msra.mxu0 0.0
        %2918 = vmatprep.subr.mxu0 0.0
        %2919 = vmatpush1.xpose.msra.mxu0 0.0
        %2920 = vmatprep.subr.mxu0 0.0
        %2921 = vmatpush1.xpose.msra.mxu0 0.0
        %2922 = vmatprep.subr.mxu0 0.0
        %2923 = vmatpush1.xpose.msra.mxu0 0.0
        %2924 = vmatprep.subr.mxu0 0.0
        %2925 = vmatpush1.xpose.msra.mxu0 0.0
        %2926 = vmatprep.mubr.f32.mxu0 0.0
        %2927 = vmatmul.mubr.f32.gmra.mrb[0].mxu0 %v2842
        %v2928 = vpop.f32.mrb[0].mxu0
        %v2929 = vadd.f32 %v2860, %v2928
        %v2930 = vpop.f32.mrb[0].mxu0
        %2931 = vmatprep.mubr.f32.mxu0 0.0
        %2932 = vmatmul.mubr.f32.gmra.mrb[0].mxu0 %v2843
        %v2933 = vpop.f32.mrb[0].mxu0
        %v2934 = vadd.f32 %v2860, %v2933
        %v2935 = vpop.f32.mrb[0].mxu0
        %2936 = vmatprep.mubr.f32.mxu0 0.0
        %2937 = vmatmul.mubr.f32.gmra.mrb[0].mxu0 %v2844
        %v2938 = vpop.f32.mrb[0].mxu0
        %v2939 = vadd.f32 %v2860, %v2938
        %v2940 = vpop.f32.mrb[0].mxu0
        %2941 = vmatprep.mubr.f32.mxu0 0.0
        %2942 = vmatmul.mubr.f32.gmra.mrb[0].mxu0 %v2845
        %v2943 = vpop.f32.mrb[0].mxu0
        %v2944 = vadd.f32 %v2860, %v2943
        %v2945 = vpop.f32.mrb[0].mxu0
        %2946 = vmatprep.mubr.f32.mxu0 0.0
        %2947 = vmatmul.mubr.f32.gmra.mrb[0].mxu0 %v2846
        %v2948 = vpop.f32.mrb[0].mxu0
        %v2949 = vadd.f32 %v2860, %v2948
        %v2950 = vpop.f32.mrb[0].mxu0
        %2951 = vmatprep.mubr.f32.mxu0 0.0
        %2952 = vmatmul.mubr.f32.gmra.mrb[0].mxu0 %v2847
        %v2953 = vpop.f32.mrb[0].mxu0
        %v2954 = vadd.f32 %v2860, %v2953
        %v2955 = vpop.f32.mrb[0].mxu0
        %2956 = vmatprep.mubr.f32.mxu0 0.0
        %2957 = vmatmul.mubr.f32.gmra.mrb[0].mxu0 %v2848
        %v2958 = vpop.f32.mrb[0].mxu0
        %v2959 = vadd.f32 %v2860, %v2958
        %v2960 = vpop.f32.mrb[0].mxu0
        %2961 = vmatprep.mubr.f32.mxu0 0.0
        %2962 = vmatmul.mubr.f32.gmra.mrb[0].mxu0 %v2849
        %v2963 = vpop.f32.mrb[0].mxu0
        %v2964 = vadd.f32 %v2860, %v2963
        %v2965 = vpop.f32.mrb[0].mxu0
        %2966 = vmatprep.mubr.f32.mxu0 0.0
        %2967 = vmatmul.mubr.f32.gmra.mrb[0].mxu0 %v2850
        %v2968 = vpop.f32.mrb[0].mxu0
        %v2969 = vadd.f32 %v2860, %v2968
        %v2970 = vpop.f32.mrb[0].mxu0
        %2971 = vdwg.mxu0
        %v2972 = vadd.f32 %v2404, %v2929
        %v2973 = vadd.f32 %v2405, %v2934
        %v2974 = vadd.f32 %v2406, %v2939
        %v2975 = vadd.f32 %v2407, %v2944
        %v2976 = vadd.f32 %v2408, %v2949
        %v2977 = vadd.f32 %v2409, %v2954
        %v2978 = vadd.f32 %v2410, %v2959
        %v2979 = vadd.f32 %v2411, %v2964
        %v2980 = vadd.f32 %v2412, %v2969
        %s2981 = scalar_lea.vmem %s5, 1
        %v2982 = vld [vmem:[%s2981] sm:$0x1]
        %s2983 = scalar_lea.vmem %s6, 1
        %v2984 = vld [vmem:[%s2983] sm:$0x1]
        %v2985 = vsel %vm784, %v2972, 0.0
        %2986 = vadd.xlane.f32.xlu0 %v2985
        %v2987 = vpop.xlane.xlu0 %2986
        %v2988 = vsel %vm784, %v2973, 0.0
        %2989 = vadd.xlane.f32.xlu0 %v2988
        %v2990 = vpop.xlane.xlu0 %2989
        %v2991 = vsel %vm784, %v2974, 0.0
        %2992 = vadd.xlane.f32.xlu0 %v2991
        %v2993 = vpop.xlane.xlu0 %2992
        %v2994 = vsel %vm784, %v2975, 0.0
        %2995 = vadd.xlane.f32.xlu0 %v2994
        %v2996 = vpop.xlane.xlu0 %2995
        %v2997 = vsel %vm784, %v2976, 0.0
        %2998 = vadd.xlane.f32.xlu0 %v2997
        %v2999 = vpop.xlane.xlu0 %2998
        %v3000 = vsel %vm784, %v2977, 0.0
        %3001 = vadd.xlane.f32.xlu0 %v3000
        %v3002 = vpop.xlane.xlu0 %3001
        %v3003 = vsel %vm784, %v2978, 0.0
        %3004 = vadd.xlane.f32.xlu0 %v3003
        %v3005 = vpop.xlane.xlu0 %3004
        %v3006 = vsel %vm784, %v2979, 0.0
        %3007 = vadd.xlane.f32.xlu0 %v3006
        %v3008 = vpop.xlane.xlu0 %3007
        %v3009 = vsel %vm784, %v2980, 0.0
        %3010 = vadd.xlane.f32.xlu0 %v3009
        %v3011 = vpop.xlane.xlu0 %3010
        %v3012 = vmul.f32 %v2987, %v855
        %v3013 = vmul.f32 %v2990, %v855
        %v3014 = vmul.f32 %v2993, %v855
        %v3015 = vmul.f32 %v2996, %v855
        %v3016 = vmul.f32 %v2999, %v855
        %v3017 = vmul.f32 %v3002, %v855
        %v3018 = vmul.f32 %v3005, %v855
        %v3019 = vmul.f32 %v3008, %v855
        %v3020 = vmul.f32 %v3011, %v855
        %v3021 = vsub.f32 %v2972, %v3012
        %v3022 = vsub.f32 %v2973, %v3013
        %v3023 = vsub.f32 %v2974, %v3014
        %v3024 = vsub.f32 %v2975, %v3015
        %v3025 = vsub.f32 %v2976, %v3016
        %v3026 = vsub.f32 %v2977, %v3017
        %v3027 = vsub.f32 %v2978, %v3018
        %v3028 = vsub.f32 %v2979, %v3019
        %v3029 = vsub.f32 %v2980, %v3020
        %v3030 = vmul.f32 %v3021, %v3021
        %v3031 = vmul.f32 %v3022, %v3022
        %v3032 = vmul.f32 %v3023, %v3023
        %v3033 = vmul.f32 %v3024, %v3024
        %v3034 = vmul.f32 %v3025, %v3025
        %v3035 = vmul.f32 %v3026, %v3026
        %v3036 = vmul.f32 %v3027, %v3027
        %v3037 = vmul.f32 %v3028, %v3028
        %v3038 = vmul.f32 %v3029, %v3029
        %v3039 = vsel %vm784, %v3030, 0.0
        %3040 = vadd.xlane.f32.xlu0 %v3039
        %v3041 = vpop.xlane.xlu0 %3040
        %v3042 = vsel %vm784, %v3031, 0.0
        %3043 = vadd.xlane.f32.xlu0 %v3042
        %v3044 = vpop.xlane.xlu0 %3043
        %v3045 = vsel %vm784, %v3032, 0.0
        %3046 = vadd.xlane.f32.xlu0 %v3045
        %v3047 = vpop.xlane.xlu0 %3046
        %v3048 = vsel %vm784, %v3033, 0.0
        %3049 = vadd.xlane.f32.xlu0 %v3048
        %v3050 = vpop.xlane.xlu0 %3049
        %v3051 = vsel %vm784, %v3034, 0.0
        %3052 = vadd.xlane.f32.xlu0 %v3051
        %v3053 = vpop.xlane.xlu0 %3052
        %v3054 = vsel %vm784, %v3035, 0.0
        %3055 = vadd.xlane.f32.xlu0 %v3054
        %v3056 = vpop.xlane.xlu0 %3055
        %v3057 = vsel %vm784, %v3036, 0.0
        %3058 = vadd.xlane.f32.xlu0 %v3057
        %v3059 = vpop.xlane.xlu0 %3058
        %v3060 = vsel %vm784, %v3037, 0.0
        %3061 = vadd.xlane.f32.xlu0 %v3060
        %v3062 = vpop.xlane.xlu0 %3061
        %v3063 = vsel %vm784, %v3038, 0.0
        %3064 = vadd.xlane.f32.xlu0 %v3063
        %v3065 = vpop.xlane.xlu0 %3064
        %v3066 = vmul.f32 %v3041, %v855
        %v3067 = vmul.f32 %v3044, %v855
        %v3068 = vmul.f32 %v3047, %v855
        %v3069 = vmul.f32 %v3050, %v855
        %v3070 = vmul.f32 %v3053, %v855
        %v3071 = vmul.f32 %v3056, %v855
        %v3072 = vmul.f32 %v3059, %v855
        %v3073 = vmul.f32 %v3062, %v855
        %v3074 = vmul.f32 %v3065, %v855
        %v3075 = vadd.f32 %v3066, 1e-05
        %v3076 = vadd.f32 %v3067, 1e-05
        %v3077 = vadd.f32 %v3068, 1e-05
        %v3078 = vadd.f32 %v3069, 1e-05
        %v3079 = vadd.f32 %v3070, 1e-05
        %v3080 = vadd.f32 %v3071, 1e-05
        %v3081 = vadd.f32 %v3072, 1e-05
        %v3082 = vadd.f32 %v3073, 1e-05
        %v3083 = vadd.f32 %v3074, 1e-05
        %v3084 = vrsqrt.pop %v3075
        %v3085 = vrsqrt.pop %v3076
        %v3086 = vrsqrt.pop %v3077
        %v3087 = vrsqrt.pop %v3078
        %v3088 = vrsqrt.pop %v3079
        %v3089 = vrsqrt.pop %v3080
        %v3090 = vrsqrt.pop %v3081
        %v3091 = vrsqrt.pop %v3082
        %v3092 = vrsqrt.pop %v3083
        %v3093 = vmul.f32 %v3021, %v3084
        %v3094 = vmul.f32 %v3022, %v3085
        %v3095 = vmul.f32 %v3023, %v3086
        %v3096 = vmul.f32 %v3024, %v3087
        %v3097 = vmul.f32 %v3025, %v3088
        %v3098 = vmul.f32 %v3026, %v3089
        %v3099 = vmul.f32 %v3027, %v3090
        %v3100 = vmul.f32 %v3028, %v3091
        %v3101 = vmul.f32 %v3029, %v3092
        %v3103 = vlaneseq
        %v3104 = vshrl.u32 %v3103, 7
        %v3105 = vsub.s32 0, %v3104
        %v3106 = vrot.slane %v2982, %v3105
        %v3108 = vmul.f32 %v3093, %v3106
        %v3109 = vmul.f32 %v3094, %v3106
        %v3110 = vmul.f32 %v3095, %v3106
        %v3111 = vmul.f32 %v3096, %v3106
        %v3112 = vmul.f32 %v3097, %v3106
        %v3113 = vmul.f32 %v3098, %v3106
        %v3114 = vmul.f32 %v3099, %v3106
        %v3115 = vmul.f32 %v3100, %v3106
        %v3116 = vmul.f32 %v3101, %v3106
        %v3118 = vlaneseq
        %v3119 = vshrl.u32 %v3118, 7
        %v3120 = vsub.s32 0, %v3119
        %v3121 = vrot.slane %v2984, %v3120
        %v3123 = vadd.f32 %v3108, %v3121
        %v3124 = vadd.f32 %v3109, %v3121
        %v3125 = vadd.f32 %v3110, %v3121
        %v3126 = vadd.f32 %v3111, %v3121
        %v3127 = vadd.f32 %v3112, %v3121
        %v3128 = vadd.f32 %v3113, %v3121
        %v3129 = vadd.f32 %v3114, %v3121
        %v3130 = vadd.f32 %v3115, %v3121
        %v3131 = vadd.f32 %v3116, %v3121
        %s3132 = scalar_lea.vmem %s7, 96
        %v3133 = vld [vmem:[%s3132] sm:$0xff]
        %v3134 = vld [vmem:[%s3132 + $0x8] sm:$0xff]
        %v3135 = vld [vmem:[%s3132 + $0x10] sm:$0xff]
        %v3136 = vld [vmem:[%s3132 + $0x18] sm:$0xff]
        %s3137 = scalar_lea.vmem %s8, 3
        %v3138 = vld [vmem:[%s3137] sm:$0x1]
        %v3140 = vlaneseq
        %v3141 = vshrl.u32 %v3140, 7
        %v3142 = vsub.s32 0, %v3141
        %v3143 = vrot.slane %v3138, %v3142
        %v3146 = vsel %vm784, %v3123, 0
        %v3149 = vsel %vm784, %v3124, 0
        %v3152 = vsel %vm784, %v3125, 0
        %v3155 = vsel %vm784, %v3126, 0
        %v3158 = vsel %vm784, %v3127, 0
        %v3161 = vsel %vm784, %v3128, 0
        %v3164 = vsel %vm784, %v3129, 0
        %v3167 = vsel %vm784, %v3130, 0
        %v3170 = vsel %vm784, %v3131, 0
        %v3173 = vsel %vm784, %v3133, 0
        %v3176 = vsel %vm784, %v3134, 0
        %v3179 = vsel %vm784, %v3135, 0
        %v3182 = vsel %vm784, %v3136, 0
        %3184 = vmatprep.subr.mxu0 0.0
        %3185 = vmatpush1.xpose.msra.mxu0 %v3173
        %3186 = vmatprep.subr.mxu0 0.0
        %3187 = vmatpush1.xpose.msra.mxu0 %v3176
        %3188 = vmatprep.subr.mxu0 0.0
        %3189 = vmatpush1.xpose.msra.mxu0 %v3179
        %3190 = vmatprep.subr.mxu0 0.0
        %3191 = vmatpush1.xpose.msra.mxu0 %v3182
        %3192 = vmatprep.subr.mxu0 0.0
        %3193 = vmatpush1.xpose.msra.mxu0 0.0
        %3194 = vmatprep.subr.mxu0 0.0
        %3195 = vmatpush1.xpose.msra.mxu0 0.0
        %3196 = vmatprep.subr.mxu0 0.0
        %3197 = vmatpush1.xpose.msra.mxu0 0.0
        %3198 = vmatprep.subr.mxu0 0.0
        %3199 = vmatpush1.xpose.msra.mxu0 0.0
        %3200 = vmatprep.subr.mxu0 0.0
        %3201 = vmatpush1.xpose.msra.mxu0 0.0
        %3202 = vmatprep.subr.mxu0 0.0
        %3203 = vmatpush1.xpose.msra.mxu0 0.0
        %3204 = vmatprep.subr.mxu0 0.0
        %3205 = vmatpush1.xpose.msra.mxu0 0.0
        %3206 = vmatprep.subr.mxu0 0.0
        %3207 = vmatpush1.xpose.msra.mxu0 0.0
        %3208 = vmatprep.subr.mxu0 0.0
        %3209 = vmatpush1.xpose.msra.mxu0 0.0
        %3210 = vmatprep.subr.mxu0 0.0
        %3211 = vmatpush1.xpose.msra.mxu0 0.0
        %3212 = vmatprep.subr.mxu0 0.0
        %3213 = vmatpush1.xpose.msra.mxu0 0.0
        %3214 = vmatprep.subr.mxu0 0.0
        %3215 = vmatpush1.xpose.msra.mxu0 0.0
        %3216 = vmatprep.subr.mxu0 0.0
        %3217 = vmatpush1.xpose.msra.mxu0 0.0
        %3218 = vmatprep.subr.mxu0 0.0
        %3219 = vmatpush1.xpose.msra.mxu0 0.0
        %3220 = vmatprep.subr.mxu0 0.0
        %3221 = vmatpush1.xpose.msra.mxu0 0.0
        %3222 = vmatprep.subr.mxu0 0.0
        %3223 = vmatpush1.xpose.msra.mxu0 0.0
        %3224 = vmatprep.subr.mxu0 0.0
        %3225 = vmatpush1.xpose.msra.mxu0 0.0
        %3226 = vmatprep.subr.mxu0 0.0
        %3227 = vmatpush1.xpose.msra.mxu0 0.0
        %3228 = vmatprep.subr.mxu0 0.0
        %3229 = vmatpush1.xpose.msra.mxu0 0.0
        %3230 = vmatprep.subr.mxu0 0.0
        %3231 = vmatpush1.xpose.msra.mxu0 0.0
        %3232 = vmatprep.subr.mxu0 0.0
        %3233 = vmatpush1.xpose.msra.mxu0 0.0
        %3234 = vmatprep.subr.mxu0 0.0
        %3235 = vmatpush1.xpose.msra.mxu0 0.0
        %3236 = vmatprep.subr.mxu0 0.0
        %3237 = vmatpush1.xpose.msra.mxu0 0.0
        %3238 = vmatprep.subr.mxu0 0.0
        %3239 = vmatpush1.xpose.msra.mxu0 0.0
        %3240 = vmatprep.subr.mxu0 0.0
        %3241 = vmatpush1.xpose.msra.mxu0 0.0
        %3242 = vmatprep.subr.mxu0 0.0
        %3243 = vmatpush1.xpose.msra.mxu0 0.0
        %3244 = vmatprep.subr.mxu0 0.0
        %3245 = vmatpush1.xpose.msra.mxu0 0.0
        %3246 = vmatprep.subr.mxu0 0.0
        %3247 = vmatpush1.xpose.msra.mxu0 0.0
        %3248 = vmatprep.mubr.f32.mxu0 0.0
        %3249 = vmatmul.mubr.f32.gmra.mrb[0].mxu0 %v3146
        %v3250 = vpop.f32.mrb[0].mxu0
        %v3251 = vadd.f32 %v3143, %v3250
        %v3252 = vpop.f32.mrb[0].mxu0
        %3253 = vmatprep.mubr.f32.mxu0 0.0
        %3254 = vmatmul.mubr.f32.gmra.mrb[0].mxu0 %v3149
        %v3255 = vpop.f32.mrb[0].mxu0
        %v3256 = vadd.f32 %v3143, %v3255
        %v3257 = vpop.f32.mrb[0].mxu0
        %3258 = vmatprep.mubr.f32.mxu0 0.0
        %3259 = vmatmul.mubr.f32.gmra.mrb[0].mxu0 %v3152
        %v3260 = vpop.f32.mrb[0].mxu0
        %v3261 = vadd.f32 %v3143, %v3260
        %v3262 = vpop.f32.mrb[0].mxu0
        %3263 = vmatprep.mubr.f32.mxu0 0.0
        %3264 = vmatmul.mubr.f32.gmra.mrb[0].mxu0 %v3155
        %v3265 = vpop.f32.mrb[0].mxu0
        %v3266 = vadd.f32 %v3143, %v3265
        %v3267 = vpop.f32.mrb[0].mxu0
        %3268 = vmatprep.mubr.f32.mxu0 0.0
        %3269 = vmatmul.mubr.f32.gmra.mrb[0].mxu0 %v3158
        %v3270 = vpop.f32.mrb[0].mxu0
        %v3271 = vadd.f32 %v3143, %v3270
        %v3272 = vpop.f32.mrb[0].mxu0
        %3273 = vmatprep.mubr.f32.mxu0 0.0
        %3274 = vmatmul.mubr.f32.gmra.mrb[0].mxu0 %v3161
        %v3275 = vpop.f32.mrb[0].mxu0
        %v3276 = vadd.f32 %v3143, %v3275
        %v3277 = vpop.f32.mrb[0].mxu0
        %3278 = vmatprep.mubr.f32.mxu0 0.0
        %3279 = vmatmul.mubr.f32.gmra.mrb[0].mxu0 %v3164
        %v3280 = vpop.f32.mrb[0].mxu0
        %v3281 = vadd.f32 %v3143, %v3280
        %v3282 = vpop.f32.mrb[0].mxu0
        %3283 = vmatprep.mubr.f32.mxu0 0.0
        %3284 = vmatmul.mubr.f32.gmra.mrb[0].mxu0 %v3167
        %v3285 = vpop.f32.mrb[0].mxu0
        %v3286 = vadd.f32 %v3143, %v3285
        %v3287 = vpop.f32.mrb[0].mxu0
        %3288 = vmatprep.mubr.f32.mxu0 0.0
        %3289 = vmatmul.mubr.f32.gmra.mrb[0].mxu0 %v3170
        %v3290 = vpop.f32.mrb[0].mxu0
        %v3291 = vadd.f32 %v3143, %v3290
        %v3292 = vpop.f32.mrb[0].mxu0
        %3293 = vdwg.mxu0
        %s3294 = scalar_lea.vmem %s7, 128
        %v3295 = vld [vmem:[%s3294] sm:$0xff]
        %v3296 = vld [vmem:[%s3294 + $0x8] sm:$0xff]
        %v3297 = vld [vmem:[%s3294 + $0x10] sm:$0xff]
        %v3298 = vld [vmem:[%s3294 + $0x18] sm:$0xff]
        %s3299 = scalar_lea.vmem %s8, 4
        %v3300 = vld [vmem:[%s3299] sm:$0x1]
        %v3302 = vlaneseq
        %v3303 = vshrl.u32 %v3302, 7
        %v3304 = vsub.s32 0, %v3303
        %v3305 = vrot.slane %v3300, %v3304
        %v3308 = vsel %vm784, %v3295, 0
        %v3311 = vsel %vm784, %v3296, 0
        %v3314 = vsel %vm784, %v3297, 0
        %v3317 = vsel %vm784, %v3298, 0
        %3319 = vmatprep.subr.mxu0 0.0
        %3320 = vmatpush1.xpose.msra.mxu0 %v3308
        %3321 = vmatprep.subr.mxu0 0.0
        %3322 = vmatpush1.xpose.msra.mxu0 %v3311
        %3323 = vmatprep.subr.mxu0 0.0
        %3324 = vmatpush1.xpose.msra.mxu0 %v3314
        %3325 = vmatprep.subr.mxu0 0.0
        %3326 = vmatpush1.xpose.msra.mxu0 %v3317
        %3327 = vmatprep.subr.mxu0 0.0
        %3328 = vmatpush1.xpose.msra.mxu0 0.0
        %3329 = vmatprep.subr.mxu0 0.0
        %3330 = vmatpush1.xpose.msra.mxu0 0.0
        %3331 = vmatprep.subr.mxu0 0.0
        %3332 = vmatpush1.xpose.msra.mxu0 0.0
        %3333 = vmatprep.subr.mxu0 0.0
        %3334 = vmatpush1.xpose.msra.mxu0 0.0
        %3335 = vmatprep.subr.mxu0 0.0
        %3336 = vmatpush1.xpose.msra.mxu0 0.0
        %3337 = vmatprep.subr.mxu0 0.0
        %3338 = vmatpush1.xpose.msra.mxu0 0.0
        %3339 = vmatprep.subr.mxu0 0.0
        %3340 = vmatpush1.xpose.msra.mxu0 0.0
        %3341 = vmatprep.subr.mxu0 0.0
        %3342 = vmatpush1.xpose.msra.mxu0 0.0
        %3343 = vmatprep.subr.mxu0 0.0
        %3344 = vmatpush1.xpose.msra.mxu0 0.0
        %3345 = vmatprep.subr.mxu0 0.0
        %3346 = vmatpush1.xpose.msra.mxu0 0.0
        %3347 = vmatprep.subr.mxu0 0.0
        %3348 = vmatpush1.xpose.msra.mxu0 0.0
        %3349 = vmatprep.subr.mxu0 0.0
        %3350 = vmatpush1.xpose.msra.mxu0 0.0
        %3351 = vmatprep.subr.mxu0 0.0
        %3352 = vmatpush1.xpose.msra.mxu0 0.0
        %3353 = vmatprep.subr.mxu0 0.0
        %3354 = vmatpush1.xpose.msra.mxu0 0.0
        %3355 = vmatprep.subr.mxu0 0.0
        %3356 = vmatpush1.xpose.msra.mxu0 0.0
        %3357 = vmatprep.subr.mxu0 0.0
        %3358 = vmatpush1.xpose.msra.mxu0 0.0
        %3359 = vmatprep.subr.mxu0 0.0
        %3360 = vmatpush1.xpose.msra.mxu0 0.0
        %3361 = vmatprep.subr.mxu0 0.0
        %3362 = vmatpush1.xpose.msra.mxu0 0.0
        %3363 = vmatprep.subr.mxu0 0.0
        %3364 = vmatpush1.xpose.msra.mxu0 0.0
        %3365 = vmatprep.subr.mxu0 0.0
        %3366 = vmatpush1.xpose.msra.mxu0 0.0
        %3367 = vmatprep.subr.mxu0 0.0
        %3368 = vmatpush1.xpose.msra.mxu0 0.0
        %3369 = vmatprep.subr.mxu0 0.0
        %3370 = vmatpush1.xpose.msra.mxu0 0.0
        %3371 = vmatprep.subr.mxu0 0.0
        %3372 = vmatpush1.xpose.msra.mxu0 0.0
        %3373 = vmatprep.subr.mxu0 0.0
        %3374 = vmatpush1.xpose.msra.mxu0 0.0
        %3375 = vmatprep.subr.mxu0 0.0
        %3376 = vmatpush1.xpose.msra.mxu0 0.0
        %3377 = vmatprep.subr.mxu0 0.0
        %3378 = vmatpush1.xpose.msra.mxu0 0.0
        %3379 = vmatprep.subr.mxu0 0.0
        %3380 = vmatpush1.xpose.msra.mxu0 0.0
        %3381 = vmatprep.subr.mxu0 0.0
        %3382 = vmatpush1.xpose.msra.mxu0 0.0
        %3383 = vmatprep.mubr.f32.mxu0 0.0
        %3384 = vmatmul.mubr.f32.gmra.mrb[0].mxu0 %v3146
        %v3385 = vpop.f32.mrb[0].mxu0
        %v3386 = vadd.f32 %v3305, %v3385
        %v3387 = vpop.f32.mrb[0].mxu0
        %3388 = vmatprep.mubr.f32.mxu0 0.0
        %3389 = vmatmul.mubr.f32.gmra.mrb[0].mxu0 %v3149
        %v3390 = vpop.f32.mrb[0].mxu0
        %v3391 = vadd.f32 %v3305, %v3390
        %v3392 = vpop.f32.mrb[0].mxu0
        %3393 = vmatprep.mubr.f32.mxu0 0.0
        %3394 = vmatmul.mubr.f32.gmra.mrb[0].mxu0 %v3152
        %v3395 = vpop.f32.mrb[0].mxu0
        %v3396 = vadd.f32 %v3305, %v3395
        %v3397 = vpop.f32.mrb[0].mxu0
        %3398 = vmatprep.mubr.f32.mxu0 0.0
        %3399 = vmatmul.mubr.f32.gmra.mrb[0].mxu0 %v3155
        %v3400 = vpop.f32.mrb[0].mxu0
        %v3401 = vadd.f32 %v3305, %v3400
        %v3402 = vpop.f32.mrb[0].mxu0
        %3403 = vmatprep.mubr.f32.mxu0 0.0
        %3404 = vmatmul.mubr.f32.gmra.mrb[0].mxu0 %v3158
        %v3405 = vpop.f32.mrb[0].mxu0
        %v3406 = vadd.f32 %v3305, %v3405
        %v3407 = vpop.f32.mrb[0].mxu0
        %3408 = vmatprep.mubr.f32.mxu0 0.0
        %3409 = vmatmul.mubr.f32.gmra.mrb[0].mxu0 %v3161
        %v3410 = vpop.f32.mrb[0].mxu0
        %v3411 = vadd.f32 %v3305, %v3410
        %v3412 = vpop.f32.mrb[0].mxu0
        %3413 = vmatprep.mubr.f32.mxu0 0.0
        %3414 = vmatmul.mubr.f32.gmra.mrb[0].mxu0 %v3164
        %v3415 = vpop.f32.mrb[0].mxu0
        %v3416 = vadd.f32 %v3305, %v3415
        %v3417 = vpop.f32.mrb[0].mxu0
        %3418 = vmatprep.mubr.f32.mxu0 0.0
        %3419 = vmatmul.mubr.f32.gmra.mrb[0].mxu0 %v3167
        %v3420 = vpop.f32.mrb[0].mxu0
        %v3421 = vadd.f32 %v3305, %v3420
        %v3422 = vpop.f32.mrb[0].mxu0
        %3423 = vmatprep.mubr.f32.mxu0 0.0
        %3424 = vmatmul.mubr.f32.gmra.mrb[0].mxu0 %v3170
        %v3425 = vpop.f32.mrb[0].mxu0
        %v3426 = vadd.f32 %v3305, %v3425
        %v3427 = vpop.f32.mrb[0].mxu0
        %3428 = vdwg.mxu0
        %s3429 = scalar_lea.vmem %s7, 160
        %v3430 = vld [vmem:[%s3429] sm:$0xff]
        %v3431 = vld [vmem:[%s3429 + $0x8] sm:$0xff]
        %v3432 = vld [vmem:[%s3429 + $0x10] sm:$0xff]
        %v3433 = vld [vmem:[%s3429 + $0x18] sm:$0xff]
        %s3434 = scalar_lea.vmem %s8, 5
        %v3435 = vld [vmem:[%s3434] sm:$0x1]
        %v3437 = vlaneseq
        %v3438 = vshrl.u32 %v3437, 7
        %v3439 = vsub.s32 0, %v3438
        %v3440 = vrot.slane %v3435, %v3439
        %v3443 = vsel %vm784, %v3430, 0
        %v3446 = vsel %vm784, %v3431, 0
        %v3449 = vsel %vm784, %v3432, 0
        %v3452 = vsel %vm784, %v3433, 0
        %3454 = vmatprep.subr.mxu0 0.0
        %3455 = vmatpush1.xpose.msra.mxu0 %v3443
        %3456 = vmatprep.subr.mxu0 0.0
        %3457 = vmatpush1.xpose.msra.mxu0 %v3446
        %3458 = vmatprep.subr.mxu0 0.0
        %3459 = vmatpush1.xpose.msra.mxu0 %v3449
        %3460 = vmatprep.subr.mxu0 0.0
        %3461 = vmatpush1.xpose.msra.mxu0 %v3452
        %3462 = vmatprep.subr.mxu0 0.0
        %3463 = vmatpush1.xpose.msra.mxu0 0.0
        %3464 = vmatprep.subr.mxu0 0.0
        %3465 = vmatpush1.xpose.msra.mxu0 0.0
        %3466 = vmatprep.subr.mxu0 0.0
        %3467 = vmatpush1.xpose.msra.mxu0 0.0
        %3468 = vmatprep.subr.mxu0 0.0
        %3469 = vmatpush1.xpose.msra.mxu0 0.0
        %3470 = vmatprep.subr.mxu0 0.0
        %3471 = vmatpush1.xpose.msra.mxu0 0.0
        %3472 = vmatprep.subr.mxu0 0.0
        %3473 = vmatpush1.xpose.msra.mxu0 0.0
        %3474 = vmatprep.subr.mxu0 0.0
        %3475 = vmatpush1.xpose.msra.mxu0 0.0
        %3476 = vmatprep.subr.mxu0 0.0
        %3477 = vmatpush1.xpose.msra.mxu0 0.0
        %3478 = vmatprep.subr.mxu0 0.0
        %3479 = vmatpush1.xpose.msra.mxu0 0.0
        %3480 = vmatprep.subr.mxu0 0.0
        %3481 = vmatpush1.xpose.msra.mxu0 0.0
        %3482 = vmatprep.subr.mxu0 0.0
        %3483 = vmatpush1.xpose.msra.mxu0 0.0
        %3484 = vmatprep.subr.mxu0 0.0
        %3485 = vmatpush1.xpose.msra.mxu0 0.0
        %3486 = vmatprep.subr.mxu0 0.0
        %3487 = vmatpush1.xpose.msra.mxu0 0.0
        %3488 = vmatprep.subr.mxu0 0.0
        %3489 = vmatpush1.xpose.msra.mxu0 0.0
        %3490 = vmatprep.subr.mxu0 0.0
        %3491 = vmatpush1.xpose.msra.mxu0 0.0
        %3492 = vmatprep.subr.mxu0 0.0
        %3493 = vmatpush1.xpose.msra.mxu0 0.0
        %3494 = vmatprep.subr.mxu0 0.0
        %3495 = vmatpush1.xpose.msra.mxu0 0.0
        %3496 = vmatprep.subr.mxu0 0.0
        %3497 = vmatpush1.xpose.msra.mxu0 0.0
        %3498 = vmatprep.subr.mxu0 0.0
        %3499 = vmatpush1.xpose.msra.mxu0 0.0
        %3500 = vmatprep.subr.mxu0 0.0
        %3501 = vmatpush1.xpose.msra.mxu0 0.0
        %3502 = vmatprep.subr.mxu0 0.0
        %3503 = vmatpush1.xpose.msra.mxu0 0.0
        %3504 = vmatprep.subr.mxu0 0.0
        %3505 = vmatpush1.xpose.msra.mxu0 0.0
        %3506 = vmatprep.subr.mxu0 0.0
        %3507 = vmatpush1.xpose.msra.mxu0 0.0
        %3508 = vmatprep.subr.mxu0 0.0
        %3509 = vmatpush1.xpose.msra.mxu0 0.0
        %3510 = vmatprep.subr.mxu0 0.0
        %3511 = vmatpush1.xpose.msra.mxu0 0.0
        %3512 = vmatprep.subr.mxu0 0.0
        %3513 = vmatpush1.xpose.msra.mxu0 0.0
        %3514 = vmatprep.subr.mxu0 0.0
        %3515 = vmatpush1.xpose.msra.mxu0 0.0
        %3516 = vmatprep.subr.mxu0 0.0
        %3517 = vmatpush1.xpose.msra.mxu0 0.0
        %3518 = vmatprep.mubr.f32.mxu0 0.0
        %3519 = vmatmul.mubr.f32.gmra.mrb[0].mxu0 %v3146
        %v3520 = vpop.f32.mrb[0].mxu0
        %v3521 = vadd.f32 %v3440, %v3520
        %v3522 = vpop.f32.mrb[0].mxu0
        %3523 = vmatprep.mubr.f32.mxu0 0.0
        %3524 = vmatmul.mubr.f32.gmra.mrb[0].mxu0 %v3149
        %v3525 = vpop.f32.mrb[0].mxu0
        %v3526 = vadd.f32 %v3440, %v3525
        %v3527 = vpop.f32.mrb[0].mxu0
        %3528 = vmatprep.mubr.f32.mxu0 0.0
        %3529 = vmatmul.mubr.f32.gmra.mrb[0].mxu0 %v3152
        %v3530 = vpop.f32.mrb[0].mxu0
        %v3531 = vadd.f32 %v3440, %v3530
        %v3532 = vpop.f32.mrb[0].mxu0
        %3533 = vmatprep.mubr.f32.mxu0 0.0
        %3534 = vmatmul.mubr.f32.gmra.mrb[0].mxu0 %v3155
        %v3535 = vpop.f32.mrb[0].mxu0
        %v3536 = vadd.f32 %v3440, %v3535
        %v3537 = vpop.f32.mrb[0].mxu0
        %3538 = vmatprep.mubr.f32.mxu0 0.0
        %3539 = vmatmul.mubr.f32.gmra.mrb[0].mxu0 %v3158
        %v3540 = vpop.f32.mrb[0].mxu0
        %v3541 = vadd.f32 %v3440, %v3540
        %v3542 = vpop.f32.mrb[0].mxu0
        %3543 = vmatprep.mubr.f32.mxu0 0.0
        %3544 = vmatmul.mubr.f32.gmra.mrb[0].mxu0 %v3161
        %v3545 = vpop.f32.mrb[0].mxu0
        %v3546 = vadd.f32 %v3440, %v3545
        %v3547 = vpop.f32.mrb[0].mxu0
        %3548 = vmatprep.mubr.f32.mxu0 0.0
        %3549 = vmatmul.mubr.f32.gmra.mrb[0].mxu0 %v3164
        %v3550 = vpop.f32.mrb[0].mxu0
        %v3551 = vadd.f32 %v3440, %v3550
        %v3552 = vpop.f32.mrb[0].mxu0
        %3553 = vmatprep.mubr.f32.mxu0 0.0
        %3554 = vmatmul.mubr.f32.gmra.mrb[0].mxu0 %v3167
        %v3555 = vpop.f32.mrb[0].mxu0
        %v3556 = vadd.f32 %v3440, %v3555
        %v3557 = vpop.f32.mrb[0].mxu0
        %3558 = vmatprep.mubr.f32.mxu0 0.0
        %3559 = vmatmul.mubr.f32.gmra.mrb[0].mxu0 %v3170
        %v3560 = vpop.f32.mrb[0].mxu0
        %v3561 = vadd.f32 %v3440, %v3560
        %v3562 = vpop.f32.mrb[0].mxu0
        %3563 = vdwg.mxu0
        %v3564 = vsel %vm1410, %v3251, 0.0
        %v3565 = vsel %vm1410, %v3256, 0.0
        %v3566 = vsel %vm1410, %v3261, 0.0
        %v3567 = vsel %vm1410, %v3266, 0.0
        %v3568 = vsel %vm1410, %v3271, 0.0
        %v3569 = vsel %vm1410, %v3276, 0.0
        %v3570 = vsel %vm1410, %v3281, 0.0
        %v3571 = vsel %vm1410, %v3286, 0.0
        %v3572 = vsel %vm1410, %v3291, 0.0
        %v3573 = vsel %vm1410, %v3521, 0.0
        %v3574 = vsel %vm1410, %v3526, 0.0
        %v3575 = vsel %vm1410, %v3531, 0.0
        %v3576 = vsel %vm1410, %v3536, 0.0
        %v3577 = vsel %vm1410, %v3541, 0.0
        %v3578 = vsel %vm1410, %v3546, 0.0
        %v3579 = vsel %vm1410, %v3551, 0.0
        %v3580 = vsel %vm1410, %v3556, 0.0
        %v3581 = vsel %vm1410, %v3561, 0.0
        %v3583 = vsel %vm784, %v3564, 0
        %v3586 = vsel %vm784, %v3565, 0
        %v3589 = vsel %vm784, %v3566, 0
        %v3592 = vsel %vm784, %v3567, 0
        %v3595 = vsel %vm784, %v3568, 0
        %v3598 = vsel %vm784, %v3569, 0
        %v3601 = vsel %vm784, %v3570, 0
        %v3604 = vsel %vm784, %v3571, 0
        %v3607 = vsel %vm784, %v3572, 0
        %v3610 = vsel %vm784, %v3386, 0
        %v3613 = vsel %vm784, %v3391, 0
        %v3616 = vsel %vm784, %v3396, 0
        %v3619 = vsel %vm784, %v3401, 0
        %v3622 = vsel %vm784, %v3406, 0
        %v3625 = vsel %vm784, %v3411, 0
        %v3628 = vsel %vm784, %v3416, 0
        %v3631 = vsel %vm784, %v3421, 0
        %v3634 = vsel %vm784, %v3426, 0
        %3636 = vmatprep.subr.mxu0 0.0
        %3637 = vmatpush1.xpose.msra.mxu0 %v3610
        %3638 = vmatprep.subr.mxu0 0.0
        %3639 = vmatpush1.xpose.msra.mxu0 %v3613
        %3640 = vmatprep.subr.mxu0 0.0
        %3641 = vmatpush1.xpose.msra.mxu0 %v3616
        %3642 = vmatprep.subr.mxu0 0.0
        %3643 = vmatpush1.xpose.msra.mxu0 %v3619
        %3644 = vmatprep.subr.mxu0 0.0
        %3645 = vmatpush1.xpose.msra.mxu0 %v3622
        %3646 = vmatprep.subr.mxu0 0.0
        %3647 = vmatpush1.xpose.msra.mxu0 %v3625
        %3648 = vmatprep.subr.mxu0 0.0
        %3649 = vmatpush1.xpose.msra.mxu0 %v3628
        %3650 = vmatprep.subr.mxu0 0.0
        %3651 = vmatpush1.xpose.msra.mxu0 %v3631
        %3652 = vmatprep.subr.mxu0 0.0
        %3653 = vmatpush1.xpose.msra.mxu0 %v3634
        %3654 = vmatprep.subr.mxu0 0.0
        %3655 = vmatpush1.xpose.msra.mxu0 0.0
        %3656 = vmatprep.subr.mxu0 0.0
        %3657 = vmatpush1.xpose.msra.mxu0 0.0
        %3658 = vmatprep.subr.mxu0 0.0
        %3659 = vmatpush1.xpose.msra.mxu0 0.0
        %3660 = vmatprep.subr.mxu0 0.0
        %3661 = vmatpush1.xpose.msra.mxu0 0.0
        %3662 = vmatprep.subr.mxu0 0.0
        %3663 = vmatpush1.xpose.msra.mxu0 0.0
        %3664 = vmatprep.subr.mxu0 0.0
        %3665 = vmatpush1.xpose.msra.mxu0 0.0
        %3666 = vmatprep.subr.mxu0 0.0
        %3667 = vmatpush1.xpose.msra.mxu0 0.0
        %3668 = vmatprep.subr.mxu0 0.0
        %3669 = vmatpush1.xpose.msra.mxu0 0.0
        %3670 = vmatprep.subr.mxu0 0.0
        %3671 = vmatpush1.xpose.msra.mxu0 0.0
        %3672 = vmatprep.subr.mxu0 0.0
        %3673 = vmatpush1.xpose.msra.mxu0 0.0
        %3674 = vmatprep.subr.mxu0 0.0
        %3675 = vmatpush1.xpose.msra.mxu0 0.0
        %3676 = vmatprep.subr.mxu0 0.0
        %3677 = vmatpush1.xpose.msra.mxu0 0.0
        %3678 = vmatprep.subr.mxu0 0.0
        %3679 = vmatpush1.xpose.msra.mxu0 0.0
        %3680 = vmatprep.subr.mxu0 0.0
        %3681 = vmatpush1.xpose.msra.mxu0 0.0
        %3682 = vmatprep.subr.mxu0 0.0
        %3683 = vmatpush1.xpose.msra.mxu0 0.0
        %3684 = vmatprep.subr.mxu0 0.0
        %3685 = vmatpush1.xpose.msra.mxu0 0.0
        %3686 = vmatprep.subr.mxu0 0.0
        %3687 = vmatpush1.xpose.msra.mxu0 0.0
        %3688 = vmatprep.subr.mxu0 0.0
        %3689 = vmatpush1.xpose.msra.mxu0 0.0
        %3690 = vmatprep.subr.mxu0 0.0
        %3691 = vmatpush1.xpose.msra.mxu0 0.0
        %3692 = vmatprep.subr.mxu0 0.0
        %3693 = vmatpush1.xpose.msra.mxu0 0.0
        %3694 = vmatprep.subr.mxu0 0.0
        %3695 = vmatpush1.xpose.msra.mxu0 0.0
        %3696 = vmatprep.subr.mxu0 0.0
        %3697 = vmatpush1.xpose.msra.mxu0 0.0
        %3698 = vmatprep.subr.mxu0 0.0
        %3699 = vmatpush1.xpose.msra.mxu0 0.0
        %3700 = vmatprep.mubr.f32.mxu0 0.0
        %3701 = vmatmul.mubr.f32.gmra.mrb[0].mxu0 %v3583
        %v3702 = vpop.f32.mrb[0].mxu0
        %v3703 = vadd.f32 0.0, %v3702
        %v3704 = vpop.f32.mrb[0].mxu0
        %3705 = vmatprep.mubr.f32.mxu0 0.0
        %3706 = vmatmul.mubr.f32.gmra.mrb[0].mxu0 %v3586
        %v3707 = vpop.f32.mrb[0].mxu0
        %v3708 = vadd.f32 0.0, %v3707
        %v3709 = vpop.f32.mrb[0].mxu0
        %3710 = vmatprep.mubr.f32.mxu0 0.0
        %3711 = vmatmul.mubr.f32.gmra.mrb[0].mxu0 %v3589
        %v3712 = vpop.f32.mrb[0].mxu0
        %v3713 = vadd.f32 0.0, %v3712
        %v3714 = vpop.f32.mrb[0].mxu0
        %3715 = vmatprep.mubr.f32.mxu0 0.0
        %3716 = vmatmul.mubr.f32.gmra.mrb[0].mxu0 %v3592
        %v3717 = vpop.f32.mrb[0].mxu0
        %v3718 = vadd.f32 0.0, %v3717
        %v3719 = vpop.f32.mrb[0].mxu0
        %3720 = vmatprep.mubr.f32.mxu0 0.0
        %3721 = vmatmul.mubr.f32.gmra.mrb[0].mxu0 %v3595
        %v3722 = vpop.f32.mrb[0].mxu0
        %v3723 = vadd.f32 0.0, %v3722
        %v3724 = vpop.f32.mrb[0].mxu0
        %3725 = vmatprep.mubr.f32.mxu0 0.0
        %3726 = vmatmul.mubr.f32.gmra.mrb[0].mxu0 %v3598
        %v3727 = vpop.f32.mrb[0].mxu0
        %v3728 = vadd.f32 0.0, %v3727
        %v3729 = vpop.f32.mrb[0].mxu0
        %3730 = vmatprep.mubr.f32.mxu0 0.0
        %3731 = vmatmul.mubr.f32.gmra.mrb[0].mxu0 %v3601
        %v3732 = vpop.f32.mrb[0].mxu0
        %v3733 = vadd.f32 0.0, %v3732
        %v3734 = vpop.f32.mrb[0].mxu0
        %3735 = vmatprep.mubr.f32.mxu0 0.0
        %3736 = vmatmul.mubr.f32.gmra.mrb[0].mxu0 %v3604
        %v3737 = vpop.f32.mrb[0].mxu0
        %v3738 = vadd.f32 0.0, %v3737
        %v3739 = vpop.f32.mrb[0].mxu0
        %3740 = vmatprep.mubr.f32.mxu0 0.0
        %3741 = vmatmul.mubr.f32.gmra.mrb[0].mxu0 %v3607
        %v3742 = vpop.f32.mrb[0].mxu0
        %v3743 = vadd.f32 0.0, %v3742
        %v3744 = vpop.f32.mrb[0].mxu0
        %3745 = vdwg.mxu0
        %v3746 = vmul.f32 %v3703, 0.25
        %v3747 = vmul.f32 %v3708, 0.25
        %v3748 = vmul.f32 %v3713, 0.25
        %v3749 = vmul.f32 %v3718, 0.25
        %v3750 = vmul.f32 %v3723, 0.25
        %v3751 = vmul.f32 %v3728, 0.25
        %v3752 = vmul.f32 %v3733, 0.25
        %v3753 = vmul.f32 %v3738, 0.25
        %v3754 = vmul.f32 %v3743, 0.25
        %v3755 = vsel %vm1602, %v3746, -inf
        %3756 = vmax.xlane.f32.xlu0 %v3755
        %v3757 = vpop.xlane.xlu0 %3756
        %v3758 = vsel %vm1602, %v3747, -inf
        %3759 = vmax.xlane.f32.xlu0 %v3758
        %v3760 = vpop.xlane.xlu0 %3759
        %v3761 = vsel %vm1602, %v3748, -inf
        %3762 = vmax.xlane.f32.xlu0 %v3761
        %v3763 = vpop.xlane.xlu0 %3762
        %v3764 = vsel %vm1602, %v3749, -inf
        %3765 = vmax.xlane.f32.xlu0 %v3764
        %v3766 = vpop.xlane.xlu0 %3765
        %v3767 = vsel %vm1602, %v3750, -inf
        %3768 = vmax.xlane.f32.xlu0 %v3767
        %v3769 = vpop.xlane.xlu0 %3768
        %v3770 = vsel %vm1602, %v3751, -inf
        %3771 = vmax.xlane.f32.xlu0 %v3770
        %v3772 = vpop.xlane.xlu0 %3771
        %v3773 = vsel %vm1602, %v3752, -inf
        %3774 = vmax.xlane.f32.xlu0 %v3773
        %v3775 = vpop.xlane.xlu0 %3774
        %v3776 = vsel %vm1602, %v3753, -inf
        %3777 = vmax.xlane.f32.xlu0 %v3776
        %v3778 = vpop.xlane.xlu0 %3777
        %v3779 = vsel %vm1602, %v3754, -inf
        %3780 = vmax.xlane.f32.xlu0 %v3779
        %v3781 = vpop.xlane.xlu0 %3780
        %v3782 = vsub.f32 %v3746, %v3757
        %v3783 = vsub.f32 %v3747, %v3760
        %v3784 = vsub.f32 %v3748, %v3763
        %v3785 = vsub.f32 %v3749, %v3766
        %v3786 = vsub.f32 %v3750, %v3769
        %v3787 = vsub.f32 %v3751, %v3772
        %v3788 = vsub.f32 %v3752, %v3775
        %v3789 = vsub.f32 %v3753, %v3778
        %v3790 = vsub.f32 %v3754, %v3781
        %v3791 = vmul.f32 %v3782, 1.442695
        %v3792 = vpow.pop %v3791
        %v3793 = vmul.f32 %v3783, 1.442695
        %v3794 = vpow.pop %v3793
        %v3795 = vmul.f32 %v3784, 1.442695
        %v3796 = vpow.pop %v3795
        %v3797 = vmul.f32 %v3785, 1.442695
        %v3798 = vpow.pop %v3797
        %v3799 = vmul.f32 %v3786, 1.442695
        %v3800 = vpow.pop %v3799
        %v3801 = vmul.f32 %v3787, 1.442695
        %v3802 = vpow.pop %v3801
        %v3803 = vmul.f32 %v3788, 1.442695
        %v3804 = vpow.pop %v3803
        %v3805 = vmul.f32 %v3789, 1.442695
        %v3806 = vpow.pop %v3805
        %v3807 = vmul.f32 %v3790, 1.442695
        %v3808 = vpow.pop %v3807
        %v3809 = vsel %vm1602, %v3792, 0.0
        %3810 = vadd.xlane.f32.xlu0 %v3809
        %v3811 = vpop.xlane.xlu0 %3810
        %v3812 = vsel %vm1602, %v3794, 0.0
        %3813 = vadd.xlane.f32.xlu0 %v3812
        %v3814 = vpop.xlane.xlu0 %3813
        %v3815 = vsel %vm1602, %v3796, 0.0
        %3816 = vadd.xlane.f32.xlu0 %v3815
        %v3817 = vpop.xlane.xlu0 %3816
        %v3818 = vsel %vm1602, %v3798, 0.0
        %3819 = vadd.xlane.f32.xlu0 %v3818
        %v3820 = vpop.xlane.xlu0 %3819
        %v3821 = vsel %vm1602, %v3800, 0.0
        %3822 = vadd.xlane.f32.xlu0 %v3821
        %v3823 = vpop.xlane.xlu0 %3822
        %v3824 = vsel %vm1602, %v3802, 0.0
        %3825 = vadd.xlane.f32.xlu0 %v3824
        %v3826 = vpop.xlane.xlu0 %3825
        %v3827 = vsel %vm1602, %v3804, 0.0
        %3828 = vadd.xlane.f32.xlu0 %v3827
        %v3829 = vpop.xlane.xlu0 %3828
        %v3830 = vsel %vm1602, %v3806, 0.0
        %3831 = vadd.xlane.f32.xlu0 %v3830
        %v3832 = vpop.xlane.xlu0 %3831
        %v3833 = vsel %vm1602, %v3808, 0.0
        %3834 = vadd.xlane.f32.xlu0 %v3833
        %v3835 = vpop.xlane.xlu0 %3834
        %v3836 = vrcp.pop %v3811
        %v3837 = vmul.f32 %v3792, %v3836
        %v3838 = vrcp.pop %v3814
        %v3839 = vmul.f32 %v3794, %v3838
        %v3840 = vrcp.pop %v3817
        %v3841 = vmul.f32 %v3796, %v3840
        %v3842 = vrcp.pop %v3820
        %v3843 = vmul.f32 %v3798, %v3842
        %v3844 = vrcp.pop %v3823
        %v3845 = vmul.f32 %v3800, %v3844
        %v3846 = vrcp.pop %v3826
        %v3847 = vmul.f32 %v3802, %v3846
        %v3848 = vrcp.pop %v3829
        %v3849 = vmul.f32 %v3804, %v3848
        %v3850 = vrcp.pop %v3832
        %v3851 = vmul.f32 %v3806, %v3850
        %v3852 = vrcp.pop %v3835
        %v3853 = vmul.f32 %v3808, %v3852
        %v3854 = vsel %vm1706, %v3251, 0.0
        %v3855 = vsel %vm1706, %v3256, 0.0
        %v3856 = vsel %vm1706, %v3261, 0.0
        %v3857 = vsel %vm1706, %v3266, 0.0
        %v3858 = vsel %vm1706, %v3271, 0.0
        %v3859 = vsel %vm1706, %v3276, 0.0
        %v3860 = vsel %vm1706, %v3281, 0.0
        %v3861 = vsel %vm1706, %v3286, 0.0
        %v3862 = vsel %vm1706, %v3291, 0.0
        %v3863 = vsel %vm1706, %v3521, 0.0
        %v3864 = vsel %vm1706, %v3526, 0.0
        %v3865 = vsel %vm1706, %v3531, 0.0
        %v3866 = vsel %vm1706, %v3536, 0.0
        %v3867 = vsel %vm1706, %v3541, 0.0
        %v3868 = vsel %vm1706, %v3546, 0.0
        %v3869 = vsel %vm1706, %v3551, 0.0
        %v3870 = vsel %vm1706, %v3556, 0.0
        %v3871 = vsel %vm1706, %v3561, 0.0
        %v3873 = vsel %vm784, %v3854, 0
        %v3876 = vsel %vm784, %v3855, 0
        %v3879 = vsel %vm784, %v3856, 0
        %v3882 = vsel %vm784, %v3857, 0
        %v3885 = vsel %vm784, %v3858, 0
        %v3888 = vsel %vm784, %v3859, 0
        %v3891 = vsel %vm784, %v3860, 0
        %v3894 = vsel %vm784, %v3861, 0
        %v3897 = vsel %vm784, %v3862, 0
        %3899 = vmatprep.subr.mxu0 0.0
        %3900 = vmatpush1.xpose.msra.mxu0 %v3610
        %3901 = vmatprep.subr.mxu0 0.0
        %3902 = vmatpush1.xpose.msra.mxu0 %v3613
        %3903 = vmatprep.subr.mxu0 0.0
        %3904 = vmatpush1.xpose.msra.mxu0 %v3616
        %3905 = vmatprep.subr.mxu0 0.0
        %3906 = vmatpush1.xpose.msra.mxu0 %v3619
        %3907 = vmatprep.subr.mxu0 0.0
        %3908 = vmatpush1.xpose.msra.mxu0 %v3622
        %3909 = vmatprep.subr.mxu0 0.0
        %3910 = vmatpush1.xpose.msra.mxu0 %v3625
        %3911 = vmatprep.subr.mxu0 0.0
        %3912 = vmatpush1.xpose.msra.mxu0 %v3628
        %3913 = vmatprep.subr.mxu0 0.0
        %3914 = vmatpush1.xpose.msra.mxu0 %v3631
        %3915 = vmatprep.subr.mxu0 0.0
        %3916 = vmatpush1.xpose.msra.mxu0 %v3634
        %3917 = vmatprep.subr.mxu0 0.0
        %3918 = vmatpush1.xpose.msra.mxu0 0.0
        %3919 = vmatprep.subr.mxu0 0.0
        %3920 = vmatpush1.xpose.msra.mxu0 0.0
        %3921 = vmatprep.subr.mxu0 0.0
        %3922 = vmatpush1.xpose.msra.mxu0 0.0
        %3923 = vmatprep.subr.mxu0 0.0
        %3924 = vmatpush1.xpose.msra.mxu0 0.0
        %3925 = vmatprep.subr.mxu0 0.0
        %3926 = vmatpush1.xpose.msra.mxu0 0.0
        %3927 = vmatprep.subr.mxu0 0.0
        %3928 = vmatpush1.xpose.msra.mxu0 0.0
        %3929 = vmatprep.subr.mxu0 0.0
        %3930 = vmatpush1.xpose.msra.mxu0 0.0
        %3931 = vmatprep.subr.mxu0 0.0
        %3932 = vmatpush1.xpose.msra.mxu0 0.0
        %3933 = vmatprep.subr.mxu0 0.0
        %3934 = vmatpush1.xpose.msra.mxu0 0.0
        %3935 = vmatprep.subr.mxu0 0.0
        %3936 = vmatpush1.xpose.msra.mxu0 0.0
        %3937 = vmatprep.subr.mxu0 0.0
        %3938 = vmatpush1.xpose.msra.mxu0 0.0
        %3939 = vmatprep.subr.mxu0 0.0
        %3940 = vmatpush1.xpose.msra.mxu0 0.0
        %3941 = vmatprep.subr.mxu0 0.0
        %3942 = vmatpush1.xpose.msra.mxu0 0.0
        %3943 = vmatprep.subr.mxu0 0.0
        %3944 = vmatpush1.xpose.msra.mxu0 0.0
        %3945 = vmatprep.subr.mxu0 0.0
        %3946 = vmatpush1.xpose.msra.mxu0 0.0
        %3947 = vmatprep.subr.mxu0 0.0
        %3948 = vmatpush1.xpose.msra.mxu0 0.0
        %3949 = vmatprep.subr.mxu0 0.0
        %3950 = vmatpush1.xpose.msra.mxu0 0.0
        %3951 = vmatprep.subr.mxu0 0.0
        %3952 = vmatpush1.xpose.msra.mxu0 0.0
        %3953 = vmatprep.subr.mxu0 0.0
        %3954 = vmatpush1.xpose.msra.mxu0 0.0
        %3955 = vmatprep.subr.mxu0 0.0
        %3956 = vmatpush1.xpose.msra.mxu0 0.0
        %3957 = vmatprep.subr.mxu0 0.0
        %3958 = vmatpush1.xpose.msra.mxu0 0.0
        %3959 = vmatprep.subr.mxu0 0.0
        %3960 = vmatpush1.xpose.msra.mxu0 0.0
        %3961 = vmatprep.subr.mxu0 0.0
        %3962 = vmatpush1.xpose.msra.mxu0 0.0
        %3963 = vmatprep.mubr.f32.mxu0 0.0
        %3964 = vmatmul.mubr.f32.gmra.mrb[0].mxu0 %v3873
        %v3965 = vpop.f32.mrb[0].mxu0
        %v3966 = vadd.f32 0.0, %v3965
        %v3967 = vpop.f32.mrb[0].mxu0
        %3968 = vmatprep.mubr.f32.mxu0 0.0
        %3969 = vmatmul.mubr.f32.gmra.mrb[0].mxu0 %v3876
        %v3970 = vpop.f32.mrb[0].mxu0
        %v3971 = vadd.f32 0.0, %v3970
        %v3972 = vpop.f32.mrb[0].mxu0
        %3973 = vmatprep.mubr.f32.mxu0 0.0
        %3974 = vmatmul.mubr.f32.gmra.mrb[0].mxu0 %v3879
        %v3975 = vpop.f32.mrb[0].mxu0
        %v3976 = vadd.f32 0.0, %v3975
        %v3977 = vpop.f32.mrb[0].mxu0
        %3978 = vmatprep.mubr.f32.mxu0 0.0
        %3979 = vmatmul.mubr.f32.gmra.mrb[0].mxu0 %v3882
        %v3980 = vpop.f32.mrb[0].mxu0
        %v3981 = vadd.f32 0.0, %v3980
        %v3982 = vpop.f32.mrb[0].mxu0
        %3983 = vmatprep.mubr.f32.mxu0 0.0
        %3984 = vmatmul.mubr.f32.gmra.mrb[0].mxu0 %v3885
        %v3985 = vpop.f32.mrb[0].mxu0
        %v3986 = vadd.f32 0.0, %v3985
        %v3987 = vpop.f32.mrb[0].mxu0
        %3988 = vmatprep.mubr.f32.mxu0 0.0
        %3989 = vmatmul.mubr.f32.gmra.mrb[0].mxu0 %v3888
        %v3990 = vpop.f32.mrb[0].mxu0
        %v3991 = vadd.f32 0.0, %v3990
        %v3992 = vpop.f32.mrb[0].mxu0
        %3993 = vmatprep.mubr.f32.mxu0 0.0
        %3994 = vmatmul.mubr.f32.gmra.mrb[0].mxu0 %v3891
        %v3995 = vpop.f32.mrb[0].mxu0
        %v3996 = vadd.f32 0.0, %v3995
        %v3997 = vpop.f32.mrb[0].mxu0
        %3998 = vmatprep.mubr.f32.mxu0 0.0
        %3999 = vmatmul.mubr.f32.gmra.mrb[0].mxu0 %v3894
        %v4000 = vpop.f32.mrb[0].mxu0
        %v4001 = vadd.f32 0.0, %v4000
        %v4002 = vpop.f32.mrb[0].mxu0
        %4003 = vmatprep.mubr.f32.mxu0 0.0
        %4004 = vmatmul.mubr.f32.gmra.mrb[0].mxu0 %v3897
        %v4005 = vpop.f32.mrb[0].mxu0
        %v4006 = vadd.f32 0.0, %v4005
        %v4007 = vpop.f32.mrb[0].mxu0
        %4008 = vdwg.mxu0
        %v4009 = vmul.f32 %v3966, 0.25
        %v4010 = vmul.f32 %v3971, 0.25
        %v4011 = vmul.f32 %v3976, 0.25
        %v4012 = vmul.f32 %v3981, 0.25
        %v4013 = vmul.f32 %v3986, 0.25
        %v4014 = vmul.f32 %v3991, 0.25
        %v4015 = vmul.f32 %v3996, 0.25
        %v4016 = vmul.f32 %v4001, 0.25
        %v4017 = vmul.f32 %v4006, 0.25
        %v4018 = vsel %vm1602, %v4009, -inf
        %4019 = vmax.xlane.f32.xlu0 %v4018
        %v4020 = vpop.xlane.xlu0 %4019
        %v4021 = vsel %vm1602, %v4010, -inf
        %4022 = vmax.xlane.f32.xlu0 %v4021
        %v4023 = vpop.xlane.xlu0 %4022
        %v4024 = vsel %vm1602, %v4011, -inf
        %4025 = vmax.xlane.f32.xlu0 %v4024
        %v4026 = vpop.xlane.xlu0 %4025
        %v4027 = vsel %vm1602, %v4012, -inf
        %4028 = vmax.xlane.f32.xlu0 %v4027
        %v4029 = vpop.xlane.xlu0 %4028
        %v4030 = vsel %vm1602, %v4013, -inf
        %4031 = vmax.xlane.f32.xlu0 %v4030
        %v4032 = vpop.xlane.xlu0 %4031
        %v4033 = vsel %vm1602, %v4014, -inf
        %4034 = vmax.xlane.f32.xlu0 %v4033
        %v4035 = vpop.xlane.xlu0 %4034
        %v4036 = vsel %vm1602, %v4015, -inf
        %4037 = vmax.xlane.f32.xlu0 %v4036
        %v4038 = vpop.xlane.xlu0 %4037
        %v4039 = vsel %vm1602, %v4016, -inf
        %4040 = vmax.xlane.f32.xlu0 %v4039
        %v4041 = vpop.xlane.xlu0 %4040
        %v4042 = vsel %vm1602, %v4017, -inf
        %4043 = vmax.xlane.f32.xlu0 %v4042
        %v4044 = vpop.xlane.xlu0 %4043
        %v4045 = vsub.f32 %v4009, %v4020
        %v4046 = vsub.f32 %v4010, %v4023
        %v4047 = vsub.f32 %v4011, %v4026
        %v4048 = vsub.f32 %v4012, %v4029
        %v4049 = vsub.f32 %v4013, %v4032
        %v4050 = vsub.f32 %v4014, %v4035
        %v4051 = vsub.f32 %v4015, %v4038
        %v4052 = vsub.f32 %v4016, %v4041
        %v4053 = vsub.f32 %v4017, %v4044
        %v4054 = vmul.f32 %v4045, 1.442695
        %v4055 = vpow.pop %v4054
        %v4056 = vmul.f32 %v4046, 1.442695
        %v4057 = vpow.pop %v4056
        %v4058 = vmul.f32 %v4047, 1.442695
        %v4059 = vpow.pop %v4058
        %v4060 = vmul.f32 %v4048, 1.442695
        %v4061 = vpow.pop %v4060
        %v4062 = vmul.f32 %v4049, 1.442695
        %v4063 = vpow.pop %v4062
        %v4064 = vmul.f32 %v4050, 1.442695
        %v4065 = vpow.pop %v4064
        %v4066 = vmul.f32 %v4051, 1.442695
        %v4067 = vpow.pop %v4066
        %v4068 = vmul.f32 %v4052, 1.442695
        %v4069 = vpow.pop %v4068
        %v4070 = vmul.f32 %v4053, 1.442695
        %v4071 = vpow.pop %v4070
        %v4072 = vsel %vm1602, %v4055, 0.0
        %4073 = vadd.xlane.f32.xlu0 %v4072
        %v4074 = vpop.xlane.xlu0 %4073
        %v4075 = vsel %vm1602, %v4057, 0.0
        %4076 = vadd.xlane.f32.xlu0 %v4075
        %v4077 = vpop.xlane.xlu0 %4076
        %v4078 = vsel %vm1602, %v4059, 0.0
        %4079 = vadd.xlane.f32.xlu0 %v4078
        %v4080 = vpop.xlane.xlu0 %4079
        %v4081 = vsel %vm1602, %v4061, 0.0
        %4082 = vadd.xlane.f32.xlu0 %v4081
        %v4083 = vpop.xlane.xlu0 %4082
        %v4084 = vsel %vm1602, %v4063, 0.0
        %4085 = vadd.xlane.f32.xlu0 %v4084
        %v4086 = vpop.xlane.xlu0 %4085
        %v4087 = vsel %vm1602, %v4065, 0.0
        %4088 = vadd.xlane.f32.xlu0 %v4087
        %v4089 = vpop.xlane.xlu0 %4088
        %v4090 = vsel %vm1602, %v4067, 0.0
        %4091 = vadd.xlane.f32.xlu0 %v4090
        %v4092 = vpop.xlane.xlu0 %4091
        %v4093 = vsel %vm1602, %v4069, 0.0
        %4094 = vadd.xlane.f32.xlu0 %v4093
        %v4095 = vpop.xlane.xlu0 %4094
        %v4096 = vsel %vm1602, %v4071, 0.0
        %4097 = vadd.xlane.f32.xlu0 %v4096
        %v4098 = vpop.xlane.xlu0 %4097
        %v4099 = vrcp.pop %v4074
        %v4100 = vmul.f32 %v4055, %v4099
        %v4101 = vrcp.pop %v4077
        %v4102 = vmul.f32 %v4057, %v4101
        %v4103 = vrcp.pop %v4080
        %v4104 = vmul.f32 %v4059, %v4103
        %v4105 = vrcp.pop %v4083
        %v4106 = vmul.f32 %v4061, %v4105
        %v4107 = vrcp.pop %v4086
        %v4108 = vmul.f32 %v4063, %v4107
        %v4109 = vrcp.pop %v4089
        %v4110 = vmul.f32 %v4065, %v4109
        %v4111 = vrcp.pop %v4092
        %v4112 = vmul.f32 %v4067, %v4111
        %v4113 = vrcp.pop %v4095
        %v4114 = vmul.f32 %v4069, %v4113
        %v4115 = vrcp.pop %v4098
        %v4116 = vmul.f32 %v4071, %v4115
        %v4118 = vsel %vm1602, %v4100, 0
        %v4121 = vsel %vm1602, %v4102, 0
        %v4124 = vsel %vm1602, %v4104, 0
        %v4127 = vsel %vm1602, %v4106, 0
        %v4130 = vsel %vm1602, %v4108, 0
        %v4133 = vsel %vm1602, %v4110, 0
        %v4136 = vsel %vm1602, %v4112, 0
        %v4139 = vsel %vm1602, %v4114, 0
        %v4142 = vsel %vm1602, %v4116, 0
        %4144 = vmatprep.subr.mxu0 0.0
        %4145 = vmatpush1.msra.mxu0 %v3863
        %4146 = vmatprep.subr.mxu0 0.0
        %4147 = vmatpush1.msra.mxu0 %v3864
        %4148 = vmatprep.subr.mxu0 0.0
        %4149 = vmatpush1.msra.mxu0 %v3865
        %4150 = vmatprep.subr.mxu0 0.0
        %4151 = vmatpush1.msra.mxu0 %v3866
        %4152 = vmatprep.subr.mxu0 0.0
        %4153 = vmatpush1.msra.mxu0 %v3867
        %4154 = vmatprep.subr.mxu0 0.0
        %4155 = vmatpush1.msra.mxu0 %v3868
        %4156 = vmatprep.subr.mxu0 0.0
        %4157 = vmatpush1.msra.mxu0 %v3869
        %4158 = vmatprep.subr.mxu0 0.0
        %4159 = vmatpush1.msra.mxu0 %v3870
        %4160 = vmatprep.subr.mxu0 0.0
        %4161 = vmatpush1.msra.mxu0 %v3871
        %4162 = vmatprep.subr.mxu0 0.0
        %4163 = vmatpush1.msra.mxu0 0.0
        %4164 = vmatprep.subr.mxu0 0.0
        %4165 = vmatpush1.msra.mxu0 0.0
        %4166 = vmatprep.subr.mxu0 0.0
        %4167 = vmatpush1.msra.mxu0 0.0
        %4168 = vmatprep.subr.mxu0 0.0
        %4169 = vmatpush1.msra.mxu0 0.0
        %4170 = vmatprep.subr.mxu0 0.0
        %4171 = vmatpush1.msra.mxu0 0.0
        %4172 = vmatprep.subr.mxu0 0.0
        %4173 = vmatpush1.msra.mxu0 0.0
        %4174 = vmatprep.subr.mxu0 0.0
        %4175 = vmatpush1.msra.mxu0 0.0
        %4176 = vmatprep.subr.mxu0 0.0
        %4177 = vmatpush1.msra.mxu0 0.0
        %4178 = vmatprep.subr.mxu0 0.0
        %4179 = vmatpush1.msra.mxu0 0.0
        %4180 = vmatprep.subr.mxu0 0.0
        %4181 = vmatpush1.msra.mxu0 0.0
        %4182 = vmatprep.subr.mxu0 0.0
        %4183 = vmatpush1.msra.mxu0 0.0
        %4184 = vmatprep.subr.mxu0 0.0
        %4185 = vmatpush1.msra.mxu0 0.0
        %4186 = vmatprep.subr.mxu0 0.0
        %4187 = vmatpush1.msra.mxu0 0.0
        %4188 = vmatprep.subr.mxu0 0.0
        %4189 = vmatpush1.msra.mxu0 0.0
        %4190 = vmatprep.subr.mxu0 0.0
        %4191 = vmatpush1.msra.mxu0 0.0
        %4192 = vmatprep.subr.mxu0 0.0
        %4193 = vmatpush1.msra.mxu0 0.0
        %4194 = vmatprep.subr.mxu0 0.0
        %4195 = vmatpush1.msra.mxu0 0.0
        %4196 = vmatprep.subr.mxu0 0.0
        %4197 = vmatpush1.msra.mxu0 0.0
        %4198 = vmatprep.subr.mxu0 0.0
        %4199 = vmatpush1.msra.mxu0 0.0
        %4200 = vmatprep.subr.mxu0 0.0
        %4201 = vmatpush1.msra.mxu0 0.0
        %4202 = vmatprep.subr.mxu0 0.0
        %4203 = vmatpush1.msra.mxu0 0.0
        %4204 = vmatprep.subr.mxu0 0.0
        %4205 = vmatpush1.msra.mxu0 0.0
        %4206 = vmatprep.subr.mxu0 0.0
        %4207 = vmatpush1.msra.mxu0 0.0
        %4208 = vmatprep.mubr.f32.mxu0 0.0
        %4209 = vmatmul.mubr.f32.gmra.mrb[0].mxu0 %v4118
        %v4210 = vpop.f32.mrb[0].mxu0
        %v4211 = vadd.f32 0.0, %v4210
        %v4212 = vpop.f32.mrb[0].mxu0
        %4213 = vmatprep.mubr.f32.mxu0 0.0
        %4214 = vmatmul.mubr.f32.gmra.mrb[0].mxu0 %v4121
        %v4215 = vpop.f32.mrb[0].mxu0
        %v4216 = vadd.f32 0.0, %v4215
        %v4217 = vpop.f32.mrb[0].mxu0
        %4218 = vmatprep.mubr.f32.mxu0 0.0
        %4219 = vmatmul.mubr.f32.gmra.mrb[0].mxu0 %v4124
        %v4220 = vpop.f32.mrb[0].mxu0
        %v4221 = vadd.f32 0.0, %v4220
        %v4222 = vpop.f32.mrb[0].mxu0
        %4223 = vmatprep.mubr.f32.mxu0 0.0
        %4224 = vmatmul.mubr.f32.gmra.mrb[0].mxu0 %v4127
        %v4225 = vpop.f32.mrb[0].mxu0
        %v4226 = vadd.f32 0.0, %v4225
        %v4227 = vpop.f32.mrb[0].mxu0
        %4228 = vmatprep.mubr.f32.mxu0 0.0
        %4229 = vmatmul.mubr.f32.gmra.mrb[0].mxu0 %v4130
        %v4230 = vpop.f32.mrb[0].mxu0
        %v4231 = vadd.f32 0.0, %v4230
        %v4232 = vpop.f32.mrb[0].mxu0
        %4233 = vmatprep.mubr.f32.mxu0 0.0
        %4234 = vmatmul.mubr.f32.gmra.mrb[0].mxu0 %v4133
        %v4235 = vpop.f32.mrb[0].mxu0
        %v4236 = vadd.f32 0.0, %v4235
        %v4237 = vpop.f32.mrb[0].mxu0
        %4238 = vmatprep.mubr.f32.mxu0 0.0
        %4239 = vmatmul.mubr.f32.gmra.mrb[0].mxu0 %v4136
        %v4240 = vpop.f32.mrb[0].mxu0
        %v4241 = vadd.f32 0.0, %v4240
        %v4242 = vpop.f32.mrb[0].mxu0
        %4243 = vmatprep.mubr.f32.mxu0 0.0
        %4244 = vmatmul.mubr.f32.gmra.mrb[0].mxu0 %v4139
        %v4245 = vpop.f32.mrb[0].mxu0
        %v4246 = vadd.f32 0.0, %v4245
        %v4247 = vpop.f32.mrb[0].mxu0
        %4248 = vmatprep.mubr.f32.mxu0 0.0
        %4249 = vmatmul.mubr.f32.gmra.mrb[0].mxu0 %v4142
        %v4250 = vpop.f32.mrb[0].mxu0
        %v4251 = vadd.f32 0.0, %v4250
        %v4252 = vpop.f32.mrb[0].mxu0
        %4253 = vdwg.mxu0
        %v4255 = vsel %vm1602, %v3837, 0
        %v4258 = vsel %vm1602, %v3839, 0
        %v4261 = vsel %vm1602, %v3841, 0
        %v4264 = vsel %vm1602, %v3843, 0
        %v4267 = vsel %vm1602, %v3845, 0
        %v4270 = vsel %vm1602, %v3847, 0
        %v4273 = vsel %vm1602, %v3849, 0
        %v4276 = vsel %vm1602, %v3851, 0
        %v4279 = vsel %vm1602, %v3853, 0
        %4281 = vmatprep.subr.mxu0 0.0
        %4282 = vmatpush1.msra.mxu0 %v3573
        %4283 = vmatprep.subr.mxu0 0.0
        %4284 = vmatpush1.msra.mxu0 %v3574
        %4285 = vmatprep.subr.mxu0 0.0
        %4286 = vmatpush1.msra.mxu0 %v3575
        %4287 = vmatprep.subr.mxu0 0.0
        %4288 = vmatpush1.msra.mxu0 %v3576
        %4289 = vmatprep.subr.mxu0 0.0
        %4290 = vmatpush1.msra.mxu0 %v3577
        %4291 = vmatprep.subr.mxu0 0.0
        %4292 = vmatpush1.msra.mxu0 %v3578
        %4293 = vmatprep.subr.mxu0 0.0
        %4294 = vmatpush1.msra.mxu0 %v3579
        %4295 = vmatprep.subr.mxu0 0.0
        %4296 = vmatpush1.msra.mxu0 %v3580
        %4297 = vmatprep.subr.mxu0 0.0
        %4298 = vmatpush1.msra.mxu0 %v3581
        %4299 = vmatprep.subr.mxu0 0.0
        %4300 = vmatpush1.msra.mxu0 0.0
        %4301 = vmatprep.subr.mxu0 0.0
        %4302 = vmatpush1.msra.mxu0 0.0
        %4303 = vmatprep.subr.mxu0 0.0
        %4304 = vmatpush1.msra.mxu0 0.0
        %4305 = vmatprep.subr.mxu0 0.0
        %4306 = vmatpush1.msra.mxu0 0.0
        %4307 = vmatprep.subr.mxu0 0.0
        %4308 = vmatpush1.msra.mxu0 0.0
        %4309 = vmatprep.subr.mxu0 0.0
        %4310 = vmatpush1.msra.mxu0 0.0
        %4311 = vmatprep.subr.mxu0 0.0
        %4312 = vmatpush1.msra.mxu0 0.0
        %4313 = vmatprep.subr.mxu0 0.0
        %4314 = vmatpush1.msra.mxu0 0.0
        %4315 = vmatprep.subr.mxu0 0.0
        %4316 = vmatpush1.msra.mxu0 0.0
        %4317 = vmatprep.subr.mxu0 0.0
        %4318 = vmatpush1.msra.mxu0 0.0
        %4319 = vmatprep.subr.mxu0 0.0
        %4320 = vmatpush1.msra.mxu0 0.0
        %4321 = vmatprep.subr.mxu0 0.0
        %4322 = vmatpush1.msra.mxu0 0.0
        %4323 = vmatprep.subr.mxu0 0.0
        %4324 = vmatpush1.msra.mxu0 0.0
        %4325 = vmatprep.subr.mxu0 0.0
        %4326 = vmatpush1.msra.mxu0 0.0
        %4327 = vmatprep.subr.mxu0 0.0
        %4328 = vmatpush1.msra.mxu0 0.0
        %4329 = vmatprep.subr.mxu0 0.0
        %4330 = vmatpush1.msra.mxu0 0.0
        %4331 = vmatprep.subr.mxu0 0.0
        %4332 = vmatpush1.msra.mxu0 0.0
        %4333 = vmatprep.subr.mxu0 0.0
        %4334 = vmatpush1.msra.mxu0 0.0
        %4335 = vmatprep.subr.mxu0 0.0
        %4336 = vmatpush1.msra.mxu0 0.0
        %4337 = vmatprep.subr.mxu0 0.0
        %4338 = vmatpush1.msra.mxu0 0.0
        %4339 = vmatprep.subr.mxu0 0.0
        %4340 = vmatpush1.msra.mxu0 0.0
        %4341 = vmatprep.subr.mxu0 0.0
        %4342 = vmatpush1.msra.mxu0 0.0
        %4343 = vmatprep.subr.mxu0 0.0
        %4344 = vmatpush1.msra.mxu0 0.0
        %4345 = vmatprep.mubr.f32.mxu0 0.0
        %4346 = vmatmul.mubr.f32.gmra.mrb[0].mxu0 %v4255
        %v4347 = vpop.f32.mrb[0].mxu0
        %v4348 = vadd.f32 %v4211, %v4347
        %v4349 = vpop.f32.mrb[0].mxu0
        %4350 = vmatprep.mubr.f32.mxu0 0.0
        %4351 = vmatmul.mubr.f32.gmra.mrb[0].mxu0 %v4258
        %v4352 = vpop.f32.mrb[0].mxu0
        %v4353 = vadd.f32 %v4216, %v4352
        %v4354 = vpop.f32.mrb[0].mxu0
        %4355 = vmatprep.mubr.f32.mxu0 0.0
        %4356 = vmatmul.mubr.f32.gmra.mrb[0].mxu0 %v4261
        %v4357 = vpop.f32.mrb[0].mxu0
        %v4358 = vadd.f32 %v4221, %v4357
        %v4359 = vpop.f32.mrb[0].mxu0
        %4360 = vmatprep.mubr.f32.mxu0 0.0
        %4361 = vmatmul.mubr.f32.gmra.mrb[0].mxu0 %v4264
        %v4362 = vpop.f32.mrb[0].mxu0
        %v4363 = vadd.f32 %v4226, %v4362
        %v4364 = vpop.f32.mrb[0].mxu0
        %4365 = vmatprep.mubr.f32.mxu0 0.0
        %4366 = vmatmul.mubr.f32.gmra.mrb[0].mxu0 %v4267
        %v4367 = vpop.f32.mrb[0].mxu0
        %v4368 = vadd.f32 %v4231, %v4367
        %v4369 = vpop.f32.mrb[0].mxu0
        %4370 = vmatprep.mubr.f32.mxu0 0.0
        %4371 = vmatmul.mubr.f32.gmra.mrb[0].mxu0 %v4270
        %v4372 = vpop.f32.mrb[0].mxu0
        %v4373 = vadd.f32 %v4236, %v4372
        %v4374 = vpop.f32.mrb[0].mxu0
        %4375 = vmatprep.mubr.f32.mxu0 0.0
        %4376 = vmatmul.mubr.f32.gmra.mrb[0].mxu0 %v4273
        %v4377 = vpop.f32.mrb[0].mxu0
        %v4378 = vadd.f32 %v4241, %v4377
        %v4379 = vpop.f32.mrb[0].mxu0
        %4380 = vmatprep.mubr.f32.mxu0 0.0
        %4381 = vmatmul.mubr.f32.gmra.mrb[0].mxu0 %v4276
        %v4382 = vpop.f32.mrb[0].mxu0
        %v4383 = vadd.f32 %v4246, %v4382
        %v4384 = vpop.f32.mrb[0].mxu0
        %4385 = vmatprep.mubr.f32.mxu0 0.0
        %4386 = vmatmul.mubr.f32.gmra.mrb[0].mxu0 %v4279
        %v4387 = vpop.f32.mrb[0].mxu0
        %v4388 = vadd.f32 %v4251, %v4387
        %v4389 = vpop.f32.mrb[0].mxu0
        %4390 = vdwg.mxu0
        %s4391 = scalar_lea.vmem %s9, 32
        %v4392 = vld [vmem:[%s4391] sm:$0xff]
        %v4393 = vld [vmem:[%s4391 + $0x8] sm:$0xff]
        %v4394 = vld [vmem:[%s4391 + $0x10] sm:$0xff]
        %v4395 = vld [vmem:[%s4391 + $0x18] sm:$0xff]
        %s4396 = scalar_lea.vmem %s10, 1
        %v4397 = vld [vmem:[%s4396] sm:$0x1]
        %v4399 = vlaneseq
        %v4400 = vshrl.u32 %v4399, 7
        %v4401 = vsub.s32 0, %v4400
        %v4402 = vrot.slane %v4397, %v4401
        %v4405 = vsel %vm784, %v4348, 0
        %v4408 = vsel %vm784, %v4353, 0
        %v4411 = vsel %vm784, %v4358, 0
        %v4414 = vsel %vm784, %v4363, 0
        %v4417 = vsel %vm784, %v4368, 0
        %v4420 = vsel %vm784, %v4373, 0
        %v4423 = vsel %vm784, %v4378, 0
        %v4426 = vsel %vm784, %v4383, 0
        %v4429 = vsel %vm784, %v4388, 0
        %v4432 = vsel %vm784, %v4392, 0
        %v4435 = vsel %vm784, %v4393, 0
        %v4438 = vsel %vm784, %v4394, 0
        %v4441 = vsel %vm784, %v4395, 0
        %4443 = vmatprep.subr.mxu0 0.0
        %4444 = vmatpush1.xpose.msra.mxu0 %v4432
        %4445 = vmatprep.subr.mxu0 0.0
        %4446 = vmatpush1.xpose.msra.mxu0 %v4435
        %4447 = vmatprep.subr.mxu0 0.0
        %4448 = vmatpush1.xpose.msra.mxu0 %v4438
        %4449 = vmatprep.subr.mxu0 0.0
        %4450 = vmatpush1.xpose.msra.mxu0 %v4441
        %4451 = vmatprep.subr.mxu0 0.0
        %4452 = vmatpush1.xpose.msra.mxu0 0.0
        %4453 = vmatprep.subr.mxu0 0.0
        %4454 = vmatpush1.xpose.msra.mxu0 0.0
        %4455 = vmatprep.subr.mxu0 0.0
        %4456 = vmatpush1.xpose.msra.mxu0 0.0
        %4457 = vmatprep.subr.mxu0 0.0
        %4458 = vmatpush1.xpose.msra.mxu0 0.0
        %4459 = vmatprep.subr.mxu0 0.0
        %4460 = vmatpush1.xpose.msra.mxu0 0.0
        %4461 = vmatprep.subr.mxu0 0.0
        %4462 = vmatpush1.xpose.msra.mxu0 0.0
        %4463 = vmatprep.subr.mxu0 0.0
        %4464 = vmatpush1.xpose.msra.mxu0 0.0
        %4465 = vmatprep.subr.mxu0 0.0
        %4466 = vmatpush1.xpose.msra.mxu0 0.0
        %4467 = vmatprep.subr.mxu0 0.0
        %4468 = vmatpush1.xpose.msra.mxu0 0.0
        %4469 = vmatprep.subr.mxu0 0.0
        %4470 = vmatpush1.xpose.msra.mxu0 0.0
        %4471 = vmatprep.subr.mxu0 0.0
        %4472 = vmatpush1.xpose.msra.mxu0 0.0
        %4473 = vmatprep.subr.mxu0 0.0
        %4474 = vmatpush1.xpose.msra.mxu0 0.0
        %4475 = vmatprep.subr.mxu0 0.0
        %4476 = vmatpush1.xpose.msra.mxu0 0.0
        %4477 = vmatprep.subr.mxu0 0.0
        %4478 = vmatpush1.xpose.msra.mxu0 0.0
        %4479 = vmatprep.subr.mxu0 0.0
        %4480 = vmatpush1.xpose.msra.mxu0 0.0
        %4481 = vmatprep.subr.mxu0 0.0
        %4482 = vmatpush1.xpose.msra.mxu0 0.0
        %4483 = vmatprep.subr.mxu0 0.0
        %4484 = vmatpush1.xpose.msra.mxu0 0.0
        %4485 = vmatprep.subr.mxu0 0.0
        %4486 = vmatpush1.xpose.msra.mxu0 0.0
        %4487 = vmatprep.subr.mxu0 0.0
        %4488 = vmatpush1.xpose.msra.mxu0 0.0
        %4489 = vmatprep.subr.mxu0 0.0
        %4490 = vmatpush1.xpose.msra.mxu0 0.0
        %4491 = vmatprep.subr.mxu0 0.0
        %4492 = vmatpush1.xpose.msra.mxu0 0.0
        %4493 = vmatprep.subr.mxu0 0.0
        %4494 = vmatpush1.xpose.msra.mxu0 0.0
        %4495 = vmatprep.subr.mxu0 0.0
        %4496 = vmatpush1.xpose.msra.mxu0 0.0
        %4497 = vmatprep.subr.mxu0 0.0
        %4498 = vmatpush1.xpose.msra.mxu0 0.0
        %4499 = vmatprep.subr.mxu0 0.0
        %4500 = vmatpush1.xpose.msra.mxu0 0.0
        %4501 = vmatprep.subr.mxu0 0.0
        %4502 = vmatpush1.xpose.msra.mxu0 0.0
        %4503 = vmatprep.subr.mxu0 0.0
        %4504 = vmatpush1.xpose.msra.mxu0 0.0
        %4505 = vmatprep.subr.mxu0 0.0
        %4506 = vmatpush1.xpose.msra.mxu0 0.0
        %4507 = vmatprep.mubr.f32.mxu0 0.0
        %4508 = vmatmul.mubr.f32.gmra.mrb[0].mxu0 %v4405
        %v4509 = vpop.f32.mrb[0].mxu0
        %v4510 = vadd.f32 %v4402, %v4509
        %v4511 = vpop.f32.mrb[0].mxu0
        %4512 = vmatprep.mubr.f32.mxu0 0.0
        %4513 = vmatmul.mubr.f32.gmra.mrb[0].mxu0 %v4408
        %v4514 = vpop.f32.mrb[0].mxu0
        %v4515 = vadd.f32 %v4402, %v4514
        %v4516 = vpop.f32.mrb[0].mxu0
        %4517 = vmatprep.mubr.f32.mxu0 0.0
        %4518 = vmatmul.mubr.f32.gmra.mrb[0].mxu0 %v4411
        %v4519 = vpop.f32.mrb[0].mxu0
        %v4520 = vadd.f32 %v4402, %v4519
        %v4521 = vpop.f32.mrb[0].mxu0
        %4522 = vmatprep.mubr.f32.mxu0 0.0
        %4523 = vmatmul.mubr.f32.gmra.mrb[0].mxu0 %v4414
        %v4524 = vpop.f32.mrb[0].mxu0
        %v4525 = vadd.f32 %v4402, %v4524
        %v4526 = vpop.f32.mrb[0].mxu0
        %4527 = vmatprep.mubr.f32.mxu0 0.0
        %4528 = vmatmul.mubr.f32.gmra.mrb[0].mxu0 %v4417
        %v4529 = vpop.f32.mrb[0].mxu0
        %v4530 = vadd.f32 %v4402, %v4529
        %v4531 = vpop.f32.mrb[0].mxu0
        %4532 = vmatprep.mubr.f32.mxu0 0.0
        %4533 = vmatmul.mubr.f32.gmra.mrb[0].mxu0 %v4420
        %v4534 = vpop.f32.mrb[0].mxu0
        %v4535 = vadd.f32 %v4402, %v4534
        %v4536 = vpop.f32.mrb[0].mxu0
        %4537 = vmatprep.mubr.f32.mxu0 0.0
        %4538 = vmatmul.mubr.f32.gmra.mrb[0].mxu0 %v4423
        %v4539 = vpop.f32.mrb[0].mxu0
        %v4540 = vadd.f32 %v4402, %v4539
        %v4541 = vpop.f32.mrb[0].mxu0
        %4542 = vmatprep.mubr.f32.mxu0 0.0
        %4543 = vmatmul.mubr.f32.gmra.mrb[0].mxu0 %v4426
        %v4544 = vpop.f32.mrb[0].mxu0
        %v4545 = vadd.f32 %v4402, %v4544
        %v4546 = vpop.f32.mrb[0].mxu0
        %4547 = vmatprep.mubr.f32.mxu0 0.0
        %4548 = vmatmul.mubr.f32.gmra.mrb[0].mxu0 %v4429
        %v4549 = vpop.f32.mrb[0].mxu0
        %v4550 = vadd.f32 %v4402, %v4549
        %v4551 = vpop.f32.mrb[0].mxu0
        %4552 = vdwg.mxu0
        %v4553 = vadd.f32 %v2972, %v4510
        %v4554 = vadd.f32 %v2973, %v4515
        %v4555 = vadd.f32 %v2974, %v4520
        %v4556 = vadd.f32 %v2975, %v4525
        %v4557 = vadd.f32 %v2976, %v4530
        %v4558 = vadd.f32 %v2977, %v4535
        %v4559 = vadd.f32 %v2978, %v4540
        %v4560 = vadd.f32 %v2979, %v4545
        %v4561 = vadd.f32 %v2980, %v4550
        %s4562 = scalar_lea.vmem %s11, 1
        %v4563 = vld [vmem:[%s4562] sm:$0x1]
        %s4564 = scalar_lea.vmem %s12, 1
        %v4565 = vld [vmem:[%s4564] sm:$0x1]
        %v4566 = vsel %vm784, %v4553, 0.0
        %4567 = vadd.xlane.f32.xlu0 %v4566
        %v4568 = vpop.xlane.xlu0 %4567
        %v4569 = vsel %vm784, %v4554, 0.0
        %4570 = vadd.xlane.f32.xlu0 %v4569
        %v4571 = vpop.xlane.xlu0 %4570
        %v4572 = vsel %vm784, %v4555, 0.0
        %4573 = vadd.xlane.f32.xlu0 %v4572
        %v4574 = vpop.xlane.xlu0 %4573
        %v4575 = vsel %vm784, %v4556, 0.0
        %4576 = vadd.xlane.f32.xlu0 %v4575
        %v4577 = vpop.xlane.xlu0 %4576
        %v4578 = vsel %vm784, %v4557, 0.0
        %4579 = vadd.xlane.f32.xlu0 %v4578
        %v4580 = vpop.xlane.xlu0 %4579
        %v4581 = vsel %vm784, %v4558, 0.0
        %4582 = vadd.xlane.f32.xlu0 %v4581
        %v4583 = vpop.xlane.xlu0 %4582
        %v4584 = vsel %vm784, %v4559, 0.0
        %4585 = vadd.xlane.f32.xlu0 %v4584
        %v4586 = vpop.xlane.xlu0 %4585
        %v4587 = vsel %vm784, %v4560, 0.0
        %4588 = vadd.xlane.f32.xlu0 %v4587
        %v4589 = vpop.xlane.xlu0 %4588
        %v4590 = vsel %vm784, %v4561, 0.0
        %4591 = vadd.xlane.f32.xlu0 %v4590
        %v4592 = vpop.xlane.xlu0 %4591
        %v4593 = vmul.f32 %v4568, %v855
        %v4594 = vmul.f32 %v4571, %v855
        %v4595 = vmul.f32 %v4574, %v855
        %v4596 = vmul.f32 %v4577, %v855
        %v4597 = vmul.f32 %v4580, %v855
        %v4598 = vmul.f32 %v4583, %v855
        %v4599 = vmul.f32 %v4586, %v855
        %v4600 = vmul.f32 %v4589, %v855
        %v4601 = vmul.f32 %v4592, %v855
        %v4602 = vsub.f32 %v4553, %v4593
        %v4603 = vsub.f32 %v4554, %v4594
        %v4604 = vsub.f32 %v4555, %v4595
        %v4605 = vsub.f32 %v4556, %v4596
        %v4606 = vsub.f32 %v4557, %v4597
        %v4607 = vsub.f32 %v4558, %v4598
        %v4608 = vsub.f32 %v4559, %v4599
        %v4609 = vsub.f32 %v4560, %v4600
        %v4610 = vsub.f32 %v4561, %v4601
        %v4611 = vmul.f32 %v4602, %v4602
        %v4612 = vmul.f32 %v4603, %v4603
        %v4613 = vmul.f32 %v4604, %v4604
        %v4614 = vmul.f32 %v4605, %v4605
        %v4615 = vmul.f32 %v4606, %v4606
        %v4616 = vmul.f32 %v4607, %v4607
        %v4617 = vmul.f32 %v4608, %v4608
        %v4618 = vmul.f32 %v4609, %v4609
        %v4619 = vmul.f32 %v4610, %v4610
        %v4620 = vsel %vm784, %v4611, 0.0
        %4621 = vadd.xlane.f32.xlu0 %v4620
        %v4622 = vpop.xlane.xlu0 %4621
        %v4623 = vsel %vm784, %v4612, 0.0
        %4624 = vadd.xlane.f32.xlu0 %v4623
        %v4625 = vpop.xlane.xlu0 %4624
        %v4626 = vsel %vm784, %v4613, 0.0
        %4627 = vadd.xlane.f32.xlu0 %v4626
        %v4628 = vpop.xlane.xlu0 %4627
        %v4629 = vsel %vm784, %v4614, 0.0
        %4630 = vadd.xlane.f32.xlu0 %v4629
        %v4631 = vpop.xlane.xlu0 %4630
        %v4632 = vsel %vm784, %v4615, 0.0
        %4633 = vadd.xlane.f32.xlu0 %v4632
        %v4634 = vpop.xlane.xlu0 %4633
        %v4635 = vsel %vm784, %v4616, 0.0
        %4636 = vadd.xlane.f32.xlu0 %v4635
        %v4637 = vpop.xlane.xlu0 %4636
        %v4638 = vsel %vm784, %v4617, 0.0
        %4639 = vadd.xlane.f32.xlu0 %v4638
        %v4640 = vpop.xlane.xlu0 %4639
        %v4641 = vsel %vm784, %v4618, 0.0
        %4642 = vadd.xlane.f32.xlu0 %v4641
        %v4643 = vpop.xlane.xlu0 %4642
        %v4644 = vsel %vm784, %v4619, 0.0
        %4645 = vadd.xlane.f32.xlu0 %v4644
        %v4646 = vpop.xlane.xlu0 %4645
        %v4647 = vmul.f32 %v4622, %v855
        %v4648 = vmul.f32 %v4625, %v855
        %v4649 = vmul.f32 %v4628, %v855
        %v4650 = vmul.f32 %v4631, %v855
        %v4651 = vmul.f32 %v4634, %v855
        %v4652 = vmul.f32 %v4637, %v855
        %v4653 = vmul.f32 %v4640, %v855
        %v4654 = vmul.f32 %v4643, %v855
        %v4655 = vmul.f32 %v4646, %v855
        %v4656 = vadd.f32 %v4647, 1e-05
        %v4657 = vadd.f32 %v4648, 1e-05
        %v4658 = vadd.f32 %v4649, 1e-05
        %v4659 = vadd.f32 %v4650, 1e-05
        %v4660 = vadd.f32 %v4651, 1e-05
        %v4661 = vadd.f32 %v4652, 1e-05
        %v4662 = vadd.f32 %v4653, 1e-05
        %v4663 = vadd.f32 %v4654, 1e-05
        %v4664 = vadd.f32 %v4655, 1e-05
        %v4665 = vrsqrt.pop %v4656
        %v4666 = vrsqrt.pop %v4657
        %v4667 = vrsqrt.pop %v4658
        %v4668 = vrsqrt.pop %v4659
        %v4669 = vrsqrt.pop %v4660
        %v4670 = vrsqrt.pop %v4661
        %v4671 = vrsqrt.pop %v4662
        %v4672 = vrsqrt.pop %v4663
        %v4673 = vrsqrt.pop %v4664
        %v4674 = vmul.f32 %v4602, %v4665
        %v4675 = vmul.f32 %v4603, %v4666
        %v4676 = vmul.f32 %v4604, %v4667
        %v4677 = vmul.f32 %v4605, %v4668
        %v4678 = vmul.f32 %v4606, %v4669
        %v4679 = vmul.f32 %v4607, %v4670
        %v4680 = vmul.f32 %v4608, %v4671
        %v4681 = vmul.f32 %v4609, %v4672
        %v4682 = vmul.f32 %v4610, %v4673
        %v4684 = vlaneseq
        %v4685 = vshrl.u32 %v4684, 7
        %v4686 = vsub.s32 0, %v4685
        %v4687 = vrot.slane %v4563, %v4686
        %v4689 = vmul.f32 %v4674, %v4687
        %v4690 = vmul.f32 %v4675, %v4687
        %v4691 = vmul.f32 %v4676, %v4687
        %v4692 = vmul.f32 %v4677, %v4687
        %v4693 = vmul.f32 %v4678, %v4687
        %v4694 = vmul.f32 %v4679, %v4687
        %v4695 = vmul.f32 %v4680, %v4687
        %v4696 = vmul.f32 %v4681, %v4687
        %v4697 = vmul.f32 %v4682, %v4687
        %v4699 = vlaneseq
        %v4700 = vshrl.u32 %v4699, 7
        %v4701 = vsub.s32 0, %v4700
        %v4702 = vrot.slane %v4565, %v4701
        %v4704 = vadd.f32 %v4689, %v4702
        %v4705 = vadd.f32 %v4690, %v4702
        %v4706 = vadd.f32 %v4691, %v4702
        %v4707 = vadd.f32 %v4692, %v4702
        %v4708 = vadd.f32 %v4693, %v4702
        %v4709 = vadd.f32 %v4694, %v4702
        %v4710 = vadd.f32 %v4695, %v4702
        %v4711 = vadd.f32 %v4696, %v4702
        %v4712 = vadd.f32 %v4697, %v4702
        %s4713 = scalar_lea.vmem %s13, 128
        %v4714 = vld [vmem:[%s4713] sm:$0xff]
        %v4715 = vld [vmem:[%s4713 + $0x8] sm:$0xff]
        %v4716 = vld [vmem:[%s4713 + $0x10] sm:$0xff]
        %v4717 = vld [vmem:[%s4713 + $0x18] sm:$0xff]
        %v4718 = vld [vmem:[%s4713 + $0x20] sm:$0xff]
        %v4719 = vld [vmem:[%s4713 + $0x28] sm:$0xff]
        %v4720 = vld [vmem:[%s4713 + $0x30] sm:$0xff]
        %v4721 = vld [vmem:[%s4713 + $0x38] sm:$0xff]
        %v4722 = vld [vmem:[%s4713 + $0x40] sm:$0xff]
        %v4723 = vld [vmem:[%s4713 + $0x48] sm:$0xff]
        %v4724 = vld [vmem:[%s4713 + $0x50] sm:$0xff]
        %v4725 = vld [vmem:[%s4713 + $0x58] sm:$0xff]
        %v4726 = vld [vmem:[%s4713 + $0x60] sm:$0xff]
        %v4727 = vld [vmem:[%s4713 + $0x68] sm:$0xff]
        %v4728 = vld [vmem:[%s4713 + $0x70] sm:$0xff]
        %v4729 = vld [vmem:[%s4713 + $0x78] sm:$0xff]
        %s4730 = scalar_lea.vmem %s14, 1
        %v4731 = vld [vmem:[%s4730] sm:$0x1]
        %v4733 = vlaneseq
        %v4734 = vshrl.u32 %v4733, 7
        %v4735 = vsub.s32 0, %v4734
        %v4736 = vrot.slane %v4731, %v4735
        %v4739 = vsel %vm784, %v4704, 0
        %v4742 = vsel %vm784, %v4705, 0
        %v4745 = vsel %vm784, %v4706, 0
        %v4748 = vsel %vm784, %v4707, 0
        %v4751 = vsel %vm784, %v4708, 0
        %v4754 = vsel %vm784, %v4709, 0
        %v4757 = vsel %vm784, %v4710, 0
        %v4760 = vsel %vm784, %v4711, 0
        %v4763 = vsel %vm784, %v4712, 0
        %v4766 = vsel %vm784, %v4714, 0
        %v4769 = vsel %vm784, %v4715, 0
        %v4772 = vsel %vm784, %v4716, 0
        %v4775 = vsel %vm784, %v4717, 0
        %v4778 = vsel %vm784, %v4718, 0
        %v4781 = vsel %vm784, %v4719, 0
        %v4784 = vsel %vm784, %v4720, 0
        %v4787 = vsel %vm784, %v4721, 0
        %v4790 = vsel %vm784, %v4722, 0
        %v4793 = vsel %vm784, %v4723, 0
        %v4796 = vsel %vm784, %v4724, 0
        %v4799 = vsel %vm784, %v4725, 0
        %v4802 = vsel %vm784, %v4726, 0
        %v4805 = vsel %vm784, %v4727, 0
        %v4808 = vsel %vm784, %v4728, 0
        %v4811 = vsel %vm784, %v4729, 0
        %4813 = vmatprep.subr.mxu0 0.0
        %4814 = vmatpush1.xpose.msra.mxu0 %v4766
        %4815 = vmatprep.subr.mxu0 0.0
        %4816 = vmatpush1.xpose.msra.mxu0 %v4769
        %4817 = vmatprep.subr.mxu0 0.0
        %4818 = vmatpush1.xpose.msra.mxu0 %v4772
        %4819 = vmatprep.subr.mxu0 0.0
        %4820 = vmatpush1.xpose.msra.mxu0 %v4775
        %4821 = vmatprep.subr.mxu0 0.0
        %4822 = vmatpush1.xpose.msra.mxu0 %v4778
        %4823 = vmatprep.subr.mxu0 0.0
        %4824 = vmatpush1.xpose.msra.mxu0 %v4781
        %4825 = vmatprep.subr.mxu0 0.0
        %4826 = vmatpush1.xpose.msra.mxu0 %v4784
        %4827 = vmatprep.subr.mxu0 0.0
        %4828 = vmatpush1.xpose.msra.mxu0 %v4787
        %4829 = vmatprep.subr.mxu0 0.0
        %4830 = vmatpush1.xpose.msra.mxu0 %v4790
        %4831 = vmatprep.subr.mxu0 0.0
        %4832 = vmatpush1.xpose.msra.mxu0 %v4793
        %4833 = vmatprep.subr.mxu0 0.0
        %4834 = vmatpush1.xpose.msra.mxu0 %v4796
        %4835 = vmatprep.subr.mxu0 0.0
        %4836 = vmatpush1.xpose.msra.mxu0 %v4799
        %4837 = vmatprep.subr.mxu0 0.0
        %4838 = vmatpush1.xpose.msra.mxu0 %v4802
        %4839 = vmatprep.subr.mxu0 0.0
        %4840 = vmatpush1.xpose.msra.mxu0 %v4805
        %4841 = vmatprep.subr.mxu0 0.0
        %4842 = vmatpush1.xpose.msra.mxu0 %v4808
        %4843 = vmatprep.subr.mxu0 0.0
        %4844 = vmatpush1.xpose.msra.mxu0 %v4811
        %4845 = vmatprep.subr.mxu0 0.0
        %4846 = vmatpush1.xpose.msra.mxu0 0.0
        %4847 = vmatprep.subr.mxu0 0.0
        %4848 = vmatpush1.xpose.msra.mxu0 0.0
        %4849 = vmatprep.subr.mxu0 0.0
        %4850 = vmatpush1.xpose.msra.mxu0 0.0
        %4851 = vmatprep.subr.mxu0 0.0
        %4852 = vmatpush1.xpose.msra.mxu0 0.0
        %4853 = vmatprep.subr.mxu0 0.0
        %4854 = vmatpush1.xpose.msra.mxu0 0.0
        %4855 = vmatprep.subr.mxu0 0.0
        %4856 = vmatpush1.xpose.msra.mxu0 0.0
        %4857 = vmatprep.subr.mxu0 0.0
        %4858 = vmatpush1.xpose.msra.mxu0 0.0
        %4859 = vmatprep.subr.mxu0 0.0
        %4860 = vmatpush1.xpose.msra.mxu0 0.0
        %4861 = vmatprep.subr.mxu0 0.0
        %4862 = vmatpush1.xpose.msra.mxu0 0.0
        %4863 = vmatprep.subr.mxu0 0.0
        %4864 = vmatpush1.xpose.msra.mxu0 0.0
        %4865 = vmatprep.subr.mxu0 0.0
        %4866 = vmatpush1.xpose.msra.mxu0 0.0
        %4867 = vmatprep.subr.mxu0 0.0
        %4868 = vmatpush1.xpose.msra.mxu0 0.0
        %4869 = vmatprep.subr.mxu0 0.0
        %4870 = vmatpush1.xpose.msra.mxu0 0.0
        %4871 = vmatprep.subr.mxu0 0.0
        %4872 = vmatpush1.xpose.msra.mxu0 0.0
        %4873 = vmatprep.subr.mxu0 0.0
        %4874 = vmatpush1.xpose.msra.mxu0 0.0
        %4875 = vmatprep.subr.mxu0 0.0
        %4876 = vmatpush1.xpose.msra.mxu0 0.0
        %4877 = vmatprep.mubr.f32.mxu0 0.0
        %4878 = vmatmul.mubr.f32.gmra.mrb[0].mxu0 %v4739
        %v4879 = vpop.f32.mrb[0].mxu0
        %v4880 = vadd.f32 %v4736, %v4879
        %v4881 = vpop.f32.mrb[0].mxu0
        %4882 = vmatprep.mubr.f32.mxu0 0.0
        %4883 = vmatmul.mubr.f32.gmra.mrb[0].mxu0 %v4742
        %v4884 = vpop.f32.mrb[0].mxu0
        %v4885 = vadd.f32 %v4736, %v4884
        %v4886 = vpop.f32.mrb[0].mxu0
        %4887 = vmatprep.mubr.f32.mxu0 0.0
        %4888 = vmatmul.mubr.f32.gmra.mrb[0].mxu0 %v4745
        %v4889 = vpop.f32.mrb[0].mxu0
        %v4890 = vadd.f32 %v4736, %v4889
        %v4891 = vpop.f32.mrb[0].mxu0
        %4892 = vmatprep.mubr.f32.mxu0 0.0
        %4893 = vmatmul.mubr.f32.gmra.mrb[0].mxu0 %v4748
        %v4894 = vpop.f32.mrb[0].mxu0
        %v4895 = vadd.f32 %v4736, %v4894
        %v4896 = vpop.f32.mrb[0].mxu0
        %4897 = vmatprep.mubr.f32.mxu0 0.0
        %4898 = vmatmul.mubr.f32.gmra.mrb[0].mxu0 %v4751
        %v4899 = vpop.f32.mrb[0].mxu0
        %v4900 = vadd.f32 %v4736, %v4899
        %v4901 = vpop.f32.mrb[0].mxu0
        %4902 = vmatprep.mubr.f32.mxu0 0.0
        %4903 = vmatmul.mubr.f32.gmra.mrb[0].mxu0 %v4754
        %v4904 = vpop.f32.mrb[0].mxu0
        %v4905 = vadd.f32 %v4736, %v4904
        %v4906 = vpop.f32.mrb[0].mxu0
        %4907 = vmatprep.mubr.f32.mxu0 0.0
        %4908 = vmatmul.mubr.f32.gmra.mrb[0].mxu0 %v4757
        %v4909 = vpop.f32.mrb[0].mxu0
        %v4910 = vadd.f32 %v4736, %v4909
        %v4911 = vpop.f32.mrb[0].mxu0
        %4912 = vmatprep.mubr.f32.mxu0 0.0
        %4913 = vmatmul.mubr.f32.gmra.mrb[0].mxu0 %v4760
        %v4914 = vpop.f32.mrb[0].mxu0
        %v4915 = vadd.f32 %v4736, %v4914
        %v4916 = vpop.f32.mrb[0].mxu0
        %4917 = vmatprep.mubr.f32.mxu0 0.0
        %4918 = vmatmul.mubr.f32.gmra.mrb[0].mxu0 %v4763
        %v4919 = vpop.f32.mrb[0].mxu0
        %v4920 = vadd.f32 %v4736, %v4919
        %v4921 = vpop.f32.mrb[0].mxu0
        %4922 = vdwg.mxu0
        %v4923 = vmul.f32 %v4880, %v4880
        %v4924 = vmul.f32 %v4885, %v4885
        %v4925 = vmul.f32 %v4890, %v4890
        %v4926 = vmul.f32 %v4895, %v4895
        %v4927 = vmul.f32 %v4900, %v4900
        %v4928 = vmul.f32 %v4905, %v4905
        %v4929 = vmul.f32 %v4910, %v4910
        %v4930 = vmul.f32 %v4915, %v4915
        %v4931 = vmul.f32 %v4920, %v4920
        %v4932 = vmul.f32 %v4880, %v4923
        %v4933 = vmul.f32 %v4885, %v4924
        %v4934 = vmul.f32 %v4890, %v4925
        %v4935 = vmul.f32 %v4895, %v4926
        %v4936 = vmul.f32 %v4900, %v4927
        %v4937 = vmul.f32 %v4905, %v4928
        %v4938 = vmul.f32 %v4910, %v4929
        %v4939 = vmul.f32 %v4915, %v4930
        %v4940 = vmul.f32 %v4920, %v4931
        %v4941 = vmul.f32 %v4932, 0.044715
        %v4942 = vmul.f32 %v4933, 0.044715
        %v4943 = vmul.f32 %v4934, 0.044715
        %v4944 = vmul.f32 %v4935, 0.044715
        %v4945 = vmul.f32 %v4936, 0.044715
        %v4946 = vmul.f32 %v4937, 0.044715
        %v4947 = vmul.f32 %v4938, 0.044715
        %v4948 = vmul.f32 %v4939, 0.044715
        %v4949 = vmul.f32 %v4940, 0.044715
        %v4950 = vadd.f32 %v4880, %v4941
        %v4951 = vadd.f32 %v4885, %v4942
        %v4952 = vadd.f32 %v4890, %v4943
        %v4953 = vadd.f32 %v4895, %v4944
        %v4954 = vadd.f32 %v4900, %v4945
        %v4955 = vadd.f32 %v4905, %v4946
        %v4956 = vadd.f32 %v4910, %v4947
        %v4957 = vadd.f32 %v4915, %v4948
        %v4958 = vadd.f32 %v4920, %v4949
        %v4959 = vmul.f32 %v4950, 0.7978846
        %v4960 = vmul.f32 %v4951, 0.7978846
        %v4961 = vmul.f32 %v4952, 0.7978846
        %v4962 = vmul.f32 %v4953, 0.7978846
        %v4963 = vmul.f32 %v4954, 0.7978846
        %v4964 = vmul.f32 %v4955, 0.7978846
        %v4965 = vmul.f32 %v4956, 0.7978846
        %v4966 = vmul.f32 %v4957, 0.7978846
        %v4967 = vmul.f32 %v4958, 0.7978846
        %v4968 = vtanh.pop %v4959
        %v4969 = vtanh.pop %v4960
        %v4970 = vtanh.pop %v4961
        %v4971 = vtanh.pop %v4962
        %v4972 = vtanh.pop %v4963
        %v4973 = vtanh.pop %v4964
        %v4974 = vtanh.pop %v4965
        %v4975 = vtanh.pop %v4966
        %v4976 = vtanh.pop %v4967
        %v4977 = vadd.f32 %v4968, 1.0
        %v4978 = vadd.f32 %v4969, 1.0
        %v4979 = vadd.f32 %v4970, 1.0
        %v4980 = vadd.f32 %v4971, 1.0
        %v4981 = vadd.f32 %v4972, 1.0
        %v4982 = vadd.f32 %v4973, 1.0
        %v4983 = vadd.f32 %v4974, 1.0
        %v4984 = vadd.f32 %v4975, 1.0
        %v4985 = vadd.f32 %v4976, 1.0
        %v4986 = vmul.f32 %v4977, 0.5
        %v4987 = vmul.f32 %v4978, 0.5
        %v4988 = vmul.f32 %v4979, 0.5
        %v4989 = vmul.f32 %v4980, 0.5
        %v4990 = vmul.f32 %v4981, 0.5
        %v4991 = vmul.f32 %v4982, 0.5
        %v4992 = vmul.f32 %v4983, 0.5
        %v4993 = vmul.f32 %v4984, 0.5
        %v4994 = vmul.f32 %v4985, 0.5
        %v4995 = vmul.f32 %v4880, %v4986
        %v4996 = vmul.f32 %v4885, %v4987
        %v4997 = vmul.f32 %v4890, %v4988
        %v4998 = vmul.f32 %v4895, %v4989
        %v4999 = vmul.f32 %v4900, %v4990
        %v5000 = vmul.f32 %v4905, %v4991
        %v5001 = vmul.f32 %v4910, %v4992
        %v5002 = vmul.f32 %v4915, %v4993
        %v5003 = vmul.f32 %v4920, %v4994
        %s5004 = scalar_lea.vmem %s15, 32
        %v5005 = vld [vmem:[%s5004] sm:$0xff]
        %v5006 = vld [vmem:[%s5004 + $0x8] sm:$0xff]
        %v5007 = vld [vmem:[%s5004 + $0x10] sm:$0xff]
        %v5008 = vld [vmem:[%s5004 + $0x18] sm:$0xff]
        %s5009 = scalar_lea.vmem %s16, 1
        %v5010 = vld [vmem:[%s5009] sm:$0x1]
        %v5012 = vlaneseq
        %v5013 = vshrl.u32 %v5012, 7
        %v5014 = vsub.s32 0, %v5013
        %v5015 = vrot.slane %v5010, %v5014
        %5017 = vmatprep.subr.mxu0 0.0
        %5018 = vmatpush1.xpose.msra.mxu0 %v5005
        %5019 = vmatprep.subr.mxu0 0.0
        %5020 = vmatpush1.xpose.msra.mxu0 %v5006
        %5021 = vmatprep.subr.mxu0 0.0
        %5022 = vmatpush1.xpose.msra.mxu0 %v5007
        %5023 = vmatprep.subr.mxu0 0.0
        %5024 = vmatpush1.xpose.msra.mxu0 %v5008
        %5025 = vmatprep.subr.mxu0 0.0
        %5026 = vmatpush1.xpose.msra.mxu0 0.0
        %5027 = vmatprep.subr.mxu0 0.0
        %5028 = vmatpush1.xpose.msra.mxu0 0.0
        %5029 = vmatprep.subr.mxu0 0.0
        %5030 = vmatpush1.xpose.msra.mxu0 0.0
        %5031 = vmatprep.subr.mxu0 0.0
        %5032 = vmatpush1.xpose.msra.mxu0 0.0
        %5033 = vmatprep.subr.mxu0 0.0
        %5034 = vmatpush1.xpose.msra.mxu0 0.0
        %5035 = vmatprep.subr.mxu0 0.0
        %5036 = vmatpush1.xpose.msra.mxu0 0.0
        %5037 = vmatprep.subr.mxu0 0.0
        %5038 = vmatpush1.xpose.msra.mxu0 0.0
        %5039 = vmatprep.subr.mxu0 0.0
        %5040 = vmatpush1.xpose.msra.mxu0 0.0
        %5041 = vmatprep.subr.mxu0 0.0
        %5042 = vmatpush1.xpose.msra.mxu0 0.0
        %5043 = vmatprep.subr.mxu0 0.0
        %5044 = vmatpush1.xpose.msra.mxu0 0.0
        %5045 = vmatprep.subr.mxu0 0.0
        %5046 = vmatpush1.xpose.msra.mxu0 0.0
        %5047 = vmatprep.subr.mxu0 0.0
        %5048 = vmatpush1.xpose.msra.mxu0 0.0
        %5049 = vmatprep.subr.mxu0 0.0
        %5050 = vmatpush1.xpose.msra.mxu0 0.0
        %5051 = vmatprep.subr.mxu0 0.0
        %5052 = vmatpush1.xpose.msra.mxu0 0.0
        %5053 = vmatprep.subr.mxu0 0.0
        %5054 = vmatpush1.xpose.msra.mxu0 0.0
        %5055 = vmatprep.subr.mxu0 0.0
        %5056 = vmatpush1.xpose.msra.mxu0 0.0
        %5057 = vmatprep.subr.mxu0 0.0
        %5058 = vmatpush1.xpose.msra.mxu0 0.0
        %5059 = vmatprep.subr.mxu0 0.0
        %5060 = vmatpush1.xpose.msra.mxu0 0.0
        %5061 = vmatprep.subr.mxu0 0.0
        %5062 = vmatpush1.xpose.msra.mxu0 0.0
        %5063 = vmatprep.subr.mxu0 0.0
        %5064 = vmatpush1.xpose.msra.mxu0 0.0
        %5065 = vmatprep.subr.mxu0 0.0
        %5066 = vmatpush1.xpose.msra.mxu0 0.0
        %5067 = vmatprep.subr.mxu0 0.0
        %5068 = vmatpush1.xpose.msra.mxu0 0.0
        %5069 = vmatprep.subr.mxu0 0.0
        %5070 = vmatpush1.xpose.msra.mxu0 0.0
        %5071 = vmatprep.subr.mxu0 0.0
        %5072 = vmatpush1.xpose.msra.mxu0 0.0
        %5073 = vmatprep.subr.mxu0 0.0
        %5074 = vmatpush1.xpose.msra.mxu0 0.0
        %5075 = vmatprep.subr.mxu0 0.0
        %5076 = vmatpush1.xpose.msra.mxu0 0.0
        %5077 = vmatprep.subr.mxu0 0.0
        %5078 = vmatpush1.xpose.msra.mxu0 0.0
        %5079 = vmatprep.subr.mxu0 0.0
        %5080 = vmatpush1.xpose.msra.mxu0 0.0
        %5081 = vmatprep.mubr.f32.mxu0 0.0
        %5082 = vmatmul.mubr.f32.gmra.mrb[0].mxu0 %v4995
        %v5083 = vpop.f32.mrb[0].mxu0
        %v5084 = vadd.f32 %v5015, %v5083
        %v5085 = vpop.f32.mrb[0].mxu0
        %5086 = vmatprep.mubr.f32.mxu0 0.0
        %5087 = vmatmul.mubr.f32.gmra.mrb[0].mxu0 %v4996
        %v5088 = vpop.f32.mrb[0].mxu0
        %v5089 = vadd.f32 %v5015, %v5088
        %v5090 = vpop.f32.mrb[0].mxu0
        %5091 = vmatprep.mubr.f32.mxu0 0.0
        %5092 = vmatmul.mubr.f32.gmra.mrb[0].mxu0 %v4997
        %v5093 = vpop.f32.mrb[0].mxu0
        %v5094 = vadd.f32 %v5015, %v5093
        %v5095 = vpop.f32.mrb[0].mxu0
        %5096 = vmatprep.mubr.f32.mxu0 0.0
        %5097 = vmatmul.mubr.f32.gmra.mrb[0].mxu0 %v4998
        %v5098 = vpop.f32.mrb[0].mxu0
        %v5099 = vadd.f32 %v5015, %v5098
        %v5100 = vpop.f32.mrb[0].mxu0
        %5101 = vmatprep.mubr.f32.mxu0 0.0
        %5102 = vmatmul.mubr.f32.gmra.mrb[0].mxu0 %v4999
        %v5103 = vpop.f32.mrb[0].mxu0
        %v5104 = vadd.f32 %v5015, %v5103
        %v5105 = vpop.f32.mrb[0].mxu0
        %5106 = vmatprep.mubr.f32.mxu0 0.0
        %5107 = vmatmul.mubr.f32.gmra.mrb[0].mxu0 %v5000
        %v5108 = vpop.f32.mrb[0].mxu0
        %v5109 = vadd.f32 %v5015, %v5108
        %v5110 = vpop.f32.mrb[0].mxu0
        %5111 = vmatprep.mubr.f32.mxu0 0.0
        %5112 = vmatmul.mubr.f32.gmra.mrb[0].mxu0 %v5001
        %v5113 = vpop.f32.mrb[0].mxu0
        %v5114 = vadd.f32 %v5015, %v5113
        %v5115 = vpop.f32.mrb[0].mxu0
        %5116 = vmatprep.mubr.f32.mxu0 0.0
        %5117 = vmatmul.mubr.f32.gmra.mrb[0].mxu0 %v5002
        %v5118 = vpop.f32.mrb[0].mxu0
        %v5119 = vadd.f32 %v5015, %v5118
        %v5120 = vpop.f32.mrb[0].mxu0
        %5121 = vmatprep.mubr.f32.mxu0 0.0
        %5122 = vmatmul.mubr.f32.gmra.mrb[0].mxu0 %v5003
        %v5123 = vpop.f32.mrb[0].mxu0
        %v5124 = vadd.f32 %v5015, %v5123
        %v5125 = vpop.f32.mrb[0].mxu0
        %5126 = vdwg.mxu0
        %v5127 = vadd.f32 %v4553, %v5084
        %v5128 = vadd.f32 %v4554, %v5089
        %v5129 = vadd.f32 %v4555, %v5094
        %v5130 = vadd.f32 %v4556, %v5099
        %v5131 = vadd.f32 %v4557, %v5104
        %v5132 = vadd.f32 %v4558, %v5109
        %v5133 = vadd.f32 %v4559, %v5114
        %v5134 = vadd.f32 %v4560, %v5119
        %v5135 = vadd.f32 %v4561, %v5124
        %v5136 = vld [vmem:[%s17] sm:$0x1]
        %v5137 = vld [vmem:[%s18] sm:$0x1]
        %v5138 = vsel %vm784, %v5127, 0.0
        %5139 = vadd.xlane.f32.xlu0 %v5138
        %v5140 = vpop.xlane.xlu0 %5139
        %v5141 = vsel %vm784, %v5128, 0.0
        %5142 = vadd.xlane.f32.xlu0 %v5141
        %v5143 = vpop.xlane.xlu0 %5142
        %v5144 = vsel %vm784, %v5129, 0.0
        %5145 = vadd.xlane.f32.xlu0 %v5144
        %v5146 = vpop.xlane.xlu0 %5145
        %v5147 = vsel %vm784, %v5130, 0.0
        %5148 = vadd.xlane.f32.xlu0 %v5147
        %v5149 = vpop.xlane.xlu0 %5148
        %v5150 = vsel %vm784, %v5131, 0.0
        %5151 = vadd.xlane.f32.xlu0 %v5150
        %v5152 = vpop.xlane.xlu0 %5151
        %v5153 = vsel %vm784, %v5132, 0.0
        %5154 = vadd.xlane.f32.xlu0 %v5153
        %v5155 = vpop.xlane.xlu0 %5154
        %v5156 = vsel %vm784, %v5133, 0.0
        %5157 = vadd.xlane.f32.xlu0 %v5156
        %v5158 = vpop.xlane.xlu0 %5157
        %v5159 = vsel %vm784, %v5134, 0.0
        %5160 = vadd.xlane.f32.xlu0 %v5159
        %v5161 = vpop.xlane.xlu0 %5160
        %v5162 = vsel %vm784, %v5135, 0.0
        %5163 = vadd.xlane.f32.xlu0 %v5162
        %v5164 = vpop.xlane.xlu0 %5163
        %v5165 = vmul.f32 %v5140, %v855
        %v5166 = vmul.f32 %v5143, %v855
        %v5167 = vmul.f32 %v5146, %v855
        %v5168 = vmul.f32 %v5149, %v855
        %v5169 = vmul.f32 %v5152, %v855
        %v5170 = vmul.f32 %v5155, %v855
        %v5171 = vmul.f32 %v5158, %v855
        %v5172 = vmul.f32 %v5161, %v855
        %v5173 = vmul.f32 %v5164, %v855
        %v5174 = vsub.f32 %v5127, %v5165
        %v5175 = vsub.f32 %v5128, %v5166
        %v5176 = vsub.f32 %v5129, %v5167
        %v5177 = vsub.f32 %v5130, %v5168
        %v5178 = vsub.f32 %v5131, %v5169
        %v5179 = vsub.f32 %v5132, %v5170
        %v5180 = vsub.f32 %v5133, %v5171
        %v5181 = vsub.f32 %v5134, %v5172
        %v5182 = vsub.f32 %v5135, %v5173
        %v5183 = vmul.f32 %v5174, %v5174
        %v5184 = vmul.f32 %v5175, %v5175
        %v5185 = vmul.f32 %v5176, %v5176
        %v5186 = vmul.f32 %v5177, %v5177
        %v5187 = vmul.f32 %v5178, %v5178
        %v5188 = vmul.f32 %v5179, %v5179
        %v5189 = vmul.f32 %v5180, %v5180
        %v5190 = vmul.f32 %v5181, %v5181
        %v5191 = vmul.f32 %v5182, %v5182
        %v5192 = vsel %vm784, %v5183, 0.0
        %5193 = vadd.xlane.f32.xlu0 %v5192
        %v5194 = vpop.xlane.xlu0 %5193
        %v5195 = vsel %vm784, %v5184, 0.0
        %5196 = vadd.xlane.f32.xlu0 %v5195
        %v5197 = vpop.xlane.xlu0 %5196
        %v5198 = vsel %vm784, %v5185, 0.0
        %5199 = vadd.xlane.f32.xlu0 %v5198
        %v5200 = vpop.xlane.xlu0 %5199
        %v5201 = vsel %vm784, %v5186, 0.0
        %5202 = vadd.xlane.f32.xlu0 %v5201
        %v5203 = vpop.xlane.xlu0 %5202
        %v5204 = vsel %vm784, %v5187, 0.0
        %5205 = vadd.xlane.f32.xlu0 %v5204
        %v5206 = vpop.xlane.xlu0 %5205
        %v5207 = vsel %vm784, %v5188, 0.0
        %5208 = vadd.xlane.f32.xlu0 %v5207
        %v5209 = vpop.xlane.xlu0 %5208
        %v5210 = vsel %vm784, %v5189, 0.0
        %5211 = vadd.xlane.f32.xlu0 %v5210
        %v5212 = vpop.xlane.xlu0 %5211
        %v5213 = vsel %vm784, %v5190, 0.0
        %5214 = vadd.xlane.f32.xlu0 %v5213
        %v5215 = vpop.xlane.xlu0 %5214
        %v5216 = vsel %vm784, %v5191, 0.0
        %5217 = vadd.xlane.f32.xlu0 %v5216
        %v5218 = vpop.xlane.xlu0 %5217
        %v5219 = vmul.f32 %v5194, %v855
        %v5220 = vmul.f32 %v5197, %v855
        %v5221 = vmul.f32 %v5200, %v855
        %v5222 = vmul.f32 %v5203, %v855
        %v5223 = vmul.f32 %v5206, %v855
        %v5224 = vmul.f32 %v5209, %v855
        %v5225 = vmul.f32 %v5212, %v855
        %v5226 = vmul.f32 %v5215, %v855
        %v5227 = vmul.f32 %v5218, %v855
        %v5228 = vadd.f32 %v5219, 1e-05
        %v5229 = vadd.f32 %v5220, 1e-05
        %v5230 = vadd.f32 %v5221, 1e-05
        %v5231 = vadd.f32 %v5222, 1e-05
        %v5232 = vadd.f32 %v5223, 1e-05
        %v5233 = vadd.f32 %v5224, 1e-05
        %v5234 = vadd.f32 %v5225, 1e-05
        %v5235 = vadd.f32 %v5226, 1e-05
        %v5236 = vadd.f32 %v5227, 1e-05
        %v5237 = vrsqrt.pop %v5228
        %v5238 = vrsqrt.pop %v5229
        %v5239 = vrsqrt.pop %v5230
        %v5240 = vrsqrt.pop %v5231
        %v5241 = vrsqrt.pop %v5232
        %v5242 = vrsqrt.pop %v5233
        %v5243 = vrsqrt.pop %v5234
        %v5244 = vrsqrt.pop %v5235
        %v5245 = vrsqrt.pop %v5236
        %v5246 = vmul.f32 %v5174, %v5237
        %v5247 = vmul.f32 %v5175, %v5238
        %v5248 = vmul.f32 %v5176, %v5239
        %v5249 = vmul.f32 %v5177, %v5240
        %v5250 = vmul.f32 %v5178, %v5241
        %v5251 = vmul.f32 %v5179, %v5242
        %v5252 = vmul.f32 %v5180, %v5243
        %v5253 = vmul.f32 %v5181, %v5244
        %v5254 = vmul.f32 %v5182, %v5245
        %v5256 = vlaneseq
        %v5257 = vshrl.u32 %v5256, 7
        %v5258 = vsub.s32 0, %v5257
        %v5259 = vrot.slane %v5136, %v5258
        %v5261 = vmul.f32 %v5246, %v5259
        %v5262 = vmul.f32 %v5247, %v5259
        %v5263 = vmul.f32 %v5248, %v5259
        %v5264 = vmul.f32 %v5249, %v5259
        %v5265 = vmul.f32 %v5250, %v5259
        %v5266 = vmul.f32 %v5251, %v5259
        %v5267 = vmul.f32 %v5252, %v5259
        %v5268 = vmul.f32 %v5253, %v5259
        %v5269 = vmul.f32 %v5254, %v5259
        %v5271 = vlaneseq
        %v5272 = vshrl.u32 %v5271, 7
        %v5273 = vsub.s32 0, %v5272
        %v5274 = vrot.slane %v5137, %v5273
        %v5276 = vadd.f32 %v5261, %v5274
        %v5277 = vadd.f32 %v5262, %v5274
        %v5278 = vadd.f32 %v5263, %v5274
        %v5279 = vadd.f32 %v5264, %v5274
        %v5280 = vadd.f32 %v5265, %v5274
        %v5281 = vadd.f32 %v5266, %v5274
        %v5282 = vadd.f32 %v5267, %v5274
        %v5283 = vadd.f32 %v5268, %v5274
        %v5284 = vadd.f32 %v5269, %v5274
        %5285 = vst.msk [vmem:[%s596] sm:$0xff] %vm784, %v5276
        %5286 = vst.msk [vmem:[%s596 + $0x8] sm:$0xff] %vm784, %v5277
        %5287 = vst.msk [vmem:[%s596 + $0x10] sm:$0xff] %vm784, %v5278
        %5288 = vst.msk [vmem:[%s596 + $0x18] sm:$0xff] %vm784, %v5279
        %5289 = vst.msk [vmem:[%s596 + $0x20] sm:$0xff] %vm784, %v5280
        %5290 = vst.msk [vmem:[%s596 + $0x28] sm:$0xff] %vm784, %v5281
        %5291 = vst.msk [vmem:[%s596 + $0x30] sm:$0xff] %vm784, %v5282
        %5292 = vst.msk [vmem:[%s596 + $0x38] sm:$0xff] %vm784, %v5283
        %5293 = vst.msk [vmem:[%s596 + $0x40] sm:$0xff] %vm784, %v5284
        %p5294 = scmp.lt.s32.totalorder %s31, 1
        %s5295 = scalar_select %p5294, %s31, 1
        %s5296 = smul.addr %s5295, 9
        %s5297 = smul.addr %s5296, 8
        %s5298 = scalar_lea.vmem %s19, %s5297
        // Predicated region
        $region101: #{transformer_forward.1} parent=95 // pred_check
          %p5299 = pneg %p448
        $region102: #{transformer_forward.1} parent=95 // pred_check_branch
          %5301 = sbr.rel (%p5299) target = $region104
        $region103: #{transformer_forward.1} parent=95 // pred_region
          _
        $region104: #{transformer_forward.1} parent=95 // pred_fallthru
          _
      $region96: #{transformer_forward.1} parent=5 // pred_fallthru
        _
      %p5302 = scmp.le.s32.totalorder 2, %s26
      // Predicated region
      $region105: #{transformer_forward.1} parent=5 // pred_check
        %p5303 = pneg %p5302
      $region106: #{transformer_forward.1} parent=5 // pred_check_branch
        %5305 = sbr.rel (%p5303) target = $region108
      $region107: #{transformer_forward.1} parent=5 // pred_region
        %s5306 = ssub.s32 %s26, 2
        // Predicated region
        $region109: #{transformer_forward.1} parent=107 // pred_check
          %p5307 = pneg %p454
        $region110: #{transformer_forward.1} parent=107 // pred_check_branch
          %5309 = sbr.rel (%p5307) target = $region112
        $region111: #{transformer_forward.1} parent=107 // pred_region
          %p5310 = scmp.lt.s32.totalorder %s32, 1
          %s5311 = scalar_select %p5310, %s32, 1
          %s5312 = smul.addr %s5311, 9
          %s5313 = smul.addr %s5312, 8
          %s5314 = scalar_lea.vmem %s19, %s5313
        $region112: #{transformer_forward.1} parent=107 // pred_fallthru
          _
      $region108: #{transformer_forward.1} parent=5 // pred_fallthru
        _
    $region6: #{transformer_forward.1} parent=1 // loop_footer
      %s30 = sadd.s32 1, %s26
    $region7: #{transformer_forward.1} parent=1 // loop_footer_branch
      %25 = sbr.rel target = $region3
    $region8: #{transformer_forward.1} parent=1 // loop_exit
      _
    %5315 = vsyncpa [#allocation4], 1
    %s5316 = scalar_lea.sflag [#allocation4], 1
    %5317 = vsyncpa %s5316, 1

</llo_original>
